<compile_context>
chip_gen: v5e
topology: v5e:2x2
jax: 0.10.0
libtpu: 0.0.40
codegen_flags: <defaults>
</compile_context>

<pallas_src>
import math

import jax
import jax.numpy as jnp
from jax.experimental import pallas as pl
from jax.experimental.pallas import tpu as pltpu

# 8 skeleton directions (dy, dx): E, SE, S, SW, W, NW, N, NE
_DIRS = ((0, 1), (1, 1), (1, 0), (1, -1),
         (0, -1), (-1, -1), (-1, 0), (-1, 1))


def _round_up(a, b):
    return (a + b - 1) // b * b


def _make_kernel(*, Opad, K, CC, TM, TW, HALO, Wp, dilation, nT):
    KCC = K * CC

    def kernel(x_hbm, w_ref, o_ref, xbuf, xops, sem):
        # x_hbm: (N, CC, Ltot) in HBM (compute dtype), manual DMA
        # w_ref: (8, Opad, K*CC) VMEM-resident rotated + tap-fused weights
        # o_ref: (1, 8*Opad, TM)  output block (lane-dense in M)
        # xbuf:  (2, CC, TW) VMEM halo-window double buffer
        # xops:  (K*CC, TM)  VMEM staged fused-tap operand
        # sem:   (2,) DMA semaphores
        n = pl.program_id(0)
        t = pl.program_id(1)
        slot = t % 2

        def window_copy(tt, sl):
            return pltpu.make_async_copy(
                x_hbm.at[n, :, pl.ds(tt * TM, TW)],
                xbuf.at[sl],
                sem.at[sl])

        # Prime the pipeline at the first tile of each batch row (the t axis
        # is "arbitrary", so t == 0 is always executed by the owning core).
        @pl.when(t == 0)
        def _():
            window_copy(t, slot).start()

        # Prefetch the next tile's halo window while computing this one.
        if nT > 1:
            @pl.when(t + 1 < nT)
            def _():
                window_copy(t + 1, 1 - slot).start()

        window_copy(t, slot).wait()
        xw = xbuf.at[slot]                       # (CC, TW) view

        # k = 0 tap is direction independent: stage it once for all 8 dirs.
        xops[0:CC, :] = xw[:, HALO:HALO + TM]

        for d, (dy, dx) in enumerate(_DIRS):
            # Stage the direction-specific shifted taps (k = 1..K-1).
            for k in range(1, K):
                lo = HALO + k * dilation * (dy * Wp + dx)   # static start
                xops[k * CC:(k + 1) * CC, :] = xw[:, lo:lo + TM]
            # One MXU contraction per direction over the fused K*CC depth.
            res = jnp.dot(w_ref[d], xops[...],
                          preferred_element_type=jnp.float32)
            o_ref[0, d * Opad:(d + 1) * Opad, :] = res.astype(o_ref.dtype)

    return kernel


def r8_conv(x, weight, dilation=1, *, block_m=2048,
            compute_dtype=jnp.bfloat16, out_dtype=jnp.float32):
    """Forward pass of R8Conv.

    x:      (N, C, 8, H, W) float32
    weight: (O, 8*C, K) float32
    returns (N, O, 8, H, W) in x.dtype
    """
    N, C, R, H, W = x.shape
    assert R == 8, "orientation axis must have size 8"
    O, CCw, K = weight.shape
    CC = 8 * C
    assert CCw == CC, "weight in_channels must be 8 * in_channels"
    KCC = K * CC

    pad = (K - 1) * dilation                   # max spatial tap offset
    Hp, Wp = H + 2 * pad, W + 2 * pad
    L = Hp * Wp                                # flattened padded spatial size
    HALO = pad * Wp + pad                      # max |flat shift|

    cb = jnp.dtype(compute_dtype).itemsize
    ob = jnp.dtype(out_dtype).itemsize
    o_sub = 8 * (4 // ob)                      # sublane multiple of out dtype
    Opad = _round_up(O, o_sub)
    w_bytes = 8 * Opad * KCC * cb

    # ------------- generation-aware tile-size selection -------------------
    try:
        vmem_cap = int(pltpu.get_tpu_info().vmem_capacity_bytes)
    except Exception:                          # pragma: no cover
        vmem_cap = 0
    if vmem_cap <= 0:
        vmem_cap = 64 * 1024 * 1024            # conservative (v7x per-core)
    budget = int(0.45 * vmem_cap)

    # vreg-pressure cap on the live (Opad, TM) f32 dot result (<= 128 KiB).
    tm_vreg = max(128, ((128 * 1024) // (Opad * 4)) // 128 * 128)
    tm_cap = max(128, min(_round_up(block_m, 128), tm_vreg,
                          _round_up(L, 128)))
    TM = 128
    for cand in range(tm_cap, 127, -128):
        tw = _round_up(cand + 2 * HALO, 128)
        fp = (2 * CC * tw * cb                 # double-buffered halo windows
              + KCC * cand * cb                # staged fused-tap operand
              + 2 * w_bytes                    # weights (pipeline buffers)
              + 2 * 8 * Opad * cand * ob)      # double-buffered out blocks
        if fp <= budget:
            TM = cand
            break
    TW = _round_up(TM + 2 * HALO, 128)         # lane-aligned window width
    nT = -(-L // TM)
    LPAD = nT * TM
    Ltot = (nT - 1) * TM + TW
    footprint = (2 * CC * TW * cb + KCC * TM * cb + 2 * w_bytes
                 + 2 * 8 * Opad * TM * ob)
    vmem_limit = int(min(int(0.9 * vmem_cap),
                         max(footprint + (4 << 20), 16 << 20)))

    # ------------- glue: pure layout / data movement -----------------------
    # (N, C, 8, H, W) -> (N, 8C, H, W) with channel index j*C + c (j = orient)
    xf = jnp.transpose(x, (0, 2, 1, 3, 4)).reshape(N, CC, H, W)
    xp = jnp.pad(xf, ((0, 0), (0, 0), (pad, pad), (pad, pad))).reshape(N, CC, L)
    xe = jnp.pad(xp, ((0, 0), (0, 0), (HALO, Ltot - L - HALO)))
    xe = xe.astype(compute_dtype)              # stays in HBM (pl.ANY)

    # Rotated + tap-fused weights:
    #   wk[d, o, k*CC + j*C + c] = weight[o, ((j - d) % 8)*C + c, k]
    w4 = weight.reshape(O, 8, C, K)
    if Opad != O:
        w4 = jnp.pad(w4, ((0, Opad - O), (0, 0), (0, 0), (0, 0)))
    wrot = jnp.stack([jnp.roll(w4, d, axis=1) for d in range(8)], axis=0)
    wk = jnp.transpose(wrot, (0, 1, 4, 2, 3)).reshape(8, Opad, KCC)
    wk = wk.astype(compute_dtype)

    # ------------- hot path: Pallas kernel ---------------------------------
    kernel = _make_kernel(Opad=Opad, K=K, CC=CC, TM=TM, TW=TW, HALO=HALO,
                          Wp=Wp, dilation=dilation, nT=nT)
    out_flat = pl.pallas_call(
        kernel,
        out_shape=jax.ShapeDtypeStruct((N, 8 * Opad, LPAD), out_dtype),
        grid_spec=pltpu.PrefetchScalarGridSpec(
            num_scalar_prefetch=0,
            grid=(N, nT),
            in_specs=[
                pl.BlockSpec(memory_space=pl.ANY),                 # x in HBM
                pl.BlockSpec((8, Opad, KCC), lambda n, t: (0, 0, 0)),
            ],
            out_specs=pl.BlockSpec((1, 8 * Opad, TM),
                                   lambda n, t: (n, 0, t)),
            scratch_shapes=[
                pltpu.VMEM((2, CC, TW), compute_dtype),   # halo double buffer
                pltpu.VMEM((KCC, TM), compute_dtype),     # fused-tap operand
                pltpu.SemaphoreType.DMA((2,)),
            ],
        ),
        compiler_params=pltpu.CompilerParams(
            # t axis must stay sequential per core (manual DMA pipeline prime
            # at t == 0); batch axis is megacore-parallel.
            dimension_semantics=("parallel", "arbitrary"),
            vmem_limit_bytes=vmem_limit,
        ),
    )(xe, wk)

    # ------------- glue: back to (N, O, 8, H, W) ----------------------------
    # Slice + crop + transpose fuse into a single XLA copy.
    out = out_flat[:, :, :L].reshape(N, 8, Opad, Hp, Wp)
    out = out[:, :, :O, pad:pad + H, pad:pad + W]
    out = jnp.transpose(out, (0, 2, 1, 3, 4))
    return out.astype(x.dtype)


def init_r8conv_weight(key, out_channels, in_channels, kernel_size):
    """kaiming_uniform_(nonlinearity='relu') on an (O, 8*C, K) tensor."""
    fan_in = 8 * in_channels * kernel_size
    gain = math.sqrt(2.0)
    bound = gain * math.sqrt(3.0 / fan_in)
    return jax.random.uniform(
        key, (out_channels, 8 * in_channels, kernel_size),
        minval=-bound, maxval=bound, dtype=jnp.float32)


def _reference(x, weight, dilation=1, compute_dtype=jnp.bfloat16):
    """Pure-JAX reference implementing R8Conv.forward directly."""
    N, C, R, H, W = x.shape
    O, CC, K = weight.shape
    pad = (K - 1) * dilation
    wf = weight.astype(compute_dtype).astype(jnp.float32)
    outs = []
    for d, (dy, dx) in enumerate(_DIRS):
        # channel rotation + concat, as in the PyTorch forward
        x_tmp = jnp.concatenate([x[:, :, (i + d) % 8] for i in range(8)],
                                axis=1)                       # (N, 8C, H, W)
        xp = jnp.pad(x_tmp, ((0, 0), (0, 0), (pad, pad), (pad, pad)))
        xp = xp.astype(compute_dtype).astype(jnp.float32)
        acc = jnp.zeros((N, O, H, W), jnp.float32)
        for k in range(K):
            oy = pad + k * dilation * dy
            ox = pad + k * dilation * dx
            patch = xp[:, :, oy:oy + H, ox:ox + W]            # (N, 8C, H, W)
            acc = acc + jnp.einsum("nchw,oc->nohw", patch, wf[:, :, k],
                                   precision=jax.lax.Precision.HIGHEST)
        outs.append(acc)
    return jnp.stack(outs, axis=2)                            # (N, O, 8, H, W)


if __name__ == "__main__":
    key = jax.random.PRNGKey(0)
    k_x, k_w = jax.random.split(key)

    N, C_in, C_out, H, W, K = 2, 4, 8, 16, 16, 3
    dilation = 1

    x = jax.random.normal(k_x, (N, C_in, 8, H, W), dtype=jnp.float32)
    weight = init_r8conv_weight(k_w, C_out, C_in, K)

    y_ref = jax.block_until_ready(_reference(x, weight, dilation))

    # Default tiling (single M tile at this problem size).
    y = jax.block_until_ready(r8_conv(x, weight, dilation))
    assert y.shape == (N, C_out, 8, H, W), y.shape
    err = float(jnp.max(jnp.abs(y - y_ref)))
    assert jnp.allclose(y, y_ref, atol=2e-2, rtol=2e-2), \
        f"mismatch vs reference (max abs err {err})"

    # Small block_m forces multiple M tiles and exercises the in-kernel
    # double-buffered halo-window DMA pipeline.
    y2 = jax.block_until_ready(r8_conv(x, weight, dilation, block_m=128))
    err2 = float(jnp.max(jnp.abs(y2 - y_ref)))
    assert jnp.allclose(y2, y_ref, atol=2e-2, rtol=2e-2), \
        f"multi-tile mismatch vs reference (max abs err {err2})"

    print("KERNEL_OK")
</pallas_src>

<mosaic_0001>
module attributes {stable_mosaic.version = 11 : i64} {
  func.func @kernel(%arg0: i32, %arg1: i32, %arg2: memref<2x32x640xbf16, #tpu.memory_space<any>>, %arg3: memref<8x8x96xbf16, #tpu.memory_space<vmem>>, %arg4: memref<1x64x512xf32, #tpu.memory_space<vmem>>, %arg5: memref<2x32x640xbf16, #tpu.memory_space<vmem>>, %arg6: memref<96x512xbf16, #tpu.memory_space<vmem>>, %arg7: memref<2x!tpu.dma_semaphore, #tpu.memory_space<semaphore_mem>>) attributes {dimension_semantics = [#tpu.dimension_semantics<parallel>, #tpu.dimension_semantics<arbitrary>], iteration_bounds = array<i64: 2, 1>, scalar_prefetch = 0 : i64, scratch_operands = 3 : i64, tpu.core_type = #tpu.core_type<tc>, window_params = [{}, {pipeline_mode = #tpu.pipeline_mode<synchronous>, transform_indices = @transform_1, window_bounds = array<i64: 8, 8, 96>}, {transform_indices = @transform_2, window_bounds = array<i64: 1, 64, 512>}]} {
    %c2_i32 = arith.constant 2 : i32
    %c0_i32 = arith.constant 0 : i32
    %0 = arith.cmpi eq, %c2_i32, %c0_i32 : i32
    %c1_i32 = arith.constant 1 : i32
    %1 = arith.select %0, %c1_i32, %c2_i32 : i32
    %2 = arith.remsi %arg1, %1 : i32
    %c0_i32_0 = arith.constant 0 : i32
    %3 = arith.cmpi ne, %2, %c0_i32_0 : i32
    %c0_i32_1 = arith.constant 0 : i32
    %4 = arith.cmpi slt, %2, %c0_i32_1 : i32
    %c0_i32_2 = arith.constant 0 : i32
    %5 = arith.cmpi slt, %1, %c0_i32_2 : i32
    %6 = arith.xori %4, %5 : i1
    %7 = arith.andi %6, %3 : i1
    %8 = arith.addi %2, %1 : i32
    %9 = arith.select %7, %8, %2 : i32
    %c0_i32_3 = arith.constant 0 : i32
    %10 = arith.cmpi eq, %arg1, %c0_i32_3 : i32
    %11 = arith.extui %10 : i1 to i32
    %c0_i32_4 = arith.constant 0 : i32
    %12 = arith.cmpi ne, %11, %c0_i32_4 : i32
    scf.if %12 {
      %c512_i32_152 = arith.constant 512 : i32
      %144 = arith.muli %arg1, %c512_i32_152 : i32
      %c0_i32_153 = arith.constant 0 : i32
      %145 = tpu.memref_slice %arg2[%arg0, %c0_i32_153, %144] : memref<2x32x640xbf16, #tpu.memory_space<any>> -> memref<1x32x640xbf16, #tpu.memory_space<any>>
      %146 = tpu.memref_squeeze %145 : memref<1x32x640xbf16, #tpu.memory_space<any>> -> memref<32x640xbf16, #tpu.memory_space<any>>
      %c0_i32_154 = arith.constant 0 : i32
      %c0_i32_155 = arith.constant 0 : i32
      %147 = tpu.memref_slice %arg5[%9, %c0_i32_154, %c0_i32_155] : memref<2x32x640xbf16, #tpu.memory_space<vmem>> -> memref<1x32x640xbf16, #tpu.memory_space<vmem>>
      %148 = tpu.memref_squeeze %147 : memref<1x32x640xbf16, #tpu.memory_space<vmem>> -> memref<32x640xbf16, #tpu.memory_space<vmem>>
      %149 = tpu.memref_slice %arg7[%9] : memref<2x!tpu.dma_semaphore, #tpu.memory_space<semaphore_mem>> -> memref<1x!tpu.dma_semaphore, #tpu.memory_space<semaphore_mem>>
      %150 = tpu.memref_squeeze %149 : memref<1x!tpu.dma_semaphore, #tpu.memory_space<semaphore_mem>> -> memref<!tpu.dma_semaphore, #tpu.memory_space<semaphore_mem>>
      tpu.enqueue_dma source(%146 : memref<32x640xbf16, #tpu.memory_space<any>>) target(%148 : memref<32x640xbf16, #tpu.memory_space<vmem>>) target_semaphore(%150 : memref<!tpu.dma_semaphore, #tpu.memory_space<semaphore_mem>>)
    } else {
    }
    %c512_i32 = arith.constant 512 : i32
    %13 = arith.muli %arg1, %c512_i32 : i32
    %c0_i32_5 = arith.constant 0 : i32
    %14 = tpu.memref_slice %arg2[%arg0, %c0_i32_5, %13] : memref<2x32x640xbf16, #tpu.memory_space<any>> -> memref<1x32x640xbf16, #tpu.memory_space<any>>
    %15 = tpu.memref_squeeze %14 : memref<1x32x640xbf16, #tpu.memory_space<any>> -> memref<32x640xbf16, #tpu.memory_space<any>>
    %c0_i32_6 = arith.constant 0 : i32
    %c0_i32_7 = arith.constant 0 : i32
    %16 = tpu.memref_slice %arg5[%9, %c0_i32_6, %c0_i32_7] : memref<2x32x640xbf16, #tpu.memory_space<vmem>> -> memref<1x32x640xbf16, #tpu.memory_space<vmem>>
    %17 = tpu.memref_squeeze %16 : memref<1x32x640xbf16, #tpu.memory_space<vmem>> -> memref<32x640xbf16, #tpu.memory_space<vmem>>
    %18 = tpu.memref_slice %arg7[%9] : memref<2x!tpu.dma_semaphore, #tpu.memory_space<semaphore_mem>> -> memref<1x!tpu.dma_semaphore, #tpu.memory_space<semaphore_mem>>
    %19 = tpu.memref_squeeze %18 : memref<1x!tpu.dma_semaphore, #tpu.memory_space<semaphore_mem>> -> memref<!tpu.dma_semaphore, #tpu.memory_space<semaphore_mem>>
    tpu.wait_dma2 semaphore(%19 : memref<!tpu.dma_semaphore, #tpu.memory_space<semaphore_mem>>) src(%15 : memref<32x640xbf16, #tpu.memory_space<any>>) dst(%17 : memref<32x640xbf16, #tpu.memory_space<vmem>>)
    %c0_i32_8 = arith.constant 0 : i32
    %c0_i32_9 = arith.constant 0 : i32
    %20 = tpu.memref_slice %arg5[%9, %c0_i32_8, %c0_i32_9] : memref<2x32x640xbf16, #tpu.memory_space<vmem>> -> memref<1x32x640xbf16, #tpu.memory_space<vmem>>
    %21 = tpu.memref_squeeze %20 : memref<1x32x640xbf16, #tpu.memory_space<vmem>> -> memref<32x640xbf16, #tpu.memory_space<vmem>>
    %c0 = arith.constant 0 : index
    %c42 = arith.constant 42 : index
    %22 = vector.load %21[%c0, %c42] : memref<32x640xbf16, #tpu.memory_space<vmem>>, vector<32x512xbf16>
    %c0_10 = arith.constant 0 : index
    %c0_11 = arith.constant 0 : index
    %23 = vector.load %arg6[%c0_10, %c0_11] : memref<96x512xbf16, #tpu.memory_space<vmem>>, vector<32x512xbf16>
    tpu.vector_store %arg6[%c0_10, %c0_11], %22 {strides = array<i32>} : memref<96x512xbf16, #tpu.memory_space<vmem>>, vector<32x512xbf16>,
    %c0_i32_12 = arith.constant 0 : i32
    %c0_i32_13 = arith.constant 0 : i32
    %24 = tpu.memref_slice %arg5[%9, %c0_i32_12, %c0_i32_13] : memref<2x32x640xbf16, #tpu.memory_space<vmem>> -> memref<1x32x640xbf16, #tpu.memory_space<vmem>>
    %25 = tpu.memref_squeeze %24 : memref<1x32x640xbf16, #tpu.memory_space<vmem>> -> memref<32x640xbf16, #tpu.memory_space<vmem>>
    %c0_14 = arith.constant 0 : index
    %c43 = arith.constant 43 : index
    %26 = vector.load %25[%c0_14, %c43] : memref<32x640xbf16, #tpu.memory_space<vmem>>, vector<32x512xbf16>
    %c32 = arith.constant 32 : index
    %c0_15 = arith.constant 0 : index
    %27 = vector.load %arg6[%c32, %c0_15] : memref<96x512xbf16, #tpu.memory_space<vmem>>, vector<32x512xbf16>
    tpu.vector_store %arg6[%c32, %c0_15], %26 {strides = array<i32>} : memref<96x512xbf16, #tpu.memory_space<vmem>>, vector<32x512xbf16>,
    %c0_i32_16 = arith.constant 0 : i32
    %c0_i32_17 = arith.constant 0 : i32
    %28 = tpu.memref_slice %arg5[%9, %c0_i32_16, %c0_i32_17] : memref<2x32x640xbf16, #tpu.memory_space<vmem>> -> memref<1x32x640xbf16, #tpu.memory_space<vmem>>
    %29 = tpu.memref_squeeze %28 : memref<1x32x640xbf16, #tpu.memory_space<vmem>> -> memref<32x640xbf16, #tpu.memory_space<vmem>>
    %c0_18 = arith.constant 0 : index
    %c44 = arith.constant 44 : index
    %30 = vector.load %29[%c0_18, %c44] : memref<32x640xbf16, #tpu.memory_space<vmem>>, vector<32x512xbf16>
    %c64 = arith.constant 64 : index
    %c0_19 = arith.constant 0 : index
    %31 = vector.load %arg6[%c64, %c0_19] : memref<96x512xbf16, #tpu.memory_space<vmem>>, vector<32x512xbf16>
    tpu.vector_store %arg6[%c64, %c0_19], %30 {strides = array<i32>} : memref<96x512xbf16, #tpu.memory_space<vmem>>, vector<32x512xbf16>,
    %c0_20 = arith.constant 0 : index
    %c0_21 = arith.constant 0 : index
    %c0_22 = arith.constant 0 : index
    %32 = vector.load %arg3[%c0_20, %c0_21, %c0_22] : memref<8x8x96xbf16, #tpu.memory_space<vmem>>, vector<1x8x96xbf16>
    %33 = vector.shape_cast %32 : vector<1x8x96xbf16> to vector<8x96xbf16>
    %c0_23 = arith.constant 0 : index
    %c0_24 = arith.constant 0 : index
    %34 = vector.load %arg6[%c0_23, %c0_24] : memref<96x512xbf16, #tpu.memory_space<vmem>>, vector<96x512xbf16>
    %cst = arith.constant dense<0.000000e+00> : vector<8x512xf32>
    %35 = tpu.matmul %33, %34, %cst {dimension_numbers = #tpu.dot_dimension_numbers<[1], [0], [0], [1], [0, 0, 1, 1], [], []>} : vector<8x96xbf16>, vector<96x512xbf16>, vector<8x512xf32> -> vector<8x512xf32>
    %c0_25 = arith.constant 0 : index
    %c0_26 = arith.constant 0 : index
    %c0_27 = arith.constant 0 : index
    %36 = vector.load %arg4[%c0_25, %c0_26, %c0_27] : memref<1x64x512xf32, #tpu.memory_space<vmem>>, vector<1x8x512xf32>
    %37 = vector.shape_cast %36 : vector<1x8x512xf32> to vector<8x512xf32>
    %38 = vector.shape_cast %35 : vector<8x512xf32> to vector<1x8x512xf32>
    tpu.vector_store %arg4[%c0_25, %c0_26, %c0_27], %38 {strides = array<i32>} : memref<1x64x512xf32, #tpu.memory_space<vmem>>, vector<1x8x512xf32>,
    %c0_i32_28 = arith.constant 0 : i32
    %c0_i32_29 = arith.constant 0 : i32
    %39 = tpu.memref_slice %arg5[%9, %c0_i32_28, %c0_i32_29] : memref<2x32x640xbf16, #tpu.memory_space<vmem>> -> memref<1x32x640xbf16, #tpu.memory_space<vmem>>
    %40 = tpu.memref_squeeze %39 : memref<1x32x640xbf16, #tpu.memory_space<vmem>> -> memref<32x640xbf16, #tpu.memory_space<vmem>>
    %c0_30 = arith.constant 0 : index
    %c63 = arith.constant 63 : index
    %41 = vector.load %40[%c0_30, %c63] : memref<32x640xbf16, #tpu.memory_space<vmem>>, vector<32x512xbf16>
    %c32_31 = arith.constant 32 : index
    %c0_32 = arith.constant 0 : index
    %42 = vector.load %arg6[%c32_31, %c0_32] : memref<96x512xbf16, #tpu.memory_space<vmem>>, vector<32x512xbf16>
    tpu.vector_store %arg6[%c32_31, %c0_32], %41 {strides = array<i32>} : memref<96x512xbf16, #tpu.memory_space<vmem>>, vector<32x512xbf16>,
    %c0_i32_33 = arith.constant 0 : i32
    %c0_i32_34 = arith.constant 0 : i32
    %43 = tpu.memref_slice %arg5[%9, %c0_i32_33, %c0_i32_34] : memref<2x32x640xbf16, #tpu.memory_space<vmem>> -> memref<1x32x640xbf16, #tpu.memory_space<vmem>>
    %44 = tpu.memref_squeeze %43 : memref<1x32x640xbf16, #tpu.memory_space<vmem>> -> memref<32x640xbf16, #tpu.memory_space<vmem>>
    %c0_35 = arith.constant 0 : index
    %c84 = arith.constant 84 : index
    %45 = vector.load %44[%c0_35, %c84] : memref<32x640xbf16, #tpu.memory_space<vmem>>, vector<32x512xbf16>
    %c64_36 = arith.constant 64 : index
    %c0_37 = arith.constant 0 : index
    %46 = vector.load %arg6[%c64_36, %c0_37] : memref<96x512xbf16, #tpu.memory_space<vmem>>, vector<32x512xbf16>
    tpu.vector_store %arg6[%c64_36, %c0_37], %45 {strides = array<i32>} : memref<96x512xbf16, #tpu.memory_space<vmem>>, vector<32x512xbf16>,
    %c1 = arith.constant 1 : index
    %c0_38 = arith.constant 0 : index
    %c0_39 = arith.constant 0 : index
    %47 = vector.load %arg3[%c1, %c0_38, %c0_39] : memref<8x8x96xbf16, #tpu.memory_space<vmem>>, vector<1x8x96xbf16>
    %48 = vector.shape_cast %47 : vector<1x8x96xbf16> to vector<8x96xbf16>
    %c0_40 = arith.constant 0 : index
    %c0_41 = arith.constant 0 : index
    %49 = vector.load %arg6[%c0_40, %c0_41] : memref<96x512xbf16, #tpu.memory_space<vmem>>, vector<96x512xbf16>
    %cst_42 = arith.constant dense<0.000000e+00> : vector<8x512xf32>
    %50 = tpu.matmul %48, %49, %cst_42 {dimension_numbers = #tpu.dot_dimension_numbers<[1], [0], [0], [1], [0, 0, 1, 1], [], []>} : vector<8x96xbf16>, vector<96x512xbf16>, vector<8x512xf32> -> vector<8x512xf32>
    %c0_43 = arith.constant 0 : index
    %c8 = arith.constant 8 : index
    %c0_44 = arith.constant 0 : index
    %51 = vector.load %arg4[%c0_43, %c8, %c0_44] : memref<1x64x512xf32, #tpu.memory_space<vmem>>, vector<1x8x512xf32>
    %52 = vector.shape_cast %51 : vector<1x8x512xf32> to vector<8x512xf32>
    %53 = vector.shape_cast %50 : vector<8x512xf32> to vector<1x8x512xf32>
    tpu.vector_store %arg4[%c0_43, %c8, %c0_44], %53 {strides = array<i32>} : memref<1x64x512xf32, #tpu.memory_space<vmem>>, vector<1x8x512xf32>,
    %c0_i32_45 = arith.constant 0 : i32
    %c0_i32_46 = arith.constant 0 : i32
    %54 = tpu.memref_slice %arg5[%9, %c0_i32_45, %c0_i32_46] : memref<2x32x640xbf16, #tpu.memory_space<vmem>> -> memref<1x32x640xbf16, #tpu.memory_space<vmem>>
    %55 = tpu.memref_squeeze %54 : memref<1x32x640xbf16, #tpu.memory_space<vmem>> -> memref<32x640xbf16, #tpu.memory_space<vmem>>
    %c0_47 = arith.constant 0 : index
    %c62 = arith.constant 62 : index
    %56 = vector.load %55[%c0_47, %c62] : memref<32x640xbf16, #tpu.memory_space<vmem>>, vector<32x512xbf16>
    %c32_48 = arith.constant 32 : index
    %c0_49 = arith.constant 0 : index
    %57 = vector.load %arg6[%c32_48, %c0_49] : memref<96x512xbf16, #tpu.memory_space<vmem>>, vector<32x512xbf16>
    tpu.vector_store %arg6[%c32_48, %c0_49], %56 {strides = array<i32>} : memref<96x512xbf16, #tpu.memory_space<vmem>>, vector<32x512xbf16>,
    %c0_i32_50 = arith.constant 0 : i32
    %c0_i32_51 = arith.constant 0 : i32
    %58 = tpu.memref_slice %arg5[%9, %c0_i32_50, %c0_i32_51] : memref<2x32x640xbf16, #tpu.memory_space<vmem>> -> memref<1x32x640xbf16, #tpu.memory_space<vmem>>
    %59 = tpu.memref_squeeze %58 : memref<1x32x640xbf16, #tpu.memory_space<vmem>> -> memref<32x640xbf16, #tpu.memory_space<vmem>>
    %c0_52 = arith.constant 0 : index
    %c82 = arith.constant 82 : index
    %60 = vector.load %59[%c0_52, %c82] : memref<32x640xbf16, #tpu.memory_space<vmem>>, vector<32x512xbf16>
    %c64_53 = arith.constant 64 : index
    %c0_54 = arith.constant 0 : index
    %61 = vector.load %arg6[%c64_53, %c0_54] : memref<96x512xbf16, #tpu.memory_space<vmem>>, vector<32x512xbf16>
    tpu.vector_store %arg6[%c64_53, %c0_54], %60 {strides = array<i32>} : memref<96x512xbf16, #tpu.memory_space<vmem>>, vector<32x512xbf16>,
    %c2 = arith.constant 2 : index
    %c0_55 = arith.constant 0 : index
    %c0_56 = arith.constant 0 : index
    %62 = vector.load %arg3[%c2, %c0_55, %c0_56] : memref<8x8x96xbf16, #tpu.memory_space<vmem>>, vector<1x8x96xbf16>
    %63 = vector.shape_cast %62 : vector<1x8x96xbf16> to vector<8x96xbf16>
    %c0_57 = arith.constant 0 : index
    %c0_58 = arith.constant 0 : index
    %64 = vector.load %arg6[%c0_57, %c0_58] : memref<96x512xbf16, #tpu.memory_space<vmem>>, vector<96x512xbf16>
    %cst_59 = arith.constant dense<0.000000e+00> : vector<8x512xf32>
    %65 = tpu.matmul %63, %64, %cst_59 {dimension_numbers = #tpu.dot_dimension_numbers<[1], [0], [0], [1], [0, 0, 1, 1], [], []>} : vector<8x96xbf16>, vector<96x512xbf16>, vector<8x512xf32> -> vector<8x512xf32>
    %c0_60 = arith.constant 0 : index
    %c16 = arith.constant 16 : index
    %c0_61 = arith.constant 0 : index
    %66 = vector.load %arg4[%c0_60, %c16, %c0_61] : memref<1x64x512xf32, #tpu.memory_space<vmem>>, vector<1x8x512xf32>
    %67 = vector.shape_cast %66 : vector<1x8x512xf32> to vector<8x512xf32>
    %68 = vector.shape_cast %65 : vector<8x512xf32> to vector<1x8x512xf32>
    tpu.vector_store %arg4[%c0_60, %c16, %c0_61], %68 {strides = array<i32>} : memref<1x64x512xf32, #tpu.memory_space<vmem>>, vector<1x8x512xf32>,
    %c0_i32_62 = arith.constant 0 : i32
    %c0_i32_63 = arith.constant 0 : i32
    %69 = tpu.memref_slice %arg5[%9, %c0_i32_62, %c0_i32_63] : memref<2x32x640xbf16, #tpu.memory_space<vmem>> -> memref<1x32x640xbf16, #tpu.memory_space<vmem>>
    %70 = tpu.memref_squeeze %69 : memref<1x32x640xbf16, #tpu.memory_space<vmem>> -> memref<32x640xbf16, #tpu.memory_space<vmem>>
    %c0_64 = arith.constant 0 : index
    %c61 = arith.constant 61 : index
    %71 = vector.load %70[%c0_64, %c61] : memref<32x640xbf16, #tpu.memory_space<vmem>>, vector<32x512xbf16>
    %c32_65 = arith.constant 32 : index
    %c0_66 = arith.constant 0 : index
    %72 = vector.load %arg6[%c32_65, %c0_66] : memref<96x512xbf16, #tpu.memory_space<vmem>>, vector<32x512xbf16>
    tpu.vector_store %arg6[%c32_65, %c0_66], %71 {strides = array<i32>} : memref<96x512xbf16, #tpu.memory_space<vmem>>, vector<32x512xbf16>,
    %c0_i32_67 = arith.constant 0 : i32
    %c0_i32_68 = arith.constant 0 : i32
    %73 = tpu.memref_slice %arg5[%9, %c0_i32_67, %c0_i32_68] : memref<2x32x640xbf16, #tpu.memory_space<vmem>> -> memref<1x32x640xbf16, #tpu.memory_space<vmem>>
    %74 = tpu.memref_squeeze %73 : memref<1x32x640xbf16, #tpu.memory_space<vmem>> -> memref<32x640xbf16, #tpu.memory_space<vmem>>
    %c0_69 = arith.constant 0 : index
    %c80 = arith.constant 80 : index
    %75 = vector.load %74[%c0_69, %c80] : memref<32x640xbf16, #tpu.memory_space<vmem>>, vector<32x512xbf16>
    %c64_70 = arith.constant 64 : index
    %c0_71 = arith.constant 0 : index
    %76 = vector.load %arg6[%c64_70, %c0_71] : memref<96x512xbf16, #tpu.memory_space<vmem>>, vector<32x512xbf16>
    tpu.vector_store %arg6[%c64_70, %c0_71], %75 {strides = array<i32>} : memref<96x512xbf16, #tpu.memory_space<vmem>>, vector<32x512xbf16>,
    %c3 = arith.constant 3 : index
    %c0_72 = arith.constant 0 : index
    %c0_73 = arith.constant 0 : index
    %77 = vector.load %arg3[%c3, %c0_72, %c0_73] : memref<8x8x96xbf16, #tpu.memory_space<vmem>>, vector<1x8x96xbf16>
    %78 = vector.shape_cast %77 : vector<1x8x96xbf16> to vector<8x96xbf16>
    %c0_74 = arith.constant 0 : index
    %c0_75 = arith.constant 0 : index
    %79 = vector.load %arg6[%c0_74, %c0_75] : memref<96x512xbf16, #tpu.memory_space<vmem>>, vector<96x512xbf16>
    %cst_76 = arith.constant dense<0.000000e+00> : vector<8x512xf32>
    %80 = tpu.matmul %78, %79, %cst_76 {dimension_numbers = #tpu.dot_dimension_numbers<[1], [0], [0], [1], [0, 0, 1, 1], [], []>} : vector<8x96xbf16>, vector<96x512xbf16>, vector<8x512xf32> -> vector<8x512xf32>
    %c0_77 = arith.constant 0 : index
    %c24 = arith.constant 24 : index
    %c0_78 = arith.constant 0 : index
    %81 = vector.load %arg4[%c0_77, %c24, %c0_78] : memref<1x64x512xf32, #tpu.memory_space<vmem>>, vector<1x8x512xf32>
    %82 = vector.shape_cast %81 : vector<1x8x512xf32> to vector<8x512xf32>
    %83 = vector.shape_cast %80 : vector<8x512xf32> to vector<1x8x512xf32>
    tpu.vector_store %arg4[%c0_77, %c24, %c0_78], %83 {strides = array<i32>} : memref<1x64x512xf32, #tpu.memory_space<vmem>>, vector<1x8x512xf32>,
    %c0_i32_79 = arith.constant 0 : i32
    %c0_i32_80 = arith.constant 0 : i32
    %84 = tpu.memref_slice %arg5[%9, %c0_i32_79, %c0_i32_80] : memref<2x32x640xbf16, #tpu.memory_space<vmem>> -> memref<1x32x640xbf16, #tpu.memory_space<vmem>>
    %85 = tpu.memref_squeeze %84 : memref<1x32x640xbf16, #tpu.memory_space<vmem>> -> memref<32x640xbf16, #tpu.memory_space<vmem>>
    %c0_81 = arith.constant 0 : index
    %c41 = arith.constant 41 : index
    %86 = vector.load %85[%c0_81, %c41] : memref<32x640xbf16, #tpu.memory_space<vmem>>, vector<32x512xbf16>
    %c32_82 = arith.constant 32 : index
    %c0_83 = arith.constant 0 : index
    %87 = vector.load %arg6[%c32_82, %c0_83] : memref<96x512xbf16, #tpu.memory_space<vmem>>, vector<32x512xbf16>
    tpu.vector_store %arg6[%c32_82, %c0_83], %86 {strides = array<i32>} : memref<96x512xbf16, #tpu.memory_space<vmem>>, vector<32x512xbf16>,
    %c0_i32_84 = arith.constant 0 : i32
    %c0_i32_85 = arith.constant 0 : i32
    %88 = tpu.memref_slice %arg5[%9, %c0_i32_84, %c0_i32_85] : memref<2x32x640xbf16, #tpu.memory_space<vmem>> -> memref<1x32x640xbf16, #tpu.memory_space<vmem>>
    %89 = tpu.memref_squeeze %88 : memref<1x32x640xbf16, #tpu.memory_space<vmem>> -> memref<32x640xbf16, #tpu.memory_space<vmem>>
    %c0_86 = arith.constant 0 : index
    %c40 = arith.constant 40 : index
    %90 = vector.load %89[%c0_86, %c40] : memref<32x640xbf16, #tpu.memory_space<vmem>>, vector<32x512xbf16>
    %c64_87 = arith.constant 64 : index
    %c0_88 = arith.constant 0 : index
    %91 = vector.load %arg6[%c64_87, %c0_88] : memref<96x512xbf16, #tpu.memory_space<vmem>>, vector<32x512xbf16>
    tpu.vector_store %arg6[%c64_87, %c0_88], %90 {strides = array<i32>} : memref<96x512xbf16, #tpu.memory_space<vmem>>, vector<32x512xbf16>,
    %c4 = arith.constant 4 : index
    %c0_89 = arith.constant 0 : index
    %c0_90 = arith.constant 0 : index
    %92 = vector.load %arg3[%c4, %c0_89, %c0_90] : memref<8x8x96xbf16, #tpu.memory_space<vmem>>, vector<1x8x96xbf16>
    %93 = vector.shape_cast %92 : vector<1x8x96xbf16> to vector<8x96xbf16>
    %c0_91 = arith.constant 0 : index
    %c0_92 = arith.constant 0 : index
    %94 = vector.load %arg6[%c0_91, %c0_92] : memref<96x512xbf16, #tpu.memory_space<vmem>>, vector<96x512xbf16>
    %cst_93 = arith.constant dense<0.000000e+00> : vector<8x512xf32>
    %95 = tpu.matmul %93, %94, %cst_93 {dimension_numbers = #tpu.dot_dimension_numbers<[1], [0], [0], [1], [0, 0, 1, 1], [], []>} : vector<8x96xbf16>, vector<96x512xbf16>, vector<8x512xf32> -> vector<8x512xf32>
    %c0_94 = arith.constant 0 : index
    %c32_95 = arith.constant 32 : index
    %c0_96 = arith.constant 0 : index
    %96 = vector.load %arg4[%c0_94, %c32_95, %c0_96] : memref<1x64x512xf32, #tpu.memory_space<vmem>>, vector<1x8x512xf32>
    %97 = vector.shape_cast %96 : vector<1x8x512xf32> to vector<8x512xf32>
    %98 = vector.shape_cast %95 : vector<8x512xf32> to vector<1x8x512xf32>
    tpu.vector_store %arg4[%c0_94, %c32_95, %c0_96], %98 {strides = array<i32>} : memref<1x64x512xf32, #tpu.memory_space<vmem>>, vector<1x8x512xf32>,
    %c0_i32_97 = arith.constant 0 : i32
    %c0_i32_98 = arith.constant 0 : i32
    %99 = tpu.memref_slice %arg5[%9, %c0_i32_97, %c0_i32_98] : memref<2x32x640xbf16, #tpu.memory_space<vmem>> -> memref<1x32x640xbf16, #tpu.memory_space<vmem>>
    %100 = tpu.memref_squeeze %99 : memref<1x32x640xbf16, #tpu.memory_space<vmem>> -> memref<32x640xbf16, #tpu.memory_space<vmem>>
    %c0_99 = arith.constant 0 : index
    %c21 = arith.constant 21 : index
    %101 = vector.load %100[%c0_99, %c21] : memref<32x640xbf16, #tpu.memory_space<vmem>>, vector<32x512xbf16>
    %c32_100 = arith.constant 32 : index
    %c0_101 = arith.constant 0 : index
    %102 = vector.load %arg6[%c32_100, %c0_101] : memref<96x512xbf16, #tpu.memory_space<vmem>>, vector<32x512xbf16>
    tpu.vector_store %arg6[%c32_100, %c0_101], %101 {strides = array<i32>} : memref<96x512xbf16, #tpu.memory_space<vmem>>, vector<32x512xbf16>,
    %c0_i32_102 = arith.constant 0 : i32
    %c0_i32_103 = arith.constant 0 : i32
    %103 = tpu.memref_slice %arg5[%9, %c0_i32_102, %c0_i32_103] : memref<2x32x640xbf16, #tpu.memory_space<vmem>> -> memref<1x32x640xbf16, #tpu.memory_space<vmem>>
    %104 = tpu.memref_squeeze %103 : memref<1x32x640xbf16, #tpu.memory_space<vmem>> -> memref<32x640xbf16, #tpu.memory_space<vmem>>
    %c0_104 = arith.constant 0 : index
    %c0_105 = arith.constant 0 : index
    %105 = vector.load %104[%c0_104, %c0_105] : memref<32x640xbf16, #tpu.memory_space<vmem>>, vector<32x512xbf16>
    %c64_106 = arith.constant 64 : index
    %c0_107 = arith.constant 0 : index
    %106 = vector.load %arg6[%c64_106, %c0_107] : memref<96x512xbf16, #tpu.memory_space<vmem>>, vector<32x512xbf16>
    tpu.vector_store %arg6[%c64_106, %c0_107], %105 {strides = array<i32>} : memref<96x512xbf16, #tpu.memory_space<vmem>>, vector<32x512xbf16>,
    %c5 = arith.constant 5 : index
    %c0_108 = arith.constant 0 : index
    %c0_109 = arith.constant 0 : index
    %107 = vector.load %arg3[%c5, %c0_108, %c0_109] : memref<8x8x96xbf16, #tpu.memory_space<vmem>>, vector<1x8x96xbf16>
    %108 = vector.shape_cast %107 : vector<1x8x96xbf16> to vector<8x96xbf16>
    %c0_110 = arith.constant 0 : index
    %c0_111 = arith.constant 0 : index
    %109 = vector.load %arg6[%c0_110, %c0_111] : memref<96x512xbf16, #tpu.memory_space<vmem>>, vector<96x512xbf16>
    %cst_112 = arith.constant dense<0.000000e+00> : vector<8x512xf32>
    %110 = tpu.matmul %108, %109, %cst_112 {dimension_numbers = #tpu.dot_dimension_numbers<[1], [0], [0], [1], [0, 0, 1, 1], [], []>} : vector<8x96xbf16>, vector<96x512xbf16>, vector<8x512xf32> -> vector<8x512xf32>
    %c0_113 = arith.constant 0 : index
    %c40_114 = arith.constant 40 : index
    %c0_115 = arith.constant 0 : index
    %111 = vector.load %arg4[%c0_113, %c40_114, %c0_115] : memref<1x64x512xf32, #tpu.memory_space<vmem>>, vector<1x8x512xf32>
    %112 = vector.shape_cast %111 : vector<1x8x512xf32> to vector<8x512xf32>
    %113 = vector.shape_cast %110 : vector<8x512xf32> to vector<1x8x512xf32>
    tpu.vector_store %arg4[%c0_113, %c40_114, %c0_115], %113 {strides = array<i32>} : memref<1x64x512xf32, #tpu.memory_space<vmem>>, vector<1x8x512xf32>,
    %c0_i32_116 = arith.constant 0 : i32
    %c0_i32_117 = arith.constant 0 : i32
    %114 = tpu.memref_slice %arg5[%9, %c0_i32_116, %c0_i32_117] : memref<2x32x640xbf16, #tpu.memory_space<vmem>> -> memref<1x32x640xbf16, #tpu.memory_space<vmem>>
    %115 = tpu.memref_squeeze %114 : memref<1x32x640xbf16, #tpu.memory_space<vmem>> -> memref<32x640xbf16, #tpu.memory_space<vmem>>
    %c0_118 = arith.constant 0 : index
    %c22 = arith.constant 22 : index
    %116 = vector.load %115[%c0_118, %c22] : memref<32x640xbf16, #tpu.memory_space<vmem>>, vector<32x512xbf16>
    %c32_119 = arith.constant 32 : index
    %c0_120 = arith.constant 0 : index
    %117 = vector.load %arg6[%c32_119, %c0_120] : memref<96x512xbf16, #tpu.memory_space<vmem>>, vector<32x512xbf16>
    tpu.vector_store %arg6[%c32_119, %c0_120], %116 {strides = array<i32>} : memref<96x512xbf16, #tpu.memory_space<vmem>>, vector<32x512xbf16>,
    %c0_i32_121 = arith.constant 0 : i32
    %c0_i32_122 = arith.constant 0 : i32
    %118 = tpu.memref_slice %arg5[%9, %c0_i32_121, %c0_i32_122] : memref<2x32x640xbf16, #tpu.memory_space<vmem>> -> memref<1x32x640xbf16, #tpu.memory_space<vmem>>
    %119 = tpu.memref_squeeze %118 : memref<1x32x640xbf16, #tpu.memory_space<vmem>> -> memref<32x640xbf16, #tpu.memory_space<vmem>>
    %c0_123 = arith.constant 0 : index
    %c2_124 = arith.constant 2 : index
    %120 = vector.load %119[%c0_123, %c2_124] : memref<32x640xbf16, #tpu.memory_space<vmem>>, vector<32x512xbf16>
    %c64_125 = arith.constant 64 : index
    %c0_126 = arith.constant 0 : index
    %121 = vector.load %arg6[%c64_125, %c0_126] : memref<96x512xbf16, #tpu.memory_space<vmem>>, vector<32x512xbf16>
    tpu.vector_store %arg6[%c64_125, %c0_126], %120 {strides = array<i32>} : memref<96x512xbf16, #tpu.memory_space<vmem>>, vector<32x512xbf16>,
    %c6 = arith.constant 6 : index
    %c0_127 = arith.constant 0 : index
    %c0_128 = arith.constant 0 : index
    %122 = vector.load %arg3[%c6, %c0_127, %c0_128] : memref<8x8x96xbf16, #tpu.memory_space<vmem>>, vector<1x8x96xbf16>
    %123 = vector.shape_cast %122 : vector<1x8x96xbf16> to vector<8x96xbf16>
    %c0_129 = arith.constant 0 : index
    %c0_130 = arith.constant 0 : index
    %124 = vector.load %arg6[%c0_129, %c0_130] : memref<96x512xbf16, #tpu.memory_space<vmem>>, vector<96x512xbf16>
    %cst_131 = arith.constant dense<0.000000e+00> : vector<8x512xf32>
    %125 = tpu.matmul %123, %124, %cst_131 {dimension_numbers = #tpu.dot_dimension_numbers<[1], [0], [0], [1], [0, 0, 1, 1], [], []>} : vector<8x96xbf16>, vector<96x512xbf16>, vector<8x512xf32> -> vector<8x512xf32>
    %c0_132 = arith.constant 0 : index
    %c48 = arith.constant 48 : index
    %c0_133 = arith.constant 0 : index
    %126 = vector.load %arg4[%c0_132, %c48, %c0_133] : memref<1x64x512xf32, #tpu.memory_space<vmem>>, vector<1x8x512xf32>
    %127 = vector.shape_cast %126 : vector<1x8x512xf32> to vector<8x512xf32>
    %128 = vector.shape_cast %125 : vector<8x512xf32> to vector<1x8x512xf32>
    tpu.vector_store %arg4[%c0_132, %c48, %c0_133], %128 {strides = array<i32>} : memref<1x64x512xf32, #tpu.memory_space<vmem>>, vector<1x8x512xf32>,
    %c0_i32_134 = arith.constant 0 : i32
    %c0_i32_135 = arith.constant 0 : i32
    %129 = tpu.memref_slice %arg5[%9, %c0_i32_134, %c0_i32_135] : memref<2x32x640xbf16, #tpu.memory_space<vmem>> -> memref<1x32x640xbf16, #tpu.memory_space<vmem>>
    %130 = tpu.memref_squeeze %129 : memref<1x32x640xbf16, #tpu.memory_space<vmem>> -> memref<32x640xbf16, #tpu.memory_space<vmem>>
    %c0_136 = arith.constant 0 : index
    %c23 = arith.constant 23 : index
    %131 = vector.load %130[%c0_136, %c23] : memref<32x640xbf16, #tpu.memory_space<vmem>>, vector<32x512xbf16>
    %c32_137 = arith.constant 32 : index
    %c0_138 = arith.constant 0 : index
    %132 = vector.load %arg6[%c32_137, %c0_138] : memref<96x512xbf16, #tpu.memory_space<vmem>>, vector<32x512xbf16>
    tpu.vector_store %arg6[%c32_137, %c0_138], %131 {strides = array<i32>} : memref<96x512xbf16, #tpu.memory_space<vmem>>, vector<32x512xbf16>,
    %c0_i32_139 = arith.constant 0 : i32
    %c0_i32_140 = arith.constant 0 : i32
    %133 = tpu.memref_slice %arg5[%9, %c0_i32_139, %c0_i32_140] : memref<2x32x640xbf16, #tpu.memory_space<vmem>> -> memref<1x32x640xbf16, #tpu.memory_space<vmem>>
    %134 = tpu.memref_squeeze %133 : memref<1x32x640xbf16, #tpu.memory_space<vmem>> -> memref<32x640xbf16, #tpu.memory_space<vmem>>
    %c0_141 = arith.constant 0 : index
    %c4_142 = arith.constant 4 : index
    %135 = vector.load %134[%c0_141, %c4_142] : memref<32x640xbf16, #tpu.memory_space<vmem>>, vector<32x512xbf16>
    %c64_143 = arith.constant 64 : index
    %c0_144 = arith.constant 0 : index
    %136 = vector.load %arg6[%c64_143, %c0_144] : memref<96x512xbf16, #tpu.memory_space<vmem>>, vector<32x512xbf16>
    tpu.vector_store %arg6[%c64_143, %c0_144], %135 {strides = array<i32>} : memref<96x512xbf16, #tpu.memory_space<vmem>>, vector<32x512xbf16>,
    %c7 = arith.constant 7 : index
    %c0_145 = arith.constant 0 : index
    %c0_146 = arith.constant 0 : index
    %137 = vector.load %arg3[%c7, %c0_145, %c0_146] : memref<8x8x96xbf16, #tpu.memory_space<vmem>>, vector<1x8x96xbf16>
    %138 = vector.shape_cast %137 : vector<1x8x96xbf16> to vector<8x96xbf16>
    %c0_147 = arith.constant 0 : index
    %c0_148 = arith.constant 0 : index
    %139 = vector.load %arg6[%c0_147, %c0_148] : memref<96x512xbf16, #tpu.memory_space<vmem>>, vector<96x512xbf16>
    %cst_149 = arith.constant dense<0.000000e+00> : vector<8x512xf32>
    %140 = tpu.matmul %138, %139, %cst_149 {dimension_numbers = #tpu.dot_dimension_numbers<[1], [0], [0], [1], [0, 0, 1, 1], [], []>} : vector<8x96xbf16>, vector<96x512xbf16>, vector<8x512xf32> -> vector<8x512xf32>
    %c0_150 = arith.constant 0 : index
    %c56 = arith.constant 56 : index
    %c0_151 = arith.constant 0 : index
    %141 = vector.load %arg4[%c0_150, %c56, %c0_151] : memref<1x64x512xf32, #tpu.memory_space<vmem>>, vector<1x8x512xf32>
    %142 = vector.shape_cast %141 : vector<1x8x512xf32> to vector<8x512xf32>
    %143 = vector.shape_cast %140 : vector<8x512xf32> to vector<1x8x512xf32>
    tpu.vector_store %arg4[%c0_150, %c56, %c0_151], %143 {strides = array<i32>} : memref<1x64x512xf32, #tpu.memory_space<vmem>>, vector<1x8x512xf32>,
    return
  }
  func.func @transform_1(%arg0: i32, %arg1: i32) -> (i32, i32, i32) {
    %c0_i32 = arith.constant 0 : i32
    %c0_i32_0 = arith.constant 0 : i32
    %c0_i32_1 = arith.constant 0 : i32
    %c0_i32_2 = arith.constant 0 : i32
    return %c0_i32, %c0_i32_0, %c0_i32_1 : i32, i32, i32
  }
  func.func @transform_2(%arg0: i32, %arg1: i32) -> (i32, i32, i32) {
    %c0_i32 = arith.constant 0 : i32
    %c0_i32_0 = arith.constant 0 : i32
    return %arg0, %c0_i32, %arg1 : i32, i32, i32
  }
}

</mosaic_0001>

<llo_original>
// kernel: tpu_custom_call.1
$region0: #{tpu_custom_call.1}
  #allocation0 [shape = 'u32[]', space=smem, size = 0x4, offset = 0x4, fixed_abs, tag = 'smem constant byte address 0x4 - core index']
  #allocation1 [shape = 'u32[72,128]{1,0:T(1,128)}', space=vmem, size = 0x9000, scoped, tag = 'internal scratch']
  #allocation2 [shape = 'bf16[2,32,640]{2,1,0:T(8,128)(2,1)}', space=vmem, size = 0x14000, scoped, tag = 'scratch operand']
  #allocation3 [shape = 'bf16[96,512]{1,0:T(8,128)(2,1)}', space=vmem, size = 0x18000, scoped, tag = 'scratch operand']
  #allocation4 [shape = 's32[2]{0}', space=sflag, size = 0x8, scoped, tag = 'scratch operand']
  #allocation9 [shape = 's32[]', space=sflag, size = 0x4, offset = 0, fixed_abs, tag = 'sflag constant byte address 0x0 - dummy sync flag']
  #allocation10 [shape = 's32[]', space=sflag, size = 0x4, offset = 0, fixed_abs, tag = 'sflag constant byte address 0x0 - dummy sync flag']
  #allocation11 [shape = 'u32[]', space=smem, size = 0x4, offset = 0x44, fixed_abs, tag = 'smem constant byte address 0x44 - assertion arg 0']
  #allocation12 [shape = 'u32[]', space=smem, size = 0x4, offset = 0x48, fixed_abs, tag = 'smem constant byte address 0x48 - assertion arg 1']
  %s0 = inlined_call_operand.hbm [shape: bf16[2,32,640], index: 0, kind: input, shape index: {}]
  %s1 = inlined_call_operand.hbm [shape: bf16[8,8,96], index: 1, kind: input, shape index: {}]
  %s2 = inlined_call_operand.hbm [shape: f32[2,64,512], index: 2, kind: output, shape index: {}]
  %s3 = sld [smem:[#allocation0]]
  $region49: #{tpu_custom_call.1} parent=0
    _
  %s5 = ssub.s32 1, %s3
  %s6 = scalar_select 0, %s5, %s3
  $region1: #{tpu_custom_call.1} parent=0
    #allocation5 [shape = 'u8[16384]{0}', space=vmem, size = 0x4000, scoped, tag = 'input window, operand 1, single buffered']
    #allocation6 [shape = 's32[2]{0}', space=sflag, size = 0x8, scoped, tag = 'scoped memory for tpu_custom_call.1']
    #allocation7 [shape = 's32[2]{0}', space=sflag, size = 0x8, scoped, tag = 'scoped memory for tpu_custom_call.1']
    #allocation8 [shape = 'u8[262144]{0}', space=vmem, size = 0x40000, scoped, tag = 'output window, operand 0']
    %7 = vsyncpa [#allocation6], 0
    %8 = vsyncpa [#allocation7], 0
    %s9 = scalar_lea.sflag [#allocation7], 1
    %10 = vsyncpa %s9, 0
    loop: start=0, step=1, limit=4
    $region2: #{tpu_custom_call.1} parent=1 // loop_pre_header
      _
    $region3: #{tpu_custom_call.1} parent=1 // loop_header
      %s12 = sphi 0, %s16
      %p13 = scmp.ge.s32.totalorder %s12, 4
      %s19 = sphi 0, %s31
      %s20 = sphi 0, %s27
      %s21 = sphi 0, %s19
      %s22 = sphi 0, %s20
      %s23 = sphi 0, %s21
      %s24 = sphi 0, %s22
      %s32 = sphi 0, %s32
      %s34 = sphi 0, %s32
      %s35 = sphi 0, %s34
      %s49 = sphi 0, %s35
      %s57 = sphi 0, %s59
      %s60 = sphi 0, %s57
      %s61 = sphi 0, %s60
      %s77 = sphi 0, %s61
    $region4: #{tpu_custom_call.1} parent=1 // loop_header_branch
      %15 = sbr.rel (%p13) target = $region8
    $region5: #{tpu_custom_call.1} parent=1 // loop_body
      %s17 = ssub.s32 %s12, 1
      %s18 = ssub.s32 %s12, 2
      %s25 = sadd.s32 1, %s20
      %p26 = scmp.ge.s32.totalorder %s25, 1
      %s27 = scalar_select %p26, 0, %s25
      %s28 = sadd.s32 1, %s19
      %s29 = scalar_select %p26, %s28, %s19
      %p30 = scmp.ge.s32.totalorder %s29, 2
      %s31 = scalar_select %p30, 0, %s29
      %s33 = sadd.s32 %s32, 1
      %p36 = scmp.eq.s32.totalorder %s12, 1
      %p37 = scmp.ne.s32.totalorder %s32, %s34
      %p38 = scmp.eq.s32.totalorder %s12, 0
      %p39 = por %p37, %p38
      %p40 = scmp.ne.s32.totalorder %s32, %s34
      %p41 = scmp.eq.s32.totalorder %s17, 1
      %p42 = por %p40, %p41
      %p43 = scmp.ne.s32.totalorder %s34, %s35
      %p44 = scmp.eq.s32.totalorder %s17, 0
      %p45 = por %p43, %p44
      %p46 = scmp.ne.s32.totalorder %s34, %s35
      %p47 = scmp.eq.s32.totalorder %s18, 1
      %p48 = por %p46, %p47
      %p50 = scmp.ne.s32.totalorder %s35, %s49
      %p51 = scmp.eq.s32.totalorder %s18, 0
      %p52 = por %p50, %p51
      %s53 = ssub.s32 %s19, %s31
      %s54 = ssub.s32 %s20, %s27
      %s55 = sor.u32 %s53, %s54
      %p56 = scmp.eq.s32.totalorder %s55, 0
      %s58 = sadd.s32 %s57, 1
      %s59 = scalar_select %p56, %s57, %s58
      %p62 = pneg %p56
      %p63 = scmp.eq.s32.totalorder %s12, 1
      %p64 = por %p62, %p63
      %p65 = scmp.ne.s32.totalorder %s57, %s60
      %p66 = scmp.eq.s32.totalorder %s12, 0
      %p67 = por %p65, %p66
      %p68 = scmp.ne.s32.totalorder %s57, %s60
      %p69 = scmp.eq.s32.totalorder %s17, 1
      %p70 = por %p68, %p69
      %p71 = scmp.ne.s32.totalorder %s60, %s61
      %p72 = scmp.eq.s32.totalorder %s17, 0
      %p73 = por %p71, %p72
      %p74 = scmp.ne.s32.totalorder %s60, %s61
      %p75 = scmp.eq.s32.totalorder %s18, 1
      %p76 = por %p74, %p75
      %p78 = scmp.ne.s32.totalorder %s61, %s77
      %p79 = scmp.eq.s32.totalorder %s18, 0
      %p80 = por %p78, %p79
      %p81 = scmp.le.s32.totalorder 1, %s12
      %p82 = scmp.lt.s32.totalorder %s12, 3
      %p83 = pnand %p81, %p82
      %p84 = pneg %p83
      // Predicated region
      $region9: #{tpu_custom_call.1} parent=5 // pred_check
        _
      $region10: #{tpu_custom_call.1} parent=5 // pred_check_branch
        %86 = sbr.rel (%p83) target = $region12
      $region11: #{tpu_custom_call.1} parent=5 // pred_region
        %s87 = ssub.s32 %s12, 1
        // Predicated region
        $region13: #{tpu_custom_call.1} parent=11 // pred_check
          %p88 = pneg %p45
        $region14: #{tpu_custom_call.1} parent=11 // pred_check_branch
          %90 = sbr.rel (%p88) target = $region16
        $region15: #{tpu_custom_call.1} parent=11 // pred_region
          %92 = vsyncadd [#allocation6], 0
          %s93 = sshll.u32 %s1, 4
          %s94 = int_to_ptr.hbm [resolvable:$true] %s93
          %s95 = sshll.u32 [#allocation5], 4
          %s96 = int_to_ptr.vmem [resolvable:$true] %s95
          %101 = dma.hbm_to_vmem [thread:$0]  %s94, 512, %s96, [#allocation6], 64, 64, 4
        $region16: #{tpu_custom_call.1} parent=11 // pred_fallthru
          _
      $region12: #{tpu_custom_call.1} parent=5 // pred_fallthru
        _
      %p102 = scmp.lt.s32.totalorder %s12, 2
      // Predicated region
      $region17: #{tpu_custom_call.1} parent=5 // pred_check
        %p103 = pneg %p102
      $region18: #{tpu_custom_call.1} parent=5 // pred_check_branch
        %105 = sbr.rel (%p103) target = $region20
      $region19: #{tpu_custom_call.1} parent=5 // pred_region
        _
      $region20: #{tpu_custom_call.1} parent=5 // pred_fallthru
        _
      %p106 = scmp.le.s32.totalorder 1, %s12
      %p107 = scmp.lt.s32.totalorder %s12, 3
      %p108 = pnand %p106, %p107
      %p109 = pneg %p108
      // Predicated region
      $region21: #{tpu_custom_call.1} parent=5 // pred_check
        _
      $region22: #{tpu_custom_call.1} parent=5 // pred_check_branch
        %111 = sbr.rel (%p108) target = $region24
      $region23: #{tpu_custom_call.1} parent=5 // pred_region
        %s112 = ssub.s32 %s12, 1
        // Predicated region
        $region25: #{tpu_custom_call.1} parent=23 // pred_check
          %p113 = pneg %p45
        $region26: #{tpu_custom_call.1} parent=23 // pred_check_branch
          %115 = sbr.rel (%p113) target = $region28
        $region27: #{tpu_custom_call.1} parent=23 // pred_region
          %117 = dma.done [#allocation6], 512
        $region28: #{tpu_custom_call.1} parent=23 // pred_fallthru
          _
        %p118 = pneg %p45
        %p119 = pneg %p42
        %p120 = pneg %p73
        %p121 = pneg %p70
        %s122 = sand.u32 %s60, 1
        %s123 = scalar_lea.sflag [#allocation7], %s122
        %s124 = sand.u32 %s60, 1
        %s125 = smul.addr %s124, 256
        %s126 = scalar_lea.vmem [#allocation8], %s125
        %s127 = smul.u32 4, %s22
        %p129 = scmp.lt.s32.totalorder %s22, 0
        %s130 = ssub.s32 0, %s22
        %s131 = scalar_select %p129, %s130, %s22
        %s132 = sand.u32 %s131, 1
        %s133 = ssub.s32 0, %s132
        %s134 = scalar_select %p129, %s133, %s132
        %p135 = scmp.ne.s32.totalorder %s134, 0
        %p136 = scmp.lt.s32.totalorder %s134, 0
        %p137 = pnand %p136, %p135
        %p138 = pneg %p137
        %s139 = sadd.s32 %s134, 2
        %s140 = scalar_select %p138, %s139, %s134
        %p141 = scmp.eq.s32.totalorder %s22, 0
        // Predicated region
        $region29: #{tpu_custom_call.1} parent=23 // pred_check
          %p142 = pneg %p141
        $region30: #{tpu_custom_call.1} parent=23 // pred_check_branch
          %144 = sbr.rel (%p142) target = $region32
        $region31: #{tpu_custom_call.1} parent=23 // pred_region
          %s145 = smul.u32 %s22, 512
          %s146 = sshra.s32 %s145, 7
          %s147 = sand.u32 %s145, 127
          %s148 = smul.u32 %s21, 20
          %s149 = sadd.s32 %s146, %s148
          %s150 = smul.addr %s149, 4
          %s151 = scalar_lea.hbm %s0, %s150
          %s152 = smul.u32 %s140, 20
          %s153 = smul.addr %s152, 4
          %s154 = scalar_lea.vmem [#allocation2], %s153
          %s155 = scalar_lea.sflag [#allocation4], %s140
          // Predicated region
          $region33: #{tpu_custom_call.1} parent=31 // pred_check
            _
          $region34: #{tpu_custom_call.1} parent=31 // pred_check_branch
            %157 = sbr.rel target = $region36
          $region35: #{tpu_custom_call.1} parent=31 // pred_region
            %158 = sst [smem:[#allocation11]] [#allocation10]
            %159 = sst [smem:[#allocation12]] [#allocation9]
          $region36: #{tpu_custom_call.1} parent=31 // pred_fallthru
            _
          %161 = shalt.err (0)
          %s163 = sshll.u32 %s151, 4
          %s164 = int_to_ptr.hbm [resolvable:$true] %s163
          %s165 = sshll.u32 %s154, 4
          %s166 = int_to_ptr.vmem [resolvable:$true] %s165
          %168 = dma.hbm_to_vmem [thread:$0]  %s164, 1280, %s166, %s155
        $region32: #{tpu_custom_call.1} parent=23 // pred_fallthru
          _
        %s169 = smul.u32 %s140, 20
        %s170 = smul.addr %s169, 4
        %s171 = scalar_lea.vmem [#allocation2], %s170
        %s172 = scalar_lea.sflag [#allocation4], %s140
        %s173 = smul.u32 4, 4
        %s174 = smul.u32 %s173, 5
        %s175 = sshll.u32 %s174, 4
        %176 = dma.done %s172, %s175
        %v177 = vld [vmem:[%s171] sm:$0xff]
        %v178 = vld [vmem:[%s171 + $0x8] sm:$0xff]
        %v179 = vld [vmem:[%s171 + $0x10] sm:$0xf]
        %v180 = vld [vmem:[%s171 + $0x14] sm:$0xff]
        %v181 = vld [vmem:[%s171 + $0x1c] sm:$0xff]
        %v182 = vld [vmem:[%s171 + $0x24] sm:$0xf]
        %v183 = vld [vmem:[%s171 + $0x28] sm:$0xff]
        %v184 = vld [vmem:[%s171 + $0x30] sm:$0xff]
        %v185 = vld [vmem:[%s171 + $0x38] sm:$0xf]
        %v186 = vld [vmem:[%s171 + $0x3c] sm:$0xff]
        %v187 = vld [vmem:[%s171 + $0x44] sm:$0xff]
        %v188 = vld [vmem:[%s171 + $0x4c] sm:$0xf]
        %201 = vrot.lane.b32.xlu0 %v177, 86
        %v202 = vpop.permute.xlu0 %201
        %203 = vrot.lane.b32.xlu0 %v178, 86
        %v204 = vpop.permute.xlu0 %203
        %205 = vrot.lane.b32.xlu0 %v179, 86
        %v206 = vpop.permute.xlu0 %205
        %207 = vrot.lane.b32.xlu0 %v180, 86
        %v208 = vpop.permute.xlu0 %207
        %209 = vrot.lane.b32.xlu0 %v181, 86
        %v210 = vpop.permute.xlu0 %209
        %211 = vrot.lane.b32.xlu0 %v182, 86
        %v212 = vpop.permute.xlu0 %211
        %213 = vrot.lane.b32.xlu0 %v183, 86
        %v214 = vpop.permute.xlu0 %213
        %215 = vrot.lane.b32.xlu0 %v184, 86
        %v216 = vpop.permute.xlu0 %215
        %217 = vrot.lane.b32.xlu0 %v185, 86
        %v218 = vpop.permute.xlu0 %217
        %219 = vrot.lane.b32.xlu0 %v186, 86
        %v220 = vpop.permute.xlu0 %219
        %221 = vrot.lane.b32.xlu0 %v187, 86
        %v222 = vpop.permute.xlu0 %221
        %223 = vrot.lane.b32.xlu0 %v188, 86
        %v224 = vpop.permute.xlu0 %223
        %v225 = vrot.slane %v202, 4
        %v226 = vrot.slane %v204, 4
        %v227 = vrot.slane %v206, 4
        %v228 = vrot.slane %v208, 4
        %v229 = vrot.slane %v210, 4
        %v230 = vrot.slane %v212, 4
        %v231 = vrot.slane %v214, 4
        %v232 = vrot.slane %v216, 4
        %v233 = vrot.slane %v218, 4
        %v234 = vrot.slane %v220, 4
        %v235 = vrot.slane %v222, 4
        %v236 = vrot.slane %v224, 4
        %vm237 = vcmask 1043456
        %v238 = vsel %vm237, %v225, %v226
        %vm239 = vcmask 703488
        %v240 = vsel %vm239, %v202, %v238
        %v241 = vsel %vm237, %v226, %v227
        %v242 = vsel %vm239, %v204, %v241
        %v243 = vsel %vm237, %v228, %v229
        %v244 = vsel %vm239, %v208, %v243
        %v245 = vsel %vm237, %v229, %v230
        %v246 = vsel %vm239, %v210, %v245
        %v247 = vsel %vm237, %v231, %v232
        %v248 = vsel %vm239, %v214, %v247
        %v249 = vsel %vm237, %v232, %v233
        %v250 = vsel %vm239, %v216, %v249
        %v251 = vsel %vm237, %v234, %v235
        %v252 = vsel %vm239, %v220, %v251
        %v253 = vsel %vm237, %v235, %v236
        %v254 = vsel %vm239, %v222, %v253
        %263 = vst [vmem:[#allocation3] sm:$0xff] %v240
        %264 = vst [vmem:[#allocation3 + $0x8] sm:$0xff] %v242
        %265 = vst [vmem:[#allocation3 + $0x10] sm:$0xff] %v244
        %266 = vst [vmem:[#allocation3 + $0x18] sm:$0xff] %v246
        %267 = vst [vmem:[#allocation3 + $0x20] sm:$0xff] %v248
        %268 = vst [vmem:[#allocation3 + $0x28] sm:$0xff] %v250
        %269 = vst [vmem:[#allocation3 + $0x30] sm:$0xff] %v252
        %270 = vst [vmem:[#allocation3 + $0x38] sm:$0xff] %v254
        %v271 = vld [vmem:[%s171] sm:$0xff]
        %v272 = vld [vmem:[%s171 + $0x8] sm:$0xff]
        %v273 = vld [vmem:[%s171 + $0x10] sm:$0xf]
        %v274 = vld [vmem:[%s171 + $0x14] sm:$0xff]
        %v275 = vld [vmem:[%s171 + $0x1c] sm:$0xff]
        %v276 = vld [vmem:[%s171 + $0x24] sm:$0xf]
        %v277 = vld [vmem:[%s171 + $0x28] sm:$0xff]
        %v278 = vld [vmem:[%s171 + $0x30] sm:$0xff]
        %v279 = vld [vmem:[%s171 + $0x38] sm:$0xf]
        %v280 = vld [vmem:[%s171 + $0x3c] sm:$0xff]
        %v281 = vld [vmem:[%s171 + $0x44] sm:$0xff]
        %v282 = vld [vmem:[%s171 + $0x4c] sm:$0xf]
        %295 = vrot.lane.b32.xlu0 %v271, 85
        %v296 = vpop.permute.xlu0 %295
        %297 = vrot.lane.b32.xlu0 %v272, 85
        %v298 = vpop.permute.xlu0 %297
        %299 = vrot.lane.b32.xlu0 %v273, 85
        %v300 = vpop.permute.xlu0 %299
        %301 = vrot.lane.b32.xlu0 %v274, 85
        %v302 = vpop.permute.xlu0 %301
        %303 = vrot.lane.b32.xlu0 %v275, 85
        %v304 = vpop.permute.xlu0 %303
        %305 = vrot.lane.b32.xlu0 %v276, 85
        %v306 = vpop.permute.xlu0 %305
        %307 = vrot.lane.b32.xlu0 %v277, 85
        %v308 = vpop.permute.xlu0 %307
        %309 = vrot.lane.b32.xlu0 %v278, 85
        %v310 = vpop.permute.xlu0 %309
        %311 = vrot.lane.b32.xlu0 %v279, 85
        %v312 = vpop.permute.xlu0 %311
        %313 = vrot.lane.b32.xlu0 %v280, 85
        %v314 = vpop.permute.xlu0 %313
        %315 = vrot.lane.b32.xlu0 %v281, 85
        %v316 = vpop.permute.xlu0 %315
        %317 = vrot.lane.b32.xlu0 %v282, 85
        %v318 = vpop.permute.xlu0 %317
        %v319 = vrot.slane %v296, 4
        %v320 = vrot.slane %v298, 4
        %v321 = vrot.slane %v300, 4
        %v322 = vrot.slane %v302, 4
        %v323 = vrot.slane %v304, 4
        %v324 = vrot.slane %v306, 4
        %v325 = vrot.slane %v308, 4
        %v326 = vrot.slane %v310, 4
        %v327 = vrot.slane %v312, 4
        %v328 = vrot.slane %v314, 4
        %v329 = vrot.slane %v316, 4
        %v330 = vrot.slane %v318, 4
        %v331 = vsel %vm237, %v319, %v320
        %vm332 = vcmask 695296
        %v333 = vsel %vm332, %v296, %v331
        %v334 = vsel %vm237, %v320, %v321
        %v335 = vsel %vm332, %v298, %v334
        %v336 = vsel %vm237, %v322, %v323
        %v337 = vsel %vm332, %v302, %v336
        %v338 = vsel %vm237, %v323, %v324
        %v339 = vsel %vm332, %v304, %v338
        %v340 = vsel %vm237, %v325, %v326
        %v341 = vsel %vm332, %v308, %v340
        %v342 = vsel %vm237, %v326, %v327
        %v343 = vsel %vm332, %v310, %v342
        %v344 = vsel %vm237, %v328, %v329
        %v345 = vsel %vm332, %v314, %v344
        %v346 = vsel %vm237, %v329, %v330
        %v347 = vsel %vm332, %v316, %v346
        %356 = vst [vmem:[#allocation3 + $0x40] sm:$0xff] %v333
        %357 = vst [vmem:[#allocation3 + $0x48] sm:$0xff] %v335
        %358 = vst [vmem:[#allocation3 + $0x50] sm:$0xff] %v337
        %359 = vst [vmem:[#allocation3 + $0x58] sm:$0xff] %v339
        %360 = vst [vmem:[#allocation3 + $0x60] sm:$0xff] %v341
        %361 = vst [vmem:[#allocation3 + $0x68] sm:$0xff] %v343
        %362 = vst [vmem:[#allocation3 + $0x70] sm:$0xff] %v345
        %363 = vst [vmem:[#allocation3 + $0x78] sm:$0xff] %v347
        %v364 = vld [vmem:[%s171] sm:$0xff]
        %v365 = vld [vmem:[%s171 + $0x8] sm:$0xff]
        %v366 = vld [vmem:[%s171 + $0x10] sm:$0xf]
        %v367 = vld [vmem:[%s171 + $0x14] sm:$0xff]
        %v368 = vld [vmem:[%s171 + $0x1c] sm:$0xff]
        %v369 = vld [vmem:[%s171 + $0x24] sm:$0xf]
        %v370 = vld [vmem:[%s171 + $0x28] sm:$0xff]
        %v371 = vld [vmem:[%s171 + $0x30] sm:$0xff]
        %v372 = vld [vmem:[%s171 + $0x38] sm:$0xf]
        %v373 = vld [vmem:[%s171 + $0x3c] sm:$0xff]
        %v374 = vld [vmem:[%s171 + $0x44] sm:$0xff]
        %v375 = vld [vmem:[%s171 + $0x4c] sm:$0xf]
        %388 = vrot.lane.b32.xlu0 %v364, 84
        %v389 = vpop.permute.xlu0 %388
        %390 = vrot.lane.b32.xlu0 %v365, 84
        %v391 = vpop.permute.xlu0 %390
        %392 = vrot.lane.b32.xlu0 %v366, 84
        %v393 = vpop.permute.xlu0 %392
        %394 = vrot.lane.b32.xlu0 %v367, 84
        %v395 = vpop.permute.xlu0 %394
        %396 = vrot.lane.b32.xlu0 %v368, 84
        %v397 = vpop.permute.xlu0 %396
        %398 = vrot.lane.b32.xlu0 %v369, 84
        %v399 = vpop.permute.xlu0 %398
        %400 = vrot.lane.b32.xlu0 %v370, 84
        %v401 = vpop.permute.xlu0 %400
        %402 = vrot.lane.b32.xlu0 %v371, 84
        %v403 = vpop.permute.xlu0 %402
        %404 = vrot.lane.b32.xlu0 %v372, 84
        %v405 = vpop.permute.xlu0 %404
        %406 = vrot.lane.b32.xlu0 %v373, 84
        %v407 = vpop.permute.xlu0 %406
        %408 = vrot.lane.b32.xlu0 %v374, 84
        %v409 = vpop.permute.xlu0 %408
        %410 = vrot.lane.b32.xlu0 %v375, 84
        %v411 = vpop.permute.xlu0 %410
        %v412 = vrot.slane %v389, 4
        %v413 = vrot.slane %v391, 4
        %v414 = vrot.slane %v393, 4
        %v415 = vrot.slane %v395, 4
        %v416 = vrot.slane %v397, 4
        %v417 = vrot.slane %v399, 4
        %v418 = vrot.slane %v401, 4
        %v419 = vrot.slane %v403, 4
        %v420 = vrot.slane %v405, 4
        %v421 = vrot.slane %v407, 4
        %v422 = vrot.slane %v409, 4
        %v423 = vrot.slane %v411, 4
        %v424 = vsel %vm237, %v412, %v413
        %vm425 = vcmask 687104
        %v426 = vsel %vm425, %v389, %v424
        %v427 = vsel %vm237, %v413, %v414
        %v428 = vsel %vm425, %v391, %v427
        %v429 = vsel %vm237, %v415, %v416
        %v430 = vsel %vm425, %v395, %v429
        %v431 = vsel %vm237, %v416, %v417
        %v432 = vsel %vm425, %v397, %v431
        %v433 = vsel %vm237, %v418, %v419
        %v434 = vsel %vm425, %v401, %v433
        %v435 = vsel %vm237, %v419, %v420
        %v436 = vsel %vm425, %v403, %v435
        %v437 = vsel %vm237, %v421, %v422
        %v438 = vsel %vm425, %v407, %v437
        %v439 = vsel %vm237, %v422, %v423
        %v440 = vsel %vm425, %v409, %v439
        %449 = vst [vmem:[#allocation3 + $0x80] sm:$0xff] %v426
        %450 = vst [vmem:[#allocation3 + $0x88] sm:$0xff] %v428
        %451 = vst [vmem:[#allocation3 + $0x90] sm:$0xff] %v430
        %452 = vst [vmem:[#allocation3 + $0x98] sm:$0xff] %v432
        %453 = vst [vmem:[#allocation3 + $0xa0] sm:$0xff] %v434
        %454 = vst [vmem:[#allocation3 + $0xa8] sm:$0xff] %v436
        %455 = vst [vmem:[#allocation3 + $0xb0] sm:$0xff] %v438
        %456 = vst [vmem:[#allocation3 + $0xb8] sm:$0xff] %v440
        %v457 = vld [vmem:[#allocation5] sm:$0xf]
        %v458 = vld [vmem:[#allocation3] sm:$0xff]
        %v459 = vld [vmem:[#allocation3 + $0x8] sm:$0xff]
        %v460 = vld [vmem:[#allocation3 + $0x10] sm:$0xff]
        %v461 = vld [vmem:[#allocation3 + $0x18] sm:$0xff]
        %v462 = vld [vmem:[#allocation3 + $0x20] sm:$0xff]
        %v463 = vld [vmem:[#allocation3 + $0x28] sm:$0xff]
        %v464 = vld [vmem:[#allocation3 + $0x30] sm:$0xff]
        %v465 = vld [vmem:[#allocation3 + $0x38] sm:$0xff]
        %v466 = vld [vmem:[#allocation3 + $0x40] sm:$0xff]
        %v467 = vld [vmem:[#allocation3 + $0x48] sm:$0xff]
        %v468 = vld [vmem:[#allocation3 + $0x50] sm:$0xff]
        %v469 = vld [vmem:[#allocation3 + $0x58] sm:$0xff]
        %v470 = vld [vmem:[#allocation3 + $0x60] sm:$0xff]
        %v471 = vld [vmem:[#allocation3 + $0x68] sm:$0xff]
        %v472 = vld [vmem:[#allocation3 + $0x70] sm:$0xff]
        %v473 = vld [vmem:[#allocation3 + $0x78] sm:$0xff]
        %v474 = vld [vmem:[#allocation3 + $0x80] sm:$0xff]
        %v475 = vld [vmem:[#allocation3 + $0x88] sm:$0xff]
        %v476 = vld [vmem:[#allocation3 + $0x90] sm:$0xff]
        %v477 = vld [vmem:[#allocation3 + $0x98] sm:$0xff]
        %v478 = vld [vmem:[#allocation3 + $0xa0] sm:$0xff]
        %v479 = vld [vmem:[#allocation3 + $0xa8] sm:$0xff]
        %v480 = vld [vmem:[#allocation3 + $0xb0] sm:$0xff]
        %v481 = vld [vmem:[#allocation3 + $0xb8] sm:$0xff]
        %v506 = vunpack.c.l.b16 %v458
        %v507 = vunpack.c.h.b16 %v458
        %v508 = vunpack.c.l.b16 %v459
        %v509 = vunpack.c.h.b16 %v459
        %v510 = vunpack.c.l.b16 %v460
        %v511 = vunpack.c.h.b16 %v460
        %v512 = vunpack.c.l.b16 %v461
        %v513 = vunpack.c.h.b16 %v461
        %v514 = vunpack.c.l.b16 %v462
        %v515 = vunpack.c.h.b16 %v462
        %v516 = vunpack.c.l.b16 %v463
        %v517 = vunpack.c.h.b16 %v463
        %v518 = vunpack.c.l.b16 %v464
        %v519 = vunpack.c.h.b16 %v464
        %v520 = vunpack.c.l.b16 %v465
        %v521 = vunpack.c.h.b16 %v465
        %v522 = vunpack.c.l.b16 %v466
        %v523 = vunpack.c.h.b16 %v466
        %v524 = vunpack.c.l.b16 %v467
        %v525 = vunpack.c.h.b16 %v467
        %v526 = vunpack.c.l.b16 %v468
        %v527 = vunpack.c.h.b16 %v468
        %v528 = vunpack.c.l.b16 %v469
        %v529 = vunpack.c.h.b16 %v469
        %v530 = vunpack.c.l.b16 %v470
        %v531 = vunpack.c.h.b16 %v470
        %v532 = vunpack.c.l.b16 %v471
        %v533 = vunpack.c.h.b16 %v471
        %v534 = vunpack.c.l.b16 %v472
        %v535 = vunpack.c.h.b16 %v472
        %v536 = vunpack.c.l.b16 %v473
        %v537 = vunpack.c.h.b16 %v473
        %v538 = vunpack.c.l.b16 %v474
        %v539 = vunpack.c.h.b16 %v474
        %v540 = vunpack.c.l.b16 %v475
        %v541 = vunpack.c.h.b16 %v475
        %v542 = vunpack.c.l.b16 %v476
        %v543 = vunpack.c.h.b16 %v476
        %v544 = vunpack.c.l.b16 %v477
        %v545 = vunpack.c.h.b16 %v477
        %v546 = vunpack.c.l.b16 %v478
        %v547 = vunpack.c.h.b16 %v478
        %v548 = vunpack.c.l.b16 %v479
        %v549 = vunpack.c.h.b16 %v479
        %v550 = vunpack.c.l.b16 %v480
        %v551 = vunpack.c.h.b16 %v480
        %v552 = vunpack.c.l.b16 %v481
        %v553 = vunpack.c.h.b16 %v481
        %v554 = vpack.c.b16 %v510, %v506
        %v555 = vpack.c.b16 %v511, %v507
        %v556 = vpack.c.b16 %v512, %v508
        %v557 = vpack.c.b16 %v513, %v509
        %v558 = vpack.c.b16 %v518, %v514
        %v559 = vpack.c.b16 %v519, %v515
        %v560 = vpack.c.b16 %v520, %v516
        %v561 = vpack.c.b16 %v521, %v517
        %v562 = vpack.c.b16 %v526, %v522
        %v563 = vpack.c.b16 %v527, %v523
        %v564 = vpack.c.b16 %v528, %v524
        %v565 = vpack.c.b16 %v529, %v525
        %v566 = vpack.c.b16 %v534, %v530
        %v567 = vpack.c.b16 %v535, %v531
        %v568 = vpack.c.b16 %v536, %v532
        %v569 = vpack.c.b16 %v537, %v533
        %v570 = vpack.c.b16 %v542, %v538
        %v571 = vpack.c.b16 %v543, %v539
        %v572 = vpack.c.b16 %v544, %v540
        %v573 = vpack.c.b16 %v545, %v541
        %v574 = vpack.c.b16 %v550, %v546
        %v575 = vpack.c.b16 %v551, %v547
        %v576 = vpack.c.b16 %v552, %v548
        %v577 = vpack.c.b16 %v553, %v549
        %vm602 = vcmask 785408
        %v604 = vsel %vm602, %v457, 0
        %606 = vmatpush.bf16.msra.mxu0 0
        %607 = vmatpush.bf16.msra.mxu0 0
        %608 = vmatpush.bf16.msra.mxu0 %v574
        %609 = vmatpush.bf16.msra.mxu0 %v570
        %610 = vmatpush.bf16.msra.mxu0 %v566
        %611 = vmatpush.bf16.msra.mxu0 %v562
        %612 = vmatpush.bf16.msra.mxu0 %v558
        %613 = vmatpush.bf16.msra.mxu0 %v554
        %614 = vmatmul.bf16.gmra.mxu0 %v604
        %v615 = vpop.f32.mrf.mxu0
        %v616 = vadd.f32 0.0, %v615
        %v617 = vpop.f32.mrf.mxu0
        %618 = vdwg.mxu0
        %619 = vmatpush.bf16.msra.mxu0 0
        %620 = vmatpush.bf16.msra.mxu0 0
        %621 = vmatpush.bf16.msra.mxu0 %v575
        %622 = vmatpush.bf16.msra.mxu0 %v571
        %623 = vmatpush.bf16.msra.mxu0 %v567
        %624 = vmatpush.bf16.msra.mxu0 %v563
        %625 = vmatpush.bf16.msra.mxu0 %v559
        %626 = vmatpush.bf16.msra.mxu0 %v555
        %627 = vmatmul.bf16.gmra.mxu0 %v604
        %v628 = vpop.f32.mrf.mxu0
        %v629 = vadd.f32 0.0, %v628
        %v630 = vpop.f32.mrf.mxu0
        %631 = vdwg.mxu0
        %632 = vmatpush.bf16.msra.mxu0 0
        %633 = vmatpush.bf16.msra.mxu0 0
        %634 = vmatpush.bf16.msra.mxu0 %v576
        %635 = vmatpush.bf16.msra.mxu0 %v572
        %636 = vmatpush.bf16.msra.mxu0 %v568
        %637 = vmatpush.bf16.msra.mxu0 %v564
        %638 = vmatpush.bf16.msra.mxu0 %v560
        %639 = vmatpush.bf16.msra.mxu0 %v556
        %640 = vmatmul.bf16.gmra.mxu0 %v604
        %v641 = vpop.f32.mrf.mxu0
        %v642 = vadd.f32 0.0, %v641
        %v643 = vpop.f32.mrf.mxu0
        %644 = vdwg.mxu0
        %645 = vmatpush.bf16.msra.mxu0 0
        %646 = vmatpush.bf16.msra.mxu0 0
        %647 = vmatpush.bf16.msra.mxu0 %v577
        %648 = vmatpush.bf16.msra.mxu0 %v573
        %649 = vmatpush.bf16.msra.mxu0 %v569
        %650 = vmatpush.bf16.msra.mxu0 %v565
        %651 = vmatpush.bf16.msra.mxu0 %v561
        %652 = vmatpush.bf16.msra.mxu0 %v557
        %653 = vmatmul.bf16.gmra.mxu0 %v604
        %v654 = vpop.f32.mrf.mxu0
        %v655 = vadd.f32 0.0, %v654
        %v656 = vpop.f32.mrf.mxu0
        %657 = vdwg.mxu0
        %658 = vst [vmem:[%s126] sm:$0xff] %v616
        %659 = vst [vmem:[%s126 + $0x8] sm:$0xff] %v629
        %660 = vst [vmem:[%s126 + $0x10] sm:$0xff] %v642
        %661 = vst [vmem:[%s126 + $0x18] sm:$0xff] %v655
        %v662 = vld [vmem:[%s171] sm:$0xff]
        %v663 = vld [vmem:[%s171 + $0x8] sm:$0xff]
        %v664 = vld [vmem:[%s171 + $0x10] sm:$0xf]
        %v665 = vld [vmem:[%s171 + $0x14] sm:$0xff]
        %v666 = vld [vmem:[%s171 + $0x1c] sm:$0xff]
        %v667 = vld [vmem:[%s171 + $0x24] sm:$0xf]
        %v668 = vld [vmem:[%s171 + $0x28] sm:$0xff]
        %v669 = vld [vmem:[%s171 + $0x30] sm:$0xff]
        %v670 = vld [vmem:[%s171 + $0x38] sm:$0xf]
        %v671 = vld [vmem:[%s171 + $0x3c] sm:$0xff]
        %v672 = vld [vmem:[%s171 + $0x44] sm:$0xff]
        %v673 = vld [vmem:[%s171 + $0x4c] sm:$0xf]
        %686 = vrot.lane.b32.xlu0 %v662, 65
        %v687 = vpop.permute.xlu0 %686
        %688 = vrot.lane.b32.xlu0 %v663, 65
        %v689 = vpop.permute.xlu0 %688
        %690 = vrot.lane.b32.xlu0 %v664, 65
        %v691 = vpop.permute.xlu0 %690
        %692 = vrot.lane.b32.xlu0 %v665, 65
        %v693 = vpop.permute.xlu0 %692
        %694 = vrot.lane.b32.xlu0 %v666, 65
        %v695 = vpop.permute.xlu0 %694
        %696 = vrot.lane.b32.xlu0 %v667, 65
        %v697 = vpop.permute.xlu0 %696
        %698 = vrot.lane.b32.xlu0 %v668, 65
        %v699 = vpop.permute.xlu0 %698
        %700 = vrot.lane.b32.xlu0 %v669, 65
        %v701 = vpop.permute.xlu0 %700
        %702 = vrot.lane.b32.xlu0 %v670, 65
        %v703 = vpop.permute.xlu0 %702
        %704 = vrot.lane.b32.xlu0 %v671, 65
        %v705 = vpop.permute.xlu0 %704
        %706 = vrot.lane.b32.xlu0 %v672, 65
        %v707 = vpop.permute.xlu0 %706
        %708 = vrot.lane.b32.xlu0 %v673, 65
        %v709 = vpop.permute.xlu0 %708
        %v710 = vrot.slane %v687, 4
        %v711 = vrot.slane %v689, 4
        %v712 = vrot.slane %v691, 4
        %v713 = vrot.slane %v693, 4
        %v714 = vrot.slane %v695, 4
        %v715 = vrot.slane %v697, 4
        %v716 = vrot.slane %v699, 4
        %v717 = vrot.slane %v701, 4
        %v718 = vrot.slane %v703, 4
        %v719 = vrot.slane %v705, 4
        %v720 = vrot.slane %v707, 4
        %v721 = vrot.slane %v709, 4
        %v722 = vsel %vm237, %v710, %v711
        %vm723 = vcmask 531456
        %v724 = vsel %vm723, %v687, %v722
        %v725 = vsel %vm237, %v711, %v712
        %v726 = vsel %vm723, %v689, %v725
        %v727 = vsel %vm237, %v713, %v714
        %v728 = vsel %vm723, %v693, %v727
        %v729 = vsel %vm237, %v714, %v715
        %v730 = vsel %vm723, %v695, %v729
        %v731 = vsel %vm237, %v716, %v717
        %v732 = vsel %vm723, %v699, %v731
        %v733 = vsel %vm237, %v717, %v718
        %v734 = vsel %vm723, %v701, %v733
        %v735 = vsel %vm237, %v719, %v720
        %v736 = vsel %vm723, %v705, %v735
        %v737 = vsel %vm237, %v720, %v721
        %v738 = vsel %vm723, %v707, %v737
        %747 = vst [vmem:[#allocation3 + $0x40] sm:$0xff] %v724
        %748 = vst [vmem:[#allocation3 + $0x48] sm:$0xff] %v726
        %749 = vst [vmem:[#allocation3 + $0x50] sm:$0xff] %v728
        %750 = vst [vmem:[#allocation3 + $0x58] sm:$0xff] %v730
        %751 = vst [vmem:[#allocation3 + $0x60] sm:$0xff] %v732
        %752 = vst [vmem:[#allocation3 + $0x68] sm:$0xff] %v734
        %753 = vst [vmem:[#allocation3 + $0x70] sm:$0xff] %v736
        %754 = vst [vmem:[#allocation3 + $0x78] sm:$0xff] %v738
        %v755 = vld [vmem:[%s171] sm:$0xff]
        %v756 = vld [vmem:[%s171 + $0x8] sm:$0xff]
        %v757 = vld [vmem:[%s171 + $0x10] sm:$0xf]
        %v758 = vld [vmem:[%s171 + $0x14] sm:$0xff]
        %v759 = vld [vmem:[%s171 + $0x1c] sm:$0xff]
        %v760 = vld [vmem:[%s171 + $0x24] sm:$0xf]
        %v761 = vld [vmem:[%s171 + $0x28] sm:$0xff]
        %v762 = vld [vmem:[%s171 + $0x30] sm:$0xff]
        %v763 = vld [vmem:[%s171 + $0x38] sm:$0xf]
        %v764 = vld [vmem:[%s171 + $0x3c] sm:$0xff]
        %v765 = vld [vmem:[%s171 + $0x44] sm:$0xff]
        %v766 = vld [vmem:[%s171 + $0x4c] sm:$0xf]
        %779 = vrot.lane.b32.xlu0 %v755, 44
        %v780 = vpop.permute.xlu0 %779
        %781 = vrot.lane.b32.xlu0 %v756, 44
        %v782 = vpop.permute.xlu0 %781
        %783 = vrot.lane.b32.xlu0 %v757, 44
        %v784 = vpop.permute.xlu0 %783
        %785 = vrot.lane.b32.xlu0 %v758, 44
        %v786 = vpop.permute.xlu0 %785
        %787 = vrot.lane.b32.xlu0 %v759, 44
        %v788 = vpop.permute.xlu0 %787
        %789 = vrot.lane.b32.xlu0 %v760, 44
        %v790 = vpop.permute.xlu0 %789
        %791 = vrot.lane.b32.xlu0 %v761, 44
        %v792 = vpop.permute.xlu0 %791
        %793 = vrot.lane.b32.xlu0 %v762, 44
        %v794 = vpop.permute.xlu0 %793
        %795 = vrot.lane.b32.xlu0 %v763, 44
        %v796 = vpop.permute.xlu0 %795
        %797 = vrot.lane.b32.xlu0 %v764, 44
        %v798 = vpop.permute.xlu0 %797
        %799 = vrot.lane.b32.xlu0 %v765, 44
        %v800 = vpop.permute.xlu0 %799
        %801 = vrot.lane.b32.xlu0 %v766, 44
        %v802 = vpop.permute.xlu0 %801
        %v803 = vrot.slane %v780, 4
        %v804 = vrot.slane %v782, 4
        %v805 = vrot.slane %v784, 4
        %v806 = vrot.slane %v786, 4
        %v807 = vrot.slane %v788, 4
        %v808 = vrot.slane %v790, 4
        %v809 = vrot.slane %v792, 4
        %v810 = vrot.slane %v794, 4
        %v811 = vrot.slane %v796, 4
        %v812 = vrot.slane %v798, 4
        %v813 = vrot.slane %v800, 4
        %v814 = vrot.slane %v802, 4
        %v815 = vsel %vm237, %v803, %v804
        %vm816 = vcmask 359424
        %v817 = vsel %vm816, %v780, %v815
        %v818 = vsel %vm237, %v804, %v805
        %v819 = vsel %vm816, %v782, %v818
        %v820 = vsel %vm237, %v806, %v807
        %v821 = vsel %vm816, %v786, %v820
        %v822 = vsel %vm237, %v807, %v808
        %v823 = vsel %vm816, %v788, %v822
        %v824 = vsel %vm237, %v809, %v810
        %v825 = vsel %vm816, %v792, %v824
        %v826 = vsel %vm237, %v810, %v811
        %v827 = vsel %vm816, %v794, %v826
        %v828 = vsel %vm237, %v812, %v813
        %v829 = vsel %vm816, %v798, %v828
        %v830 = vsel %vm237, %v813, %v814
        %v831 = vsel %vm816, %v800, %v830
        %840 = vst [vmem:[#allocation3 + $0x80] sm:$0xff] %v817
        %841 = vst [vmem:[#allocation3 + $0x88] sm:$0xff] %v819
        %842 = vst [vmem:[#allocation3 + $0x90] sm:$0xff] %v821
        %843 = vst [vmem:[#allocation3 + $0x98] sm:$0xff] %v823
        %844 = vst [vmem:[#allocation3 + $0xa0] sm:$0xff] %v825
        %845 = vst [vmem:[#allocation3 + $0xa8] sm:$0xff] %v827
        %846 = vst [vmem:[#allocation3 + $0xb0] sm:$0xff] %v829
        %847 = vst [vmem:[#allocation3 + $0xb8] sm:$0xff] %v831
        %s848 = scalar_lea.vmem [#allocation5], 4
        %v849 = vld [vmem:[%s848] sm:$0xf]
        %v850 = vld [vmem:[#allocation3] sm:$0xff]
        %v851 = vld [vmem:[#allocation3 + $0x8] sm:$0xff]
        %v852 = vld [vmem:[#allocation3 + $0x10] sm:$0xff]
        %v853 = vld [vmem:[#allocation3 + $0x18] sm:$0xff]
        %v854 = vld [vmem:[#allocation3 + $0x20] sm:$0xff]
        %v855 = vld [vmem:[#allocation3 + $0x28] sm:$0xff]
        %v856 = vld [vmem:[#allocation3 + $0x30] sm:$0xff]
        %v857 = vld [vmem:[#allocation3 + $0x38] sm:$0xff]
        %v858 = vld [vmem:[#allocation3 + $0x40] sm:$0xff]
        %v859 = vld [vmem:[#allocation3 + $0x48] sm:$0xff]
        %v860 = vld [vmem:[#allocation3 + $0x50] sm:$0xff]
        %v861 = vld [vmem:[#allocation3 + $0x58] sm:$0xff]
        %v862 = vld [vmem:[#allocation3 + $0x60] sm:$0xff]
        %v863 = vld [vmem:[#allocation3 + $0x68] sm:$0xff]
        %v864 = vld [vmem:[#allocation3 + $0x70] sm:$0xff]
        %v865 = vld [vmem:[#allocation3 + $0x78] sm:$0xff]
        %v866 = vld [vmem:[#allocation3 + $0x80] sm:$0xff]
        %v867 = vld [vmem:[#allocation3 + $0x88] sm:$0xff]
        %v868 = vld [vmem:[#allocation3 + $0x90] sm:$0xff]
        %v869 = vld [vmem:[#allocation3 + $0x98] sm:$0xff]
        %v870 = vld [vmem:[#allocation3 + $0xa0] sm:$0xff]
        %v871 = vld [vmem:[#allocation3 + $0xa8] sm:$0xff]
        %v872 = vld [vmem:[#allocation3 + $0xb0] sm:$0xff]
        %v873 = vld [vmem:[#allocation3 + $0xb8] sm:$0xff]
        %v898 = vunpack.c.l.b16 %v850
        %v899 = vunpack.c.h.b16 %v850
        %v900 = vunpack.c.l.b16 %v851
        %v901 = vunpack.c.h.b16 %v851
        %v902 = vunpack.c.l.b16 %v852
        %v903 = vunpack.c.h.b16 %v852
        %v904 = vunpack.c.l.b16 %v853
        %v905 = vunpack.c.h.b16 %v853
        %v906 = vunpack.c.l.b16 %v854
        %v907 = vunpack.c.h.b16 %v854
        %v908 = vunpack.c.l.b16 %v855
        %v909 = vunpack.c.h.b16 %v855
        %v910 = vunpack.c.l.b16 %v856
        %v911 = vunpack.c.h.b16 %v856
        %v912 = vunpack.c.l.b16 %v857
        %v913 = vunpack.c.h.b16 %v857
        %v914 = vunpack.c.l.b16 %v858
        %v915 = vunpack.c.h.b16 %v858
        %v916 = vunpack.c.l.b16 %v859
        %v917 = vunpack.c.h.b16 %v859
        %v918 = vunpack.c.l.b16 %v860
        %v919 = vunpack.c.h.b16 %v860
        %v920 = vunpack.c.l.b16 %v861
        %v921 = vunpack.c.h.b16 %v861
        %v922 = vunpack.c.l.b16 %v862
        %v923 = vunpack.c.h.b16 %v862
        %v924 = vunpack.c.l.b16 %v863
        %v925 = vunpack.c.h.b16 %v863
        %v926 = vunpack.c.l.b16 %v864
        %v927 = vunpack.c.h.b16 %v864
        %v928 = vunpack.c.l.b16 %v865
        %v929 = vunpack.c.h.b16 %v865
        %v930 = vunpack.c.l.b16 %v866
        %v931 = vunpack.c.h.b16 %v866
        %v932 = vunpack.c.l.b16 %v867
        %v933 = vunpack.c.h.b16 %v867
        %v934 = vunpack.c.l.b16 %v868
        %v935 = vunpack.c.h.b16 %v868
        %v936 = vunpack.c.l.b16 %v869
        %v937 = vunpack.c.h.b16 %v869
        %v938 = vunpack.c.l.b16 %v870
        %v939 = vunpack.c.h.b16 %v870
        %v940 = vunpack.c.l.b16 %v871
        %v941 = vunpack.c.h.b16 %v871
        %v942 = vunpack.c.l.b16 %v872
        %v943 = vunpack.c.h.b16 %v872
        %v944 = vunpack.c.l.b16 %v873
        %v945 = vunpack.c.h.b16 %v873
        %v946 = vpack.c.b16 %v902, %v898
        %v947 = vpack.c.b16 %v903, %v899
        %v948 = vpack.c.b16 %v904, %v900
        %v949 = vpack.c.b16 %v905, %v901
        %v950 = vpack.c.b16 %v910, %v906
        %v951 = vpack.c.b16 %v911, %v907
        %v952 = vpack.c.b16 %v912, %v908
        %v953 = vpack.c.b16 %v913, %v909
        %v954 = vpack.c.b16 %v918, %v914
        %v955 = vpack.c.b16 %v919, %v915
        %v956 = vpack.c.b16 %v920, %v916
        %v957 = vpack.c.b16 %v921, %v917
        %v958 = vpack.c.b16 %v926, %v922
        %v959 = vpack.c.b16 %v927, %v923
        %v960 = vpack.c.b16 %v928, %v924
        %v961 = vpack.c.b16 %v929, %v925
        %v962 = vpack.c.b16 %v934, %v930
        %v963 = vpack.c.b16 %v935, %v931
        %v964 = vpack.c.b16 %v936, %v932
        %v965 = vpack.c.b16 %v937, %v933
        %v966 = vpack.c.b16 %v942, %v938
        %v967 = vpack.c.b16 %v943, %v939
        %v968 = vpack.c.b16 %v944, %v940
        %v969 = vpack.c.b16 %v945, %v941
        %v995 = vsel %vm602, %v849, 0
        %997 = vmatpush.bf16.msra.mxu0 0
        %998 = vmatpush.bf16.msra.mxu0 0
        %999 = vmatpush.bf16.msra.mxu0 %v966
        %1000 = vmatpush.bf16.msra.mxu0 %v962
        %1001 = vmatpush.bf16.msra.mxu0 %v958
        %1002 = vmatpush.bf16.msra.mxu0 %v954
        %1003 = vmatpush.bf16.msra.mxu0 %v950
        %1004 = vmatpush.bf16.msra.mxu0 %v946
        %1005 = vmatmul.bf16.gmra.mxu0 %v995
        %v1006 = vpop.f32.mrf.mxu0
        %v1007 = vadd.f32 0.0, %v1006
        %v1008 = vpop.f32.mrf.mxu0
        %1009 = vdwg.mxu0
        %1010 = vmatpush.bf16.msra.mxu0 0
        %1011 = vmatpush.bf16.msra.mxu0 0
        %1012 = vmatpush.bf16.msra.mxu0 %v967
        %1013 = vmatpush.bf16.msra.mxu0 %v963
        %1014 = vmatpush.bf16.msra.mxu0 %v959
        %1015 = vmatpush.bf16.msra.mxu0 %v955
        %1016 = vmatpush.bf16.msra.mxu0 %v951
        %1017 = vmatpush.bf16.msra.mxu0 %v947
        %1018 = vmatmul.bf16.gmra.mxu0 %v995
        %v1019 = vpop.f32.mrf.mxu0
        %v1020 = vadd.f32 0.0, %v1019
        %v1021 = vpop.f32.mrf.mxu0
        %1022 = vdwg.mxu0
        %1023 = vmatpush.bf16.msra.mxu0 0
        %1024 = vmatpush.bf16.msra.mxu0 0
        %1025 = vmatpush.bf16.msra.mxu0 %v968
        %1026 = vmatpush.bf16.msra.mxu0 %v964
        %1027 = vmatpush.bf16.msra.mxu0 %v960
        %1028 = vmatpush.bf16.msra.mxu0 %v956
        %1029 = vmatpush.bf16.msra.mxu0 %v952
        %1030 = vmatpush.bf16.msra.mxu0 %v948
        %1031 = vmatmul.bf16.gmra.mxu0 %v995
        %v1032 = vpop.f32.mrf.mxu0
        %v1033 = vadd.f32 0.0, %v1032
        %v1034 = vpop.f32.mrf.mxu0
        %1035 = vdwg.mxu0
        %1036 = vmatpush.bf16.msra.mxu0 0
        %1037 = vmatpush.bf16.msra.mxu0 0
        %1038 = vmatpush.bf16.msra.mxu0 %v969
        %1039 = vmatpush.bf16.msra.mxu0 %v965
        %1040 = vmatpush.bf16.msra.mxu0 %v961
        %1041 = vmatpush.bf16.msra.mxu0 %v957
        %1042 = vmatpush.bf16.msra.mxu0 %v953
        %1043 = vmatpush.bf16.msra.mxu0 %v949
        %1044 = vmatmul.bf16.gmra.mxu0 %v995
        %v1045 = vpop.f32.mrf.mxu0
        %v1046 = vadd.f32 0.0, %v1045
        %v1047 = vpop.f32.mrf.mxu0
        %1048 = vdwg.mxu0
        %1049 = vst [vmem:[%s126 + $0x20] sm:$0xff] %v1007
        %1050 = vst [vmem:[%s126 + $0x28] sm:$0xff] %v1020
        %1051 = vst [vmem:[%s126 + $0x30] sm:$0xff] %v1033
        %1052 = vst [vmem:[%s126 + $0x38] sm:$0xff] %v1046
        %v1053 = vld [vmem:[%s171] sm:$0xff]
        %v1054 = vld [vmem:[%s171 + $0x8] sm:$0xff]
        %v1055 = vld [vmem:[%s171 + $0x10] sm:$0xf]
        %v1056 = vld [vmem:[%s171 + $0x14] sm:$0xff]
        %v1057 = vld [vmem:[%s171 + $0x1c] sm:$0xff]
        %v1058 = vld [vmem:[%s171 + $0x24] sm:$0xf]
        %v1059 = vld [vmem:[%s171 + $0x28] sm:$0xff]
        %v1060 = vld [vmem:[%s171 + $0x30] sm:$0xff]
        %v1061 = vld [vmem:[%s171 + $0x38] sm:$0xf]
        %v1062 = vld [vmem:[%s171 + $0x3c] sm:$0xff]
        %v1063 = vld [vmem:[%s171 + $0x44] sm:$0xff]
        %v1064 = vld [vmem:[%s171 + $0x4c] sm:$0xf]
        %1077 = vrot.lane.b32.xlu0 %v1053, 66
        %v1078 = vpop.permute.xlu0 %1077
        %1079 = vrot.lane.b32.xlu0 %v1054, 66
        %v1080 = vpop.permute.xlu0 %1079
        %1081 = vrot.lane.b32.xlu0 %v1055, 66
        %v1082 = vpop.permute.xlu0 %1081
        %1083 = vrot.lane.b32.xlu0 %v1056, 66
        %v1084 = vpop.permute.xlu0 %1083
        %1085 = vrot.lane.b32.xlu0 %v1057, 66
        %v1086 = vpop.permute.xlu0 %1085
        %1087 = vrot.lane.b32.xlu0 %v1058, 66
        %v1088 = vpop.permute.xlu0 %1087
        %1089 = vrot.lane.b32.xlu0 %v1059, 66
        %v1090 = vpop.permute.xlu0 %1089
        %1091 = vrot.lane.b32.xlu0 %v1060, 66
        %v1092 = vpop.permute.xlu0 %1091
        %1093 = vrot.lane.b32.xlu0 %v1061, 66
        %v1094 = vpop.permute.xlu0 %1093
        %1095 = vrot.lane.b32.xlu0 %v1062, 66
        %v1096 = vpop.permute.xlu0 %1095
        %1097 = vrot.lane.b32.xlu0 %v1063, 66
        %v1098 = vpop.permute.xlu0 %1097
        %1099 = vrot.lane.b32.xlu0 %v1064, 66
        %v1100 = vpop.permute.xlu0 %1099
        %v1101 = vrot.slane %v1078, 4
        %v1102 = vrot.slane %v1080, 4
        %v1103 = vrot.slane %v1082, 4
        %v1104 = vrot.slane %v1084, 4
        %v1105 = vrot.slane %v1086, 4
        %v1106 = vrot.slane %v1088, 4
        %v1107 = vrot.slane %v1090, 4
        %v1108 = vrot.slane %v1092, 4
        %v1109 = vrot.slane %v1094, 4
        %v1110 = vrot.slane %v1096, 4
        %v1111 = vrot.slane %v1098, 4
        %v1112 = vrot.slane %v1100, 4
        %v1113 = vsel %vm237, %v1101, %v1102
        %vm1114 = vcmask 539648
        %v1115 = vsel %vm1114, %v1078, %v1113
        %v1116 = vsel %vm237, %v1102, %v1103
        %v1117 = vsel %vm1114, %v1080, %v1116
        %v1118 = vsel %vm237, %v1104, %v1105
        %v1119 = vsel %vm1114, %v1084, %v1118
        %v1120 = vsel %vm237, %v1105, %v1106
        %v1121 = vsel %vm1114, %v1086, %v1120
        %v1122 = vsel %vm237, %v1107, %v1108
        %v1123 = vsel %vm1114, %v1090, %v1122
        %v1124 = vsel %vm237, %v1108, %v1109
        %v1125 = vsel %vm1114, %v1092, %v1124
        %v1126 = vsel %vm237, %v1110, %v1111
        %v1127 = vsel %vm1114, %v1096, %v1126
        %v1128 = vsel %vm237, %v1111, %v1112
        %v1129 = vsel %vm1114, %v1098, %v1128
        %1138 = vst [vmem:[#allocation3 + $0x40] sm:$0xff] %v1115
        %1139 = vst [vmem:[#allocation3 + $0x48] sm:$0xff] %v1117
        %1140 = vst [vmem:[#allocation3 + $0x50] sm:$0xff] %v1119
        %1141 = vst [vmem:[#allocation3 + $0x58] sm:$0xff] %v1121
        %1142 = vst [vmem:[#allocation3 + $0x60] sm:$0xff] %v1123
        %1143 = vst [vmem:[#allocation3 + $0x68] sm:$0xff] %v1125
        %1144 = vst [vmem:[#allocation3 + $0x70] sm:$0xff] %v1127
        %1145 = vst [vmem:[#allocation3 + $0x78] sm:$0xff] %v1129
        %v1146 = vld [vmem:[%s171] sm:$0xff]
        %v1147 = vld [vmem:[%s171 + $0x8] sm:$0xff]
        %v1148 = vld [vmem:[%s171 + $0x10] sm:$0xf]
        %v1149 = vld [vmem:[%s171 + $0x14] sm:$0xff]
        %v1150 = vld [vmem:[%s171 + $0x1c] sm:$0xff]
        %v1151 = vld [vmem:[%s171 + $0x24] sm:$0xf]
        %v1152 = vld [vmem:[%s171 + $0x28] sm:$0xff]
        %v1153 = vld [vmem:[%s171 + $0x30] sm:$0xff]
        %v1154 = vld [vmem:[%s171 + $0x38] sm:$0xf]
        %v1155 = vld [vmem:[%s171 + $0x3c] sm:$0xff]
        %v1156 = vld [vmem:[%s171 + $0x44] sm:$0xff]
        %v1157 = vld [vmem:[%s171 + $0x4c] sm:$0xf]
        %1170 = vrot.lane.b32.xlu0 %v1146, 46
        %v1171 = vpop.permute.xlu0 %1170
        %1172 = vrot.lane.b32.xlu0 %v1147, 46
        %v1173 = vpop.permute.xlu0 %1172
        %1174 = vrot.lane.b32.xlu0 %v1148, 46
        %v1175 = vpop.permute.xlu0 %1174
        %1176 = vrot.lane.b32.xlu0 %v1149, 46
        %v1177 = vpop.permute.xlu0 %1176
        %1178 = vrot.lane.b32.xlu0 %v1150, 46
        %v1179 = vpop.permute.xlu0 %1178
        %1180 = vrot.lane.b32.xlu0 %v1151, 46
        %v1181 = vpop.permute.xlu0 %1180
        %1182 = vrot.lane.b32.xlu0 %v1152, 46
        %v1183 = vpop.permute.xlu0 %1182
        %1184 = vrot.lane.b32.xlu0 %v1153, 46
        %v1185 = vpop.permute.xlu0 %1184
        %1186 = vrot.lane.b32.xlu0 %v1154, 46
        %v1187 = vpop.permute.xlu0 %1186
        %1188 = vrot.lane.b32.xlu0 %v1155, 46
        %v1189 = vpop.permute.xlu0 %1188
        %1190 = vrot.lane.b32.xlu0 %v1156, 46
        %v1191 = vpop.permute.xlu0 %1190
        %1192 = vrot.lane.b32.xlu0 %v1157, 46
        %v1193 = vpop.permute.xlu0 %1192
        %v1194 = vrot.slane %v1171, 4
        %v1195 = vrot.slane %v1173, 4
        %v1196 = vrot.slane %v1175, 4
        %v1197 = vrot.slane %v1177, 4
        %v1198 = vrot.slane %v1179, 4
        %v1199 = vrot.slane %v1181, 4
        %v1200 = vrot.slane %v1183, 4
        %v1201 = vrot.slane %v1185, 4
        %v1202 = vrot.slane %v1187, 4
        %v1203 = vrot.slane %v1189, 4
        %v1204 = vrot.slane %v1191, 4
        %v1205 = vrot.slane %v1193, 4
        %v1206 = vsel %vm237, %v1194, %v1195
        %vm1207 = vcmask 375808
        %v1208 = vsel %vm1207, %v1171, %v1206
        %v1209 = vsel %vm237, %v1195, %v1196
        %v1210 = vsel %vm1207, %v1173, %v1209
        %v1211 = vsel %vm237, %v1197, %v1198
        %v1212 = vsel %vm1207, %v1177, %v1211
        %v1213 = vsel %vm237, %v1198, %v1199
        %v1214 = vsel %vm1207, %v1179, %v1213
        %v1215 = vsel %vm237, %v1200, %v1201
        %v1216 = vsel %vm1207, %v1183, %v1215
        %v1217 = vsel %vm237, %v1201, %v1202
        %v1218 = vsel %vm1207, %v1185, %v1217
        %v1219 = vsel %vm237, %v1203, %v1204
        %v1220 = vsel %vm1207, %v1189, %v1219
        %v1221 = vsel %vm237, %v1204, %v1205
        %v1222 = vsel %vm1207, %v1191, %v1221
        %1231 = vst [vmem:[#allocation3 + $0x80] sm:$0xff] %v1208
        %1232 = vst [vmem:[#allocation3 + $0x88] sm:$0xff] %v1210
        %1233 = vst [vmem:[#allocation3 + $0x90] sm:$0xff] %v1212
        %1234 = vst [vmem:[#allocation3 + $0x98] sm:$0xff] %v1214
        %1235 = vst [vmem:[#allocation3 + $0xa0] sm:$0xff] %v1216
        %1236 = vst [vmem:[#allocation3 + $0xa8] sm:$0xff] %v1218
        %1237 = vst [vmem:[#allocation3 + $0xb0] sm:$0xff] %v1220
        %1238 = vst [vmem:[#allocation3 + $0xb8] sm:$0xff] %v1222
        %s1239 = scalar_lea.vmem [#allocation5], 8
        %v1240 = vld [vmem:[%s1239] sm:$0xf]
        %v1241 = vld [vmem:[#allocation3] sm:$0xff]
        %v1242 = vld [vmem:[#allocation3 + $0x8] sm:$0xff]
        %v1243 = vld [vmem:[#allocation3 + $0x10] sm:$0xff]
        %v1244 = vld [vmem:[#allocation3 + $0x18] sm:$0xff]
        %v1245 = vld [vmem:[#allocation3 + $0x20] sm:$0xff]
        %v1246 = vld [vmem:[#allocation3 + $0x28] sm:$0xff]
        %v1247 = vld [vmem:[#allocation3 + $0x30] sm:$0xff]
        %v1248 = vld [vmem:[#allocation3 + $0x38] sm:$0xff]
        %v1249 = vld [vmem:[#allocation3 + $0x40] sm:$0xff]
        %v1250 = vld [vmem:[#allocation3 + $0x48] sm:$0xff]
        %v1251 = vld [vmem:[#allocation3 + $0x50] sm:$0xff]
        %v1252 = vld [vmem:[#allocation3 + $0x58] sm:$0xff]
        %v1253 = vld [vmem:[#allocation3 + $0x60] sm:$0xff]
        %v1254 = vld [vmem:[#allocation3 + $0x68] sm:$0xff]
        %v1255 = vld [vmem:[#allocation3 + $0x70] sm:$0xff]
        %v1256 = vld [vmem:[#allocation3 + $0x78] sm:$0xff]
        %v1257 = vld [vmem:[#allocation3 + $0x80] sm:$0xff]
        %v1258 = vld [vmem:[#allocation3 + $0x88] sm:$0xff]
        %v1259 = vld [vmem:[#allocation3 + $0x90] sm:$0xff]
        %v1260 = vld [vmem:[#allocation3 + $0x98] sm:$0xff]
        %v1261 = vld [vmem:[#allocation3 + $0xa0] sm:$0xff]
        %v1262 = vld [vmem:[#allocation3 + $0xa8] sm:$0xff]
        %v1263 = vld [vmem:[#allocation3 + $0xb0] sm:$0xff]
        %v1264 = vld [vmem:[#allocation3 + $0xb8] sm:$0xff]
        %v1289 = vunpack.c.l.b16 %v1241
        %v1290 = vunpack.c.h.b16 %v1241
        %v1291 = vunpack.c.l.b16 %v1242
        %v1292 = vunpack.c.h.b16 %v1242
        %v1293 = vunpack.c.l.b16 %v1243
        %v1294 = vunpack.c.h.b16 %v1243
        %v1295 = vunpack.c.l.b16 %v1244
        %v1296 = vunpack.c.h.b16 %v1244
        %v1297 = vunpack.c.l.b16 %v1245
        %v1298 = vunpack.c.h.b16 %v1245
        %v1299 = vunpack.c.l.b16 %v1246
        %v1300 = vunpack.c.h.b16 %v1246
        %v1301 = vunpack.c.l.b16 %v1247
        %v1302 = vunpack.c.h.b16 %v1247
        %v1303 = vunpack.c.l.b16 %v1248
        %v1304 = vunpack.c.h.b16 %v1248
        %v1305 = vunpack.c.l.b16 %v1249
        %v1306 = vunpack.c.h.b16 %v1249
        %v1307 = vunpack.c.l.b16 %v1250
        %v1308 = vunpack.c.h.b16 %v1250
        %v1309 = vunpack.c.l.b16 %v1251
        %v1310 = vunpack.c.h.b16 %v1251
        %v1311 = vunpack.c.l.b16 %v1252
        %v1312 = vunpack.c.h.b16 %v1252
        %v1313 = vunpack.c.l.b16 %v1253
        %v1314 = vunpack.c.h.b16 %v1253
        %v1315 = vunpack.c.l.b16 %v1254
        %v1316 = vunpack.c.h.b16 %v1254
        %v1317 = vunpack.c.l.b16 %v1255
        %v1318 = vunpack.c.h.b16 %v1255
        %v1319 = vunpack.c.l.b16 %v1256
        %v1320 = vunpack.c.h.b16 %v1256
        %v1321 = vunpack.c.l.b16 %v1257
        %v1322 = vunpack.c.h.b16 %v1257
        %v1323 = vunpack.c.l.b16 %v1258
        %v1324 = vunpack.c.h.b16 %v1258
        %v1325 = vunpack.c.l.b16 %v1259
        %v1326 = vunpack.c.h.b16 %v1259
        %v1327 = vunpack.c.l.b16 %v1260
        %v1328 = vunpack.c.h.b16 %v1260
        %v1329 = vunpack.c.l.b16 %v1261
        %v1330 = vunpack.c.h.b16 %v1261
        %v1331 = vunpack.c.l.b16 %v1262
        %v1332 = vunpack.c.h.b16 %v1262
        %v1333 = vunpack.c.l.b16 %v1263
        %v1334 = vunpack.c.h.b16 %v1263
        %v1335 = vunpack.c.l.b16 %v1264
        %v1336 = vunpack.c.h.b16 %v1264
        %v1337 = vpack.c.b16 %v1293, %v1289
        %v1338 = vpack.c.b16 %v1294, %v1290
        %v1339 = vpack.c.b16 %v1295, %v1291
        %v1340 = vpack.c.b16 %v1296, %v1292
        %v1341 = vpack.c.b16 %v1301, %v1297
        %v1342 = vpack.c.b16 %v1302, %v1298
        %v1343 = vpack.c.b16 %v1303, %v1299
        %v1344 = vpack.c.b16 %v1304, %v1300
        %v1345 = vpack.c.b16 %v1309, %v1305
        %v1346 = vpack.c.b16 %v1310, %v1306
        %v1347 = vpack.c.b16 %v1311, %v1307
        %v1348 = vpack.c.b16 %v1312, %v1308
        %v1349 = vpack.c.b16 %v1317, %v1313
        %v1350 = vpack.c.b16 %v1318, %v1314
        %v1351 = vpack.c.b16 %v1319, %v1315
        %v1352 = vpack.c.b16 %v1320, %v1316
        %v1353 = vpack.c.b16 %v1325, %v1321
        %v1354 = vpack.c.b16 %v1326, %v1322
        %v1355 = vpack.c.b16 %v1327, %v1323
        %v1356 = vpack.c.b16 %v1328, %v1324
        %v1357 = vpack.c.b16 %v1333, %v1329
        %v1358 = vpack.c.b16 %v1334, %v1330
        %v1359 = vpack.c.b16 %v1335, %v1331
        %v1360 = vpack.c.b16 %v1336, %v1332
        %v1386 = vsel %vm602, %v1240, 0
        %1388 = vmatpush.bf16.msra.mxu0 0
        %1389 = vmatpush.bf16.msra.mxu0 0
        %1390 = vmatpush.bf16.msra.mxu0 %v1357
        %1391 = vmatpush.bf16.msra.mxu0 %v1353
        %1392 = vmatpush.bf16.msra.mxu0 %v1349
        %1393 = vmatpush.bf16.msra.mxu0 %v1345
        %1394 = vmatpush.bf16.msra.mxu0 %v1341
        %1395 = vmatpush.bf16.msra.mxu0 %v1337
        %1396 = vmatmul.bf16.gmra.mxu0 %v1386
        %v1397 = vpop.f32.mrf.mxu0
        %v1398 = vadd.f32 0.0, %v1397
        %v1399 = vpop.f32.mrf.mxu0
        %1400 = vdwg.mxu0
        %1401 = vmatpush.bf16.msra.mxu0 0
        %1402 = vmatpush.bf16.msra.mxu0 0
        %1403 = vmatpush.bf16.msra.mxu0 %v1358
        %1404 = vmatpush.bf16.msra.mxu0 %v1354
        %1405 = vmatpush.bf16.msra.mxu0 %v1350
        %1406 = vmatpush.bf16.msra.mxu0 %v1346
        %1407 = vmatpush.bf16.msra.mxu0 %v1342
        %1408 = vmatpush.bf16.msra.mxu0 %v1338
        %1409 = vmatmul.bf16.gmra.mxu0 %v1386
        %v1410 = vpop.f32.mrf.mxu0
        %v1411 = vadd.f32 0.0, %v1410
        %v1412 = vpop.f32.mrf.mxu0
        %1413 = vdwg.mxu0
        %1414 = vmatpush.bf16.msra.mxu0 0
        %1415 = vmatpush.bf16.msra.mxu0 0
        %1416 = vmatpush.bf16.msra.mxu0 %v1359
        %1417 = vmatpush.bf16.msra.mxu0 %v1355
        %1418 = vmatpush.bf16.msra.mxu0 %v1351
        %1419 = vmatpush.bf16.msra.mxu0 %v1347
        %1420 = vmatpush.bf16.msra.mxu0 %v1343
        %1421 = vmatpush.bf16.msra.mxu0 %v1339
        %1422 = vmatmul.bf16.gmra.mxu0 %v1386
        %v1423 = vpop.f32.mrf.mxu0
        %v1424 = vadd.f32 0.0, %v1423
        %v1425 = vpop.f32.mrf.mxu0
        %1426 = vdwg.mxu0
        %1427 = vmatpush.bf16.msra.mxu0 0
        %1428 = vmatpush.bf16.msra.mxu0 0
        %1429 = vmatpush.bf16.msra.mxu0 %v1360
        %1430 = vmatpush.bf16.msra.mxu0 %v1356
        %1431 = vmatpush.bf16.msra.mxu0 %v1352
        %1432 = vmatpush.bf16.msra.mxu0 %v1348
        %1433 = vmatpush.bf16.msra.mxu0 %v1344
        %1434 = vmatpush.bf16.msra.mxu0 %v1340
        %1435 = vmatmul.bf16.gmra.mxu0 %v1386
        %v1436 = vpop.f32.mrf.mxu0
        %v1437 = vadd.f32 0.0, %v1436
        %v1438 = vpop.f32.mrf.mxu0
        %1439 = vdwg.mxu0
        %1440 = vst [vmem:[%s126 + $0x40] sm:$0xff] %v1398
        %1441 = vst [vmem:[%s126 + $0x48] sm:$0xff] %v1411
        %1442 = vst [vmem:[%s126 + $0x50] sm:$0xff] %v1424
        %1443 = vst [vmem:[%s126 + $0x58] sm:$0xff] %v1437
        %v1444 = vld [vmem:[%s171] sm:$0xff]
        %v1445 = vld [vmem:[%s171 + $0x8] sm:$0xff]
        %v1446 = vld [vmem:[%s171 + $0x10] sm:$0xf]
        %v1447 = vld [vmem:[%s171 + $0x14] sm:$0xff]
        %v1448 = vld [vmem:[%s171 + $0x1c] sm:$0xff]
        %v1449 = vld [vmem:[%s171 + $0x24] sm:$0xf]
        %v1450 = vld [vmem:[%s171 + $0x28] sm:$0xff]
        %v1451 = vld [vmem:[%s171 + $0x30] sm:$0xff]
        %v1452 = vld [vmem:[%s171 + $0x38] sm:$0xf]
        %v1453 = vld [vmem:[%s171 + $0x3c] sm:$0xff]
        %v1454 = vld [vmem:[%s171 + $0x44] sm:$0xff]
        %v1455 = vld [vmem:[%s171 + $0x4c] sm:$0xf]
        %1468 = vrot.lane.b32.xlu0 %v1444, 67
        %v1469 = vpop.permute.xlu0 %1468
        %1470 = vrot.lane.b32.xlu0 %v1445, 67
        %v1471 = vpop.permute.xlu0 %1470
        %1472 = vrot.lane.b32.xlu0 %v1446, 67
        %v1473 = vpop.permute.xlu0 %1472
        %1474 = vrot.lane.b32.xlu0 %v1447, 67
        %v1475 = vpop.permute.xlu0 %1474
        %1476 = vrot.lane.b32.xlu0 %v1448, 67
        %v1477 = vpop.permute.xlu0 %1476
        %1478 = vrot.lane.b32.xlu0 %v1449, 67
        %v1479 = vpop.permute.xlu0 %1478
        %1480 = vrot.lane.b32.xlu0 %v1450, 67
        %v1481 = vpop.permute.xlu0 %1480
        %1482 = vrot.lane.b32.xlu0 %v1451, 67
        %v1483 = vpop.permute.xlu0 %1482
        %1484 = vrot.lane.b32.xlu0 %v1452, 67
        %v1485 = vpop.permute.xlu0 %1484
        %1486 = vrot.lane.b32.xlu0 %v1453, 67
        %v1487 = vpop.permute.xlu0 %1486
        %1488 = vrot.lane.b32.xlu0 %v1454, 67
        %v1489 = vpop.permute.xlu0 %1488
        %1490 = vrot.lane.b32.xlu0 %v1455, 67
        %v1491 = vpop.permute.xlu0 %1490
        %v1492 = vrot.slane %v1469, 4
        %v1493 = vrot.slane %v1471, 4
        %v1494 = vrot.slane %v1473, 4
        %v1495 = vrot.slane %v1475, 4
        %v1496 = vrot.slane %v1477, 4
        %v1497 = vrot.slane %v1479, 4
        %v1498 = vrot.slane %v1481, 4
        %v1499 = vrot.slane %v1483, 4
        %v1500 = vrot.slane %v1485, 4
        %v1501 = vrot.slane %v1487, 4
        %v1502 = vrot.slane %v1489, 4
        %v1503 = vrot.slane %v1491, 4
        %v1504 = vsel %vm237, %v1492, %v1493
        %vm1505 = vcmask 547840
        %v1506 = vsel %vm1505, %v1469, %v1504
        %v1507 = vsel %vm237, %v1493, %v1494
        %v1508 = vsel %vm1505, %v1471, %v1507
        %v1509 = vsel %vm237, %v1495, %v1496
        %v1510 = vsel %vm1505, %v1475, %v1509
        %v1511 = vsel %vm237, %v1496, %v1497
        %v1512 = vsel %vm1505, %v1477, %v1511
        %v1513 = vsel %vm237, %v1498, %v1499
        %v1514 = vsel %vm1505, %v1481, %v1513
        %v1515 = vsel %vm237, %v1499, %v1500
        %v1516 = vsel %vm1505, %v1483, %v1515
        %v1517 = vsel %vm237, %v1501, %v1502
        %v1518 = vsel %vm1505, %v1487, %v1517
        %v1519 = vsel %vm237, %v1502, %v1503
        %v1520 = vsel %vm1505, %v1489, %v1519
        %1529 = vst [vmem:[#allocation3 + $0x40] sm:$0xff] %v1506
        %1530 = vst [vmem:[#allocation3 + $0x48] sm:$0xff] %v1508
        %1531 = vst [vmem:[#allocation3 + $0x50] sm:$0xff] %v1510
        %1532 = vst [vmem:[#allocation3 + $0x58] sm:$0xff] %v1512
        %1533 = vst [vmem:[#allocation3 + $0x60] sm:$0xff] %v1514
        %1534 = vst [vmem:[#allocation3 + $0x68] sm:$0xff] %v1516
        %1535 = vst [vmem:[#allocation3 + $0x70] sm:$0xff] %v1518
        %1536 = vst [vmem:[#allocation3 + $0x78] sm:$0xff] %v1520
        %v1537 = vld [vmem:[%s171] sm:$0xff]
        %v1538 = vld [vmem:[%s171 + $0x8] sm:$0xff]
        %v1539 = vld [vmem:[%s171 + $0x10] sm:$0xf]
        %v1540 = vld [vmem:[%s171 + $0x14] sm:$0xff]
        %v1541 = vld [vmem:[%s171 + $0x1c] sm:$0xff]
        %v1542 = vld [vmem:[%s171 + $0x24] sm:$0xf]
        %v1543 = vld [vmem:[%s171 + $0x28] sm:$0xff]
        %v1544 = vld [vmem:[%s171 + $0x30] sm:$0xff]
        %v1545 = vld [vmem:[%s171 + $0x38] sm:$0xf]
        %v1546 = vld [vmem:[%s171 + $0x3c] sm:$0xff]
        %v1547 = vld [vmem:[%s171 + $0x44] sm:$0xff]
        %v1548 = vld [vmem:[%s171 + $0x4c] sm:$0xf]
        %1561 = vrot.lane.b32.xlu0 %v1537, 48
        %v1562 = vpop.permute.xlu0 %1561
        %1563 = vrot.lane.b32.xlu0 %v1538, 48
        %v1564 = vpop.permute.xlu0 %1563
        %1565 = vrot.lane.b32.xlu0 %v1539, 48
        %v1566 = vpop.permute.xlu0 %1565
        %1567 = vrot.lane.b32.xlu0 %v1540, 48
        %v1568 = vpop.permute.xlu0 %1567
        %1569 = vrot.lane.b32.xlu0 %v1541, 48
        %v1570 = vpop.permute.xlu0 %1569
        %1571 = vrot.lane.b32.xlu0 %v1542, 48
        %v1572 = vpop.permute.xlu0 %1571
        %1573 = vrot.lane.b32.xlu0 %v1543, 48
        %v1574 = vpop.permute.xlu0 %1573
        %1575 = vrot.lane.b32.xlu0 %v1544, 48
        %v1576 = vpop.permute.xlu0 %1575
        %1577 = vrot.lane.b32.xlu0 %v1545, 48
        %v1578 = vpop.permute.xlu0 %1577
        %1579 = vrot.lane.b32.xlu0 %v1546, 48
        %v1580 = vpop.permute.xlu0 %1579
        %1581 = vrot.lane.b32.xlu0 %v1547, 48
        %v1582 = vpop.permute.xlu0 %1581
        %1583 = vrot.lane.b32.xlu0 %v1548, 48
        %v1584 = vpop.permute.xlu0 %1583
        %v1585 = vrot.slane %v1562, 4
        %v1586 = vrot.slane %v1564, 4
        %v1587 = vrot.slane %v1566, 4
        %v1588 = vrot.slane %v1568, 4
        %v1589 = vrot.slane %v1570, 4
        %v1590 = vrot.slane %v1572, 4
        %v1591 = vrot.slane %v1574, 4
        %v1592 = vrot.slane %v1576, 4
        %v1593 = vrot.slane %v1578, 4
        %v1594 = vrot.slane %v1580, 4
        %v1595 = vrot.slane %v1582, 4
        %v1596 = vrot.slane %v1584, 4
        %v1597 = vsel %vm237, %v1585, %v1586
        %vm1598 = vcmask 392192
        %v1599 = vsel %vm1598, %v1562, %v1597
        %v1600 = vsel %vm237, %v1586, %v1587
        %v1601 = vsel %vm1598, %v1564, %v1600
        %v1602 = vsel %vm237, %v1588, %v1589
        %v1603 = vsel %vm1598, %v1568, %v1602
        %v1604 = vsel %vm237, %v1589, %v1590
        %v1605 = vsel %vm1598, %v1570, %v1604
        %v1606 = vsel %vm237, %v1591, %v1592
        %v1607 = vsel %vm1598, %v1574, %v1606
        %v1608 = vsel %vm237, %v1592, %v1593
        %v1609 = vsel %vm1598, %v1576, %v1608
        %v1610 = vsel %vm237, %v1594, %v1595
        %v1611 = vsel %vm1598, %v1580, %v1610
        %v1612 = vsel %vm237, %v1595, %v1596
        %v1613 = vsel %vm1598, %v1582, %v1612
        %1622 = vst [vmem:[#allocation3 + $0x80] sm:$0xff] %v1599
        %1623 = vst [vmem:[#allocation3 + $0x88] sm:$0xff] %v1601
        %1624 = vst [vmem:[#allocation3 + $0x90] sm:$0xff] %v1603
        %1625 = vst [vmem:[#allocation3 + $0x98] sm:$0xff] %v1605
        %1626 = vst [vmem:[#allocation3 + $0xa0] sm:$0xff] %v1607
        %1627 = vst [vmem:[#allocation3 + $0xa8] sm:$0xff] %v1609
        %1628 = vst [vmem:[#allocation3 + $0xb0] sm:$0xff] %v1611
        %1629 = vst [vmem:[#allocation3 + $0xb8] sm:$0xff] %v1613
        %s1630 = scalar_lea.vmem [#allocation5], 12
        %v1631 = vld [vmem:[%s1630] sm:$0xf]
        %v1632 = vld [vmem:[#allocation3] sm:$0xff]
        %v1633 = vld [vmem:[#allocation3 + $0x8] sm:$0xff]
        %v1634 = vld [vmem:[#allocation3 + $0x10] sm:$0xff]
        %v1635 = vld [vmem:[#allocation3 + $0x18] sm:$0xff]
        %v1636 = vld [vmem:[#allocation3 + $0x20] sm:$0xff]
        %v1637 = vld [vmem:[#allocation3 + $0x28] sm:$0xff]
        %v1638 = vld [vmem:[#allocation3 + $0x30] sm:$0xff]
        %v1639 = vld [vmem:[#allocation3 + $0x38] sm:$0xff]
        %v1640 = vld [vmem:[#allocation3 + $0x40] sm:$0xff]
        %v1641 = vld [vmem:[#allocation3 + $0x48] sm:$0xff]
        %v1642 = vld [vmem:[#allocation3 + $0x50] sm:$0xff]
        %v1643 = vld [vmem:[#allocation3 + $0x58] sm:$0xff]
        %v1644 = vld [vmem:[#allocation3 + $0x60] sm:$0xff]
        %v1645 = vld [vmem:[#allocation3 + $0x68] sm:$0xff]
        %v1646 = vld [vmem:[#allocation3 + $0x70] sm:$0xff]
        %v1647 = vld [vmem:[#allocation3 + $0x78] sm:$0xff]
        %v1648 = vld [vmem:[#allocation3 + $0x80] sm:$0xff]
        %v1649 = vld [vmem:[#allocation3 + $0x88] sm:$0xff]
        %v1650 = vld [vmem:[#allocation3 + $0x90] sm:$0xff]
        %v1651 = vld [vmem:[#allocation3 + $0x98] sm:$0xff]
        %v1652 = vld [vmem:[#allocation3 + $0xa0] sm:$0xff]
        %v1653 = vld [vmem:[#allocation3 + $0xa8] sm:$0xff]
        %v1654 = vld [vmem:[#allocation3 + $0xb0] sm:$0xff]
        %v1655 = vld [vmem:[#allocation3 + $0xb8] sm:$0xff]
        %v1680 = vunpack.c.l.b16 %v1632
        %v1681 = vunpack.c.h.b16 %v1632
        %v1682 = vunpack.c.l.b16 %v1633
        %v1683 = vunpack.c.h.b16 %v1633
        %v1684 = vunpack.c.l.b16 %v1634
        %v1685 = vunpack.c.h.b16 %v1634
        %v1686 = vunpack.c.l.b16 %v1635
        %v1687 = vunpack.c.h.b16 %v1635
        %v1688 = vunpack.c.l.b16 %v1636
        %v1689 = vunpack.c.h.b16 %v1636
        %v1690 = vunpack.c.l.b16 %v1637
        %v1691 = vunpack.c.h.b16 %v1637
        %v1692 = vunpack.c.l.b16 %v1638
        %v1693 = vunpack.c.h.b16 %v1638
        %v1694 = vunpack.c.l.b16 %v1639
        %v1695 = vunpack.c.h.b16 %v1639
        %v1696 = vunpack.c.l.b16 %v1640
        %v1697 = vunpack.c.h.b16 %v1640
        %v1698 = vunpack.c.l.b16 %v1641
        %v1699 = vunpack.c.h.b16 %v1641
        %v1700 = vunpack.c.l.b16 %v1642
        %v1701 = vunpack.c.h.b16 %v1642
        %v1702 = vunpack.c.l.b16 %v1643
        %v1703 = vunpack.c.h.b16 %v1643
        %v1704 = vunpack.c.l.b16 %v1644
        %v1705 = vunpack.c.h.b16 %v1644
        %v1706 = vunpack.c.l.b16 %v1645
        %v1707 = vunpack.c.h.b16 %v1645
        %v1708 = vunpack.c.l.b16 %v1646
        %v1709 = vunpack.c.h.b16 %v1646
        %v1710 = vunpack.c.l.b16 %v1647
        %v1711 = vunpack.c.h.b16 %v1647
        %v1712 = vunpack.c.l.b16 %v1648
        %v1713 = vunpack.c.h.b16 %v1648
        %v1714 = vunpack.c.l.b16 %v1649
        %v1715 = vunpack.c.h.b16 %v1649
        %v1716 = vunpack.c.l.b16 %v1650
        %v1717 = vunpack.c.h.b16 %v1650
        %v1718 = vunpack.c.l.b16 %v1651
        %v1719 = vunpack.c.h.b16 %v1651
        %v1720 = vunpack.c.l.b16 %v1652
        %v1721 = vunpack.c.h.b16 %v1652
        %v1722 = vunpack.c.l.b16 %v1653
        %v1723 = vunpack.c.h.b16 %v1653
        %v1724 = vunpack.c.l.b16 %v1654
        %v1725 = vunpack.c.h.b16 %v1654
        %v1726 = vunpack.c.l.b16 %v1655
        %v1727 = vunpack.c.h.b16 %v1655
        %v1728 = vpack.c.b16 %v1684, %v1680
        %v1729 = vpack.c.b16 %v1685, %v1681
        %v1730 = vpack.c.b16 %v1686, %v1682
        %v1731 = vpack.c.b16 %v1687, %v1683
        %v1732 = vpack.c.b16 %v1692, %v1688
        %v1733 = vpack.c.b16 %v1693, %v1689
        %v1734 = vpack.c.b16 %v1694, %v1690
        %v1735 = vpack.c.b16 %v1695, %v1691
        %v1736 = vpack.c.b16 %v1700, %v1696
        %v1737 = vpack.c.b16 %v1701, %v1697
        %v1738 = vpack.c.b16 %v1702, %v1698
        %v1739 = vpack.c.b16 %v1703, %v1699
        %v1740 = vpack.c.b16 %v1708, %v1704
        %v1741 = vpack.c.b16 %v1709, %v1705
        %v1742 = vpack.c.b16 %v1710, %v1706
        %v1743 = vpack.c.b16 %v1711, %v1707
        %v1744 = vpack.c.b16 %v1716, %v1712
        %v1745 = vpack.c.b16 %v1717, %v1713
        %v1746 = vpack.c.b16 %v1718, %v1714
        %v1747 = vpack.c.b16 %v1719, %v1715
        %v1748 = vpack.c.b16 %v1724, %v1720
        %v1749 = vpack.c.b16 %v1725, %v1721
        %v1750 = vpack.c.b16 %v1726, %v1722
        %v1751 = vpack.c.b16 %v1727, %v1723
        %v1777 = vsel %vm602, %v1631, 0
        %1779 = vmatpush.bf16.msra.mxu0 0
        %1780 = vmatpush.bf16.msra.mxu0 0
        %1781 = vmatpush.bf16.msra.mxu0 %v1748
        %1782 = vmatpush.bf16.msra.mxu0 %v1744
        %1783 = vmatpush.bf16.msra.mxu0 %v1740
        %1784 = vmatpush.bf16.msra.mxu0 %v1736
        %1785 = vmatpush.bf16.msra.mxu0 %v1732
        %1786 = vmatpush.bf16.msra.mxu0 %v1728
        %1787 = vmatmul.bf16.gmra.mxu0 %v1777
        %v1788 = vpop.f32.mrf.mxu0
        %v1789 = vadd.f32 0.0, %v1788
        %v1790 = vpop.f32.mrf.mxu0
        %1791 = vdwg.mxu0
        %1792 = vmatpush.bf16.msra.mxu0 0
        %1793 = vmatpush.bf16.msra.mxu0 0
        %1794 = vmatpush.bf16.msra.mxu0 %v1749
        %1795 = vmatpush.bf16.msra.mxu0 %v1745
        %1796 = vmatpush.bf16.msra.mxu0 %v1741
        %1797 = vmatpush.bf16.msra.mxu0 %v1737
        %1798 = vmatpush.bf16.msra.mxu0 %v1733
        %1799 = vmatpush.bf16.msra.mxu0 %v1729
        %1800 = vmatmul.bf16.gmra.mxu0 %v1777
        %v1801 = vpop.f32.mrf.mxu0
        %v1802 = vadd.f32 0.0, %v1801
        %v1803 = vpop.f32.mrf.mxu0
        %1804 = vdwg.mxu0
        %1805 = vmatpush.bf16.msra.mxu0 0
        %1806 = vmatpush.bf16.msra.mxu0 0
        %1807 = vmatpush.bf16.msra.mxu0 %v1750
        %1808 = vmatpush.bf16.msra.mxu0 %v1746
        %1809 = vmatpush.bf16.msra.mxu0 %v1742
        %1810 = vmatpush.bf16.msra.mxu0 %v1738
        %1811 = vmatpush.bf16.msra.mxu0 %v1734
        %1812 = vmatpush.bf16.msra.mxu0 %v1730
        %1813 = vmatmul.bf16.gmra.mxu0 %v1777
        %v1814 = vpop.f32.mrf.mxu0
        %v1815 = vadd.f32 0.0, %v1814
        %v1816 = vpop.f32.mrf.mxu0
        %1817 = vdwg.mxu0
        %1818 = vmatpush.bf16.msra.mxu0 0
        %1819 = vmatpush.bf16.msra.mxu0 0
        %1820 = vmatpush.bf16.msra.mxu0 %v1751
        %1821 = vmatpush.bf16.msra.mxu0 %v1747
        %1822 = vmatpush.bf16.msra.mxu0 %v1743
        %1823 = vmatpush.bf16.msra.mxu0 %v1739
        %1824 = vmatpush.bf16.msra.mxu0 %v1735
        %1825 = vmatpush.bf16.msra.mxu0 %v1731
        %1826 = vmatmul.bf16.gmra.mxu0 %v1777
        %v1827 = vpop.f32.mrf.mxu0
        %v1828 = vadd.f32 0.0, %v1827
        %v1829 = vpop.f32.mrf.mxu0
        %1830 = vdwg.mxu0
        %1831 = vst [vmem:[%s126 + $0x60] sm:$0xff] %v1789
        %1832 = vst [vmem:[%s126 + $0x68] sm:$0xff] %v1802
        %1833 = vst [vmem:[%s126 + $0x70] sm:$0xff] %v1815
        %1834 = vst [vmem:[%s126 + $0x78] sm:$0xff] %v1828
        %v1835 = vld [vmem:[%s171] sm:$0xff]
        %v1836 = vld [vmem:[%s171 + $0x8] sm:$0xff]
        %v1837 = vld [vmem:[%s171 + $0x10] sm:$0xf]
        %v1838 = vld [vmem:[%s171 + $0x14] sm:$0xff]
        %v1839 = vld [vmem:[%s171 + $0x1c] sm:$0xff]
        %v1840 = vld [vmem:[%s171 + $0x24] sm:$0xf]
        %v1841 = vld [vmem:[%s171 + $0x28] sm:$0xff]
        %v1842 = vld [vmem:[%s171 + $0x30] sm:$0xff]
        %v1843 = vld [vmem:[%s171 + $0x38] sm:$0xf]
        %v1844 = vld [vmem:[%s171 + $0x3c] sm:$0xff]
        %v1845 = vld [vmem:[%s171 + $0x44] sm:$0xff]
        %v1846 = vld [vmem:[%s171 + $0x4c] sm:$0xf]
        %1859 = vrot.lane.b32.xlu0 %v1835, 87
        %v1860 = vpop.permute.xlu0 %1859
        %1861 = vrot.lane.b32.xlu0 %v1836, 87
        %v1862 = vpop.permute.xlu0 %1861
        %1863 = vrot.lane.b32.xlu0 %v1837, 87
        %v1864 = vpop.permute.xlu0 %1863
        %1865 = vrot.lane.b32.xlu0 %v1838, 87
        %v1866 = vpop.permute.xlu0 %1865
        %1867 = vrot.lane.b32.xlu0 %v1839, 87
        %v1868 = vpop.permute.xlu0 %1867
        %1869 = vrot.lane.b32.xlu0 %v1840, 87
        %v1870 = vpop.permute.xlu0 %1869
        %1871 = vrot.lane.b32.xlu0 %v1841, 87
        %v1872 = vpop.permute.xlu0 %1871
        %1873 = vrot.lane.b32.xlu0 %v1842, 87
        %v1874 = vpop.permute.xlu0 %1873
        %1875 = vrot.lane.b32.xlu0 %v1843, 87
        %v1876 = vpop.permute.xlu0 %1875
        %1877 = vrot.lane.b32.xlu0 %v1844, 87
        %v1878 = vpop.permute.xlu0 %1877
        %1879 = vrot.lane.b32.xlu0 %v1845, 87
        %v1880 = vpop.permute.xlu0 %1879
        %1881 = vrot.lane.b32.xlu0 %v1846, 87
        %v1882 = vpop.permute.xlu0 %1881
        %v1883 = vrot.slane %v1860, 4
        %v1884 = vrot.slane %v1862, 4
        %v1885 = vrot.slane %v1864, 4
        %v1886 = vrot.slane %v1866, 4
        %v1887 = vrot.slane %v1868, 4
        %v1888 = vrot.slane %v1870, 4
        %v1889 = vrot.slane %v1872, 4
        %v1890 = vrot.slane %v1874, 4
        %v1891 = vrot.slane %v1876, 4
        %v1892 = vrot.slane %v1878, 4
        %v1893 = vrot.slane %v1880, 4
        %v1894 = vrot.slane %v1882, 4
        %v1895 = vsel %vm237, %v1883, %v1884
        %vm1896 = vcmask 711680
        %v1897 = vsel %vm1896, %v1860, %v1895
        %v1898 = vsel %vm237, %v1884, %v1885
        %v1899 = vsel %vm1896, %v1862, %v1898
        %v1900 = vsel %vm237, %v1886, %v1887
        %v1901 = vsel %vm1896, %v1866, %v1900
        %v1902 = vsel %vm237, %v1887, %v1888
        %v1903 = vsel %vm1896, %v1868, %v1902
        %v1904 = vsel %vm237, %v1889, %v1890
        %v1905 = vsel %vm1896, %v1872, %v1904
        %v1906 = vsel %vm237, %v1890, %v1891
        %v1907 = vsel %vm1896, %v1874, %v1906
        %v1908 = vsel %vm237, %v1892, %v1893
        %v1909 = vsel %vm1896, %v1878, %v1908
        %v1910 = vsel %vm237, %v1893, %v1894
        %v1911 = vsel %vm1896, %v1880, %v1910
        %1920 = vst [vmem:[#allocation3 + $0x40] sm:$0xff] %v1897
        %1921 = vst [vmem:[#allocation3 + $0x48] sm:$0xff] %v1899
        %1922 = vst [vmem:[#allocation3 + $0x50] sm:$0xff] %v1901
        %1923 = vst [vmem:[#allocation3 + $0x58] sm:$0xff] %v1903
        %1924 = vst [vmem:[#allocation3 + $0x60] sm:$0xff] %v1905
        %1925 = vst [vmem:[#allocation3 + $0x68] sm:$0xff] %v1907
        %1926 = vst [vmem:[#allocation3 + $0x70] sm:$0xff] %v1909
        %1927 = vst [vmem:[#allocation3 + $0x78] sm:$0xff] %v1911
        %v1928 = vld [vmem:[%s171] sm:$0xff]
        %v1929 = vld [vmem:[%s171 + $0x8] sm:$0xff]
        %v1930 = vld [vmem:[%s171 + $0x10] sm:$0xf]
        %v1931 = vld [vmem:[%s171 + $0x14] sm:$0xff]
        %v1932 = vld [vmem:[%s171 + $0x1c] sm:$0xff]
        %v1933 = vld [vmem:[%s171 + $0x24] sm:$0xf]
        %v1934 = vld [vmem:[%s171 + $0x28] sm:$0xff]
        %v1935 = vld [vmem:[%s171 + $0x30] sm:$0xff]
        %v1936 = vld [vmem:[%s171 + $0x38] sm:$0xf]
        %v1937 = vld [vmem:[%s171 + $0x3c] sm:$0xff]
        %v1938 = vld [vmem:[%s171 + $0x44] sm:$0xff]
        %v1939 = vld [vmem:[%s171 + $0x4c] sm:$0xf]
        %1952 = vrot.lane.b32.xlu0 %v1928, 88
        %v1953 = vpop.permute.xlu0 %1952
        %1954 = vrot.lane.b32.xlu0 %v1929, 88
        %v1955 = vpop.permute.xlu0 %1954
        %1956 = vrot.lane.b32.xlu0 %v1930, 88
        %v1957 = vpop.permute.xlu0 %1956
        %1958 = vrot.lane.b32.xlu0 %v1931, 88
        %v1959 = vpop.permute.xlu0 %1958
        %1960 = vrot.lane.b32.xlu0 %v1932, 88
        %v1961 = vpop.permute.xlu0 %1960
        %1962 = vrot.lane.b32.xlu0 %v1933, 88
        %v1963 = vpop.permute.xlu0 %1962
        %1964 = vrot.lane.b32.xlu0 %v1934, 88
        %v1965 = vpop.permute.xlu0 %1964
        %1966 = vrot.lane.b32.xlu0 %v1935, 88
        %v1967 = vpop.permute.xlu0 %1966
        %1968 = vrot.lane.b32.xlu0 %v1936, 88
        %v1969 = vpop.permute.xlu0 %1968
        %1970 = vrot.lane.b32.xlu0 %v1937, 88
        %v1971 = vpop.permute.xlu0 %1970
        %1972 = vrot.lane.b32.xlu0 %v1938, 88
        %v1973 = vpop.permute.xlu0 %1972
        %1974 = vrot.lane.b32.xlu0 %v1939, 88
        %v1975 = vpop.permute.xlu0 %1974
        %v1976 = vrot.slane %v1953, 4
        %v1977 = vrot.slane %v1955, 4
        %v1978 = vrot.slane %v1957, 4
        %v1979 = vrot.slane %v1959, 4
        %v1980 = vrot.slane %v1961, 4
        %v1981 = vrot.slane %v1963, 4
        %v1982 = vrot.slane %v1965, 4
        %v1983 = vrot.slane %v1967, 4
        %v1984 = vrot.slane %v1969, 4
        %v1985 = vrot.slane %v1971, 4
        %v1986 = vrot.slane %v1973, 4
        %v1987 = vrot.slane %v1975, 4
        %v1988 = vsel %vm237, %v1976, %v1977
        %vm1989 = vcmask 719872
        %v1990 = vsel %vm1989, %v1953, %v1988
        %v1991 = vsel %vm237, %v1977, %v1978
        %v1992 = vsel %vm1989, %v1955, %v1991
        %v1993 = vsel %vm237, %v1979, %v1980
        %v1994 = vsel %vm1989, %v1959, %v1993
        %v1995 = vsel %vm237, %v1980, %v1981
        %v1996 = vsel %vm1989, %v1961, %v1995
        %v1997 = vsel %vm237, %v1982, %v1983
        %v1998 = vsel %vm1989, %v1965, %v1997
        %v1999 = vsel %vm237, %v1983, %v1984
        %v2000 = vsel %vm1989, %v1967, %v1999
        %v2001 = vsel %vm237, %v1985, %v1986
        %v2002 = vsel %vm1989, %v1971, %v2001
        %v2003 = vsel %vm237, %v1986, %v1987
        %v2004 = vsel %vm1989, %v1973, %v2003
        %2013 = vst [vmem:[#allocation3 + $0x80] sm:$0xff] %v1990
        %2014 = vst [vmem:[#allocation3 + $0x88] sm:$0xff] %v1992
        %2015 = vst [vmem:[#allocation3 + $0x90] sm:$0xff] %v1994
        %2016 = vst [vmem:[#allocation3 + $0x98] sm:$0xff] %v1996
        %2017 = vst [vmem:[#allocation3 + $0xa0] sm:$0xff] %v1998
        %2018 = vst [vmem:[#allocation3 + $0xa8] sm:$0xff] %v2000
        %2019 = vst [vmem:[#allocation3 + $0xb0] sm:$0xff] %v2002
        %2020 = vst [vmem:[#allocation3 + $0xb8] sm:$0xff] %v2004
        %s2021 = scalar_lea.vmem [#allocation5], 16
        %v2022 = vld [vmem:[%s2021] sm:$0xf]
        %v2023 = vld [vmem:[#allocation3] sm:$0xff]
        %v2024 = vld [vmem:[#allocation3 + $0x8] sm:$0xff]
        %v2025 = vld [vmem:[#allocation3 + $0x10] sm:$0xff]
        %v2026 = vld [vmem:[#allocation3 + $0x18] sm:$0xff]
        %v2027 = vld [vmem:[#allocation3 + $0x20] sm:$0xff]
        %v2028 = vld [vmem:[#allocation3 + $0x28] sm:$0xff]
        %v2029 = vld [vmem:[#allocation3 + $0x30] sm:$0xff]
        %v2030 = vld [vmem:[#allocation3 + $0x38] sm:$0xff]
        %v2031 = vld [vmem:[#allocation3 + $0x40] sm:$0xff]
        %v2032 = vld [vmem:[#allocation3 + $0x48] sm:$0xff]
        %v2033 = vld [vmem:[#allocation3 + $0x50] sm:$0xff]
        %v2034 = vld [vmem:[#allocation3 + $0x58] sm:$0xff]
        %v2035 = vld [vmem:[#allocation3 + $0x60] sm:$0xff]
        %v2036 = vld [vmem:[#allocation3 + $0x68] sm:$0xff]
        %v2037 = vld [vmem:[#allocation3 + $0x70] sm:$0xff]
        %v2038 = vld [vmem:[#allocation3 + $0x78] sm:$0xff]
        %v2039 = vld [vmem:[#allocation3 + $0x80] sm:$0xff]
        %v2040 = vld [vmem:[#allocation3 + $0x88] sm:$0xff]
        %v2041 = vld [vmem:[#allocation3 + $0x90] sm:$0xff]
        %v2042 = vld [vmem:[#allocation3 + $0x98] sm:$0xff]
        %v2043 = vld [vmem:[#allocation3 + $0xa0] sm:$0xff]
        %v2044 = vld [vmem:[#allocation3 + $0xa8] sm:$0xff]
        %v2045 = vld [vmem:[#allocation3 + $0xb0] sm:$0xff]
        %v2046 = vld [vmem:[#allocation3 + $0xb8] sm:$0xff]
        %v2071 = vunpack.c.l.b16 %v2023
        %v2072 = vunpack.c.h.b16 %v2023
        %v2073 = vunpack.c.l.b16 %v2024
        %v2074 = vunpack.c.h.b16 %v2024
        %v2075 = vunpack.c.l.b16 %v2025
        %v2076 = vunpack.c.h.b16 %v2025
        %v2077 = vunpack.c.l.b16 %v2026
        %v2078 = vunpack.c.h.b16 %v2026
        %v2079 = vunpack.c.l.b16 %v2027
        %v2080 = vunpack.c.h.b16 %v2027
        %v2081 = vunpack.c.l.b16 %v2028
        %v2082 = vunpack.c.h.b16 %v2028
        %v2083 = vunpack.c.l.b16 %v2029
        %v2084 = vunpack.c.h.b16 %v2029
        %v2085 = vunpack.c.l.b16 %v2030
        %v2086 = vunpack.c.h.b16 %v2030
        %v2087 = vunpack.c.l.b16 %v2031
        %v2088 = vunpack.c.h.b16 %v2031
        %v2089 = vunpack.c.l.b16 %v2032
        %v2090 = vunpack.c.h.b16 %v2032
        %v2091 = vunpack.c.l.b16 %v2033
        %v2092 = vunpack.c.h.b16 %v2033
        %v2093 = vunpack.c.l.b16 %v2034
        %v2094 = vunpack.c.h.b16 %v2034
        %v2095 = vunpack.c.l.b16 %v2035
        %v2096 = vunpack.c.h.b16 %v2035
        %v2097 = vunpack.c.l.b16 %v2036
        %v2098 = vunpack.c.h.b16 %v2036
        %v2099 = vunpack.c.l.b16 %v2037
        %v2100 = vunpack.c.h.b16 %v2037
        %v2101 = vunpack.c.l.b16 %v2038
        %v2102 = vunpack.c.h.b16 %v2038
        %v2103 = vunpack.c.l.b16 %v2039
        %v2104 = vunpack.c.h.b16 %v2039
        %v2105 = vunpack.c.l.b16 %v2040
        %v2106 = vunpack.c.h.b16 %v2040
        %v2107 = vunpack.c.l.b16 %v2041
        %v2108 = vunpack.c.h.b16 %v2041
        %v2109 = vunpack.c.l.b16 %v2042
        %v2110 = vunpack.c.h.b16 %v2042
        %v2111 = vunpack.c.l.b16 %v2043
        %v2112 = vunpack.c.h.b16 %v2043
        %v2113 = vunpack.c.l.b16 %v2044
        %v2114 = vunpack.c.h.b16 %v2044
        %v2115 = vunpack.c.l.b16 %v2045
        %v2116 = vunpack.c.h.b16 %v2045
        %v2117 = vunpack.c.l.b16 %v2046
        %v2118 = vunpack.c.h.b16 %v2046
        %v2119 = vpack.c.b16 %v2075, %v2071
        %v2120 = vpack.c.b16 %v2076, %v2072
        %v2121 = vpack.c.b16 %v2077, %v2073
        %v2122 = vpack.c.b16 %v2078, %v2074
        %v2123 = vpack.c.b16 %v2083, %v2079
        %v2124 = vpack.c.b16 %v2084, %v2080
        %v2125 = vpack.c.b16 %v2085, %v2081
        %v2126 = vpack.c.b16 %v2086, %v2082
        %v2127 = vpack.c.b16 %v2091, %v2087
        %v2128 = vpack.c.b16 %v2092, %v2088
        %v2129 = vpack.c.b16 %v2093, %v2089
        %v2130 = vpack.c.b16 %v2094, %v2090
        %v2131 = vpack.c.b16 %v2099, %v2095
        %v2132 = vpack.c.b16 %v2100, %v2096
        %v2133 = vpack.c.b16 %v2101, %v2097
        %v2134 = vpack.c.b16 %v2102, %v2098
        %v2135 = vpack.c.b16 %v2107, %v2103
        %v2136 = vpack.c.b16 %v2108, %v2104
        %v2137 = vpack.c.b16 %v2109, %v2105
        %v2138 = vpack.c.b16 %v2110, %v2106
        %v2139 = vpack.c.b16 %v2115, %v2111
        %v2140 = vpack.c.b16 %v2116, %v2112
        %v2141 = vpack.c.b16 %v2117, %v2113
        %v2142 = vpack.c.b16 %v2118, %v2114
        %v2168 = vsel %vm602, %v2022, 0
        %2170 = vmatpush.bf16.msra.mxu0 0
        %2171 = vmatpush.bf16.msra.mxu0 0
        %2172 = vmatpush.bf16.msra.mxu0 %v2139
        %2173 = vmatpush.bf16.msra.mxu0 %v2135
        %2174 = vmatpush.bf16.msra.mxu0 %v2131
        %2175 = vmatpush.bf16.msra.mxu0 %v2127
        %2176 = vmatpush.bf16.msra.mxu0 %v2123
        %2177 = vmatpush.bf16.msra.mxu0 %v2119
        %2178 = vmatmul.bf16.gmra.mxu0 %v2168
        %v2179 = vpop.f32.mrf.mxu0
        %v2180 = vadd.f32 0.0, %v2179
        %v2181 = vpop.f32.mrf.mxu0
        %2182 = vdwg.mxu0
        %2183 = vmatpush.bf16.msra.mxu0 0
        %2184 = vmatpush.bf16.msra.mxu0 0
        %2185 = vmatpush.bf16.msra.mxu0 %v2140
        %2186 = vmatpush.bf16.msra.mxu0 %v2136
        %2187 = vmatpush.bf16.msra.mxu0 %v2132
        %2188 = vmatpush.bf16.msra.mxu0 %v2128
        %2189 = vmatpush.bf16.msra.mxu0 %v2124
        %2190 = vmatpush.bf16.msra.mxu0 %v2120
        %2191 = vmatmul.bf16.gmra.mxu0 %v2168
        %v2192 = vpop.f32.mrf.mxu0
        %v2193 = vadd.f32 0.0, %v2192
        %v2194 = vpop.f32.mrf.mxu0
        %2195 = vdwg.mxu0
        %2196 = vmatpush.bf16.msra.mxu0 0
        %2197 = vmatpush.bf16.msra.mxu0 0
        %2198 = vmatpush.bf16.msra.mxu0 %v2141
        %2199 = vmatpush.bf16.msra.mxu0 %v2137
        %2200 = vmatpush.bf16.msra.mxu0 %v2133
        %2201 = vmatpush.bf16.msra.mxu0 %v2129
        %2202 = vmatpush.bf16.msra.mxu0 %v2125
        %2203 = vmatpush.bf16.msra.mxu0 %v2121
        %2204 = vmatmul.bf16.gmra.mxu0 %v2168
        %v2205 = vpop.f32.mrf.mxu0
        %v2206 = vadd.f32 0.0, %v2205
        %v2207 = vpop.f32.mrf.mxu0
        %2208 = vdwg.mxu0
        %2209 = vmatpush.bf16.msra.mxu0 0
        %2210 = vmatpush.bf16.msra.mxu0 0
        %2211 = vmatpush.bf16.msra.mxu0 %v2142
        %2212 = vmatpush.bf16.msra.mxu0 %v2138
        %2213 = vmatpush.bf16.msra.mxu0 %v2134
        %2214 = vmatpush.bf16.msra.mxu0 %v2130
        %2215 = vmatpush.bf16.msra.mxu0 %v2126
        %2216 = vmatpush.bf16.msra.mxu0 %v2122
        %2217 = vmatmul.bf16.gmra.mxu0 %v2168
        %v2218 = vpop.f32.mrf.mxu0
        %v2219 = vadd.f32 0.0, %v2218
        %v2220 = vpop.f32.mrf.mxu0
        %2221 = vdwg.mxu0
        %2222 = vst [vmem:[%s126 + $0x80] sm:$0xff] %v2180
        %2223 = vst [vmem:[%s126 + $0x88] sm:$0xff] %v2193
        %2224 = vst [vmem:[%s126 + $0x90] sm:$0xff] %v2206
        %2225 = vst [vmem:[%s126 + $0x98] sm:$0xff] %v2219
        %v2226 = vld [vmem:[%s171] sm:$0xff]
        %v2227 = vld [vmem:[%s171 + $0x8] sm:$0xff]
        %v2228 = vld [vmem:[%s171 + $0x10] sm:$0xf]
        %v2229 = vld [vmem:[%s171 + $0x14] sm:$0xff]
        %v2230 = vld [vmem:[%s171 + $0x1c] sm:$0xff]
        %v2231 = vld [vmem:[%s171 + $0x24] sm:$0xf]
        %v2232 = vld [vmem:[%s171 + $0x28] sm:$0xff]
        %v2233 = vld [vmem:[%s171 + $0x30] sm:$0xff]
        %v2234 = vld [vmem:[%s171 + $0x38] sm:$0xf]
        %v2235 = vld [vmem:[%s171 + $0x3c] sm:$0xff]
        %v2236 = vld [vmem:[%s171 + $0x44] sm:$0xff]
        %v2237 = vld [vmem:[%s171 + $0x4c] sm:$0xf]
        %2250 = vrot.lane.b32.xlu0 %v2226, 107
        %v2251 = vpop.permute.xlu0 %2250
        %2252 = vrot.lane.b32.xlu0 %v2227, 107
        %v2253 = vpop.permute.xlu0 %2252
        %2254 = vrot.lane.b32.xlu0 %v2228, 107
        %v2255 = vpop.permute.xlu0 %2254
        %2256 = vrot.lane.b32.xlu0 %v2229, 107
        %v2257 = vpop.permute.xlu0 %2256
        %2258 = vrot.lane.b32.xlu0 %v2230, 107
        %v2259 = vpop.permute.xlu0 %2258
        %2260 = vrot.lane.b32.xlu0 %v2231, 107
        %v2261 = vpop.permute.xlu0 %2260
        %2262 = vrot.lane.b32.xlu0 %v2232, 107
        %v2263 = vpop.permute.xlu0 %2262
        %2264 = vrot.lane.b32.xlu0 %v2233, 107
        %v2265 = vpop.permute.xlu0 %2264
        %2266 = vrot.lane.b32.xlu0 %v2234, 107
        %v2267 = vpop.permute.xlu0 %2266
        %2268 = vrot.lane.b32.xlu0 %v2235, 107
        %v2269 = vpop.permute.xlu0 %2268
        %2270 = vrot.lane.b32.xlu0 %v2236, 107
        %v2271 = vpop.permute.xlu0 %2270
        %2272 = vrot.lane.b32.xlu0 %v2237, 107
        %v2273 = vpop.permute.xlu0 %2272
        %v2274 = vrot.slane %v2251, 4
        %v2275 = vrot.slane %v2253, 4
        %v2276 = vrot.slane %v2255, 4
        %v2277 = vrot.slane %v2257, 4
        %v2278 = vrot.slane %v2259, 4
        %v2279 = vrot.slane %v2261, 4
        %v2280 = vrot.slane %v2263, 4
        %v2281 = vrot.slane %v2265, 4
        %v2282 = vrot.slane %v2267, 4
        %v2283 = vrot.slane %v2269, 4
        %v2284 = vrot.slane %v2271, 4
        %v2285 = vrot.slane %v2273, 4
        %v2286 = vsel %vm237, %v2274, %v2275
        %vm2287 = vcmask 875520
        %v2288 = vsel %vm2287, %v2251, %v2286
        %v2289 = vsel %vm237, %v2275, %v2276
        %v2290 = vsel %vm2287, %v2253, %v2289
        %v2291 = vsel %vm237, %v2277, %v2278
        %v2292 = vsel %vm2287, %v2257, %v2291
        %v2293 = vsel %vm237, %v2278, %v2279
        %v2294 = vsel %vm2287, %v2259, %v2293
        %v2295 = vsel %vm237, %v2280, %v2281
        %v2296 = vsel %vm2287, %v2263, %v2295
        %v2297 = vsel %vm237, %v2281, %v2282
        %v2298 = vsel %vm2287, %v2265, %v2297
        %v2299 = vsel %vm237, %v2283, %v2284
        %v2300 = vsel %vm2287, %v2269, %v2299
        %v2301 = vsel %vm237, %v2284, %v2285
        %v2302 = vsel %vm2287, %v2271, %v2301
        %2311 = vst [vmem:[#allocation3 + $0x40] sm:$0xff] %v2288
        %2312 = vst [vmem:[#allocation3 + $0x48] sm:$0xff] %v2290
        %2313 = vst [vmem:[#allocation3 + $0x50] sm:$0xff] %v2292
        %2314 = vst [vmem:[#allocation3 + $0x58] sm:$0xff] %v2294
        %2315 = vst [vmem:[#allocation3 + $0x60] sm:$0xff] %v2296
        %2316 = vst [vmem:[#allocation3 + $0x68] sm:$0xff] %v2298
        %2317 = vst [vmem:[#allocation3 + $0x70] sm:$0xff] %v2300
        %2318 = vst [vmem:[#allocation3 + $0x78] sm:$0xff] %v2302
        %v2319 = vld [vmem:[%s171] sm:$0xff]
        %v2320 = vld [vmem:[%s171 + $0x8] sm:$0xff]
        %v2321 = vld [vmem:[%s171 + $0x14] sm:$0xff]
        %v2322 = vld [vmem:[%s171 + $0x1c] sm:$0xff]
        %v2323 = vld [vmem:[%s171 + $0x28] sm:$0xff]
        %v2324 = vld [vmem:[%s171 + $0x30] sm:$0xff]
        %v2325 = vld [vmem:[%s171 + $0x3c] sm:$0xff]
        %v2326 = vld [vmem:[%s171 + $0x44] sm:$0xff]
        %2327 = vst [vmem:[#allocation3 + $0x80] sm:$0xff] %v2319
        %2328 = vst [vmem:[#allocation3 + $0x88] sm:$0xff] %v2320
        %2329 = vst [vmem:[#allocation3 + $0x90] sm:$0xff] %v2321
        %2330 = vst [vmem:[#allocation3 + $0x98] sm:$0xff] %v2322
        %2331 = vst [vmem:[#allocation3 + $0xa0] sm:$0xff] %v2323
        %2332 = vst [vmem:[#allocation3 + $0xa8] sm:$0xff] %v2324
        %2333 = vst [vmem:[#allocation3 + $0xb0] sm:$0xff] %v2325
        %2334 = vst [vmem:[#allocation3 + $0xb8] sm:$0xff] %v2326
        %s2335 = scalar_lea.vmem [#allocation5], 20
        %v2336 = vld [vmem:[%s2335] sm:$0xf]
        %v2337 = vld [vmem:[#allocation3] sm:$0xff]
        %v2338 = vld [vmem:[#allocation3 + $0x8] sm:$0xff]
        %v2339 = vld [vmem:[#allocation3 + $0x10] sm:$0xff]
        %v2340 = vld [vmem:[#allocation3 + $0x18] sm:$0xff]
        %v2341 = vld [vmem:[#allocation3 + $0x20] sm:$0xff]
        %v2342 = vld [vmem:[#allocation3 + $0x28] sm:$0xff]
        %v2343 = vld [vmem:[#allocation3 + $0x30] sm:$0xff]
        %v2344 = vld [vmem:[#allocation3 + $0x38] sm:$0xff]
        %v2345 = vld [vmem:[#allocation3 + $0x40] sm:$0xff]
        %v2346 = vld [vmem:[#allocation3 + $0x48] sm:$0xff]
        %v2347 = vld [vmem:[#allocation3 + $0x50] sm:$0xff]
        %v2348 = vld [vmem:[#allocation3 + $0x58] sm:$0xff]
        %v2349 = vld [vmem:[#allocation3 + $0x60] sm:$0xff]
        %v2350 = vld [vmem:[#allocation3 + $0x68] sm:$0xff]
        %v2351 = vld [vmem:[#allocation3 + $0x70] sm:$0xff]
        %v2352 = vld [vmem:[#allocation3 + $0x78] sm:$0xff]
        %v2353 = vld [vmem:[#allocation3 + $0x80] sm:$0xff]
        %v2354 = vld [vmem:[#allocation3 + $0x88] sm:$0xff]
        %v2355 = vld [vmem:[#allocation3 + $0x90] sm:$0xff]
        %v2356 = vld [vmem:[#allocation3 + $0x98] sm:$0xff]
        %v2357 = vld [vmem:[#allocation3 + $0xa0] sm:$0xff]
        %v2358 = vld [vmem:[#allocation3 + $0xa8] sm:$0xff]
        %v2359 = vld [vmem:[#allocation3 + $0xb0] sm:$0xff]
        %v2360 = vld [vmem:[#allocation3 + $0xb8] sm:$0xff]
        %v2385 = vunpack.c.l.b16 %v2337
        %v2386 = vunpack.c.h.b16 %v2337
        %v2387 = vunpack.c.l.b16 %v2338
        %v2388 = vunpack.c.h.b16 %v2338
        %v2389 = vunpack.c.l.b16 %v2339
        %v2390 = vunpack.c.h.b16 %v2339
        %v2391 = vunpack.c.l.b16 %v2340
        %v2392 = vunpack.c.h.b16 %v2340
        %v2393 = vunpack.c.l.b16 %v2341
        %v2394 = vunpack.c.h.b16 %v2341
        %v2395 = vunpack.c.l.b16 %v2342
        %v2396 = vunpack.c.h.b16 %v2342
        %v2397 = vunpack.c.l.b16 %v2343
        %v2398 = vunpack.c.h.b16 %v2343
        %v2399 = vunpack.c.l.b16 %v2344
        %v2400 = vunpack.c.h.b16 %v2344
        %v2401 = vunpack.c.l.b16 %v2345
        %v2402 = vunpack.c.h.b16 %v2345
        %v2403 = vunpack.c.l.b16 %v2346
        %v2404 = vunpack.c.h.b16 %v2346
        %v2405 = vunpack.c.l.b16 %v2347
        %v2406 = vunpack.c.h.b16 %v2347
        %v2407 = vunpack.c.l.b16 %v2348
        %v2408 = vunpack.c.h.b16 %v2348
        %v2409 = vunpack.c.l.b16 %v2349
        %v2410 = vunpack.c.h.b16 %v2349
        %v2411 = vunpack.c.l.b16 %v2350
        %v2412 = vunpack.c.h.b16 %v2350
        %v2413 = vunpack.c.l.b16 %v2351
        %v2414 = vunpack.c.h.b16 %v2351
        %v2415 = vunpack.c.l.b16 %v2352
        %v2416 = vunpack.c.h.b16 %v2352
        %v2417 = vunpack.c.l.b16 %v2353
        %v2418 = vunpack.c.h.b16 %v2353
        %v2419 = vunpack.c.l.b16 %v2354
        %v2420 = vunpack.c.h.b16 %v2354
        %v2421 = vunpack.c.l.b16 %v2355
        %v2422 = vunpack.c.h.b16 %v2355
        %v2423 = vunpack.c.l.b16 %v2356
        %v2424 = vunpack.c.h.b16 %v2356
        %v2425 = vunpack.c.l.b16 %v2357
        %v2426 = vunpack.c.h.b16 %v2357
        %v2427 = vunpack.c.l.b16 %v2358
        %v2428 = vunpack.c.h.b16 %v2358
        %v2429 = vunpack.c.l.b16 %v2359
        %v2430 = vunpack.c.h.b16 %v2359
        %v2431 = vunpack.c.l.b16 %v2360
        %v2432 = vunpack.c.h.b16 %v2360
        %v2433 = vpack.c.b16 %v2389, %v2385
        %v2434 = vpack.c.b16 %v2390, %v2386
        %v2435 = vpack.c.b16 %v2391, %v2387
        %v2436 = vpack.c.b16 %v2392, %v2388
        %v2437 = vpack.c.b16 %v2397, %v2393
        %v2438 = vpack.c.b16 %v2398, %v2394
        %v2439 = vpack.c.b16 %v2399, %v2395
        %v2440 = vpack.c.b16 %v2400, %v2396
        %v2441 = vpack.c.b16 %v2405, %v2401
        %v2442 = vpack.c.b16 %v2406, %v2402
        %v2443 = vpack.c.b16 %v2407, %v2403
        %v2444 = vpack.c.b16 %v2408, %v2404
        %v2445 = vpack.c.b16 %v2413, %v2409
        %v2446 = vpack.c.b16 %v2414, %v2410
        %v2447 = vpack.c.b16 %v2415, %v2411
        %v2448 = vpack.c.b16 %v2416, %v2412
        %v2449 = vpack.c.b16 %v2421, %v2417
        %v2450 = vpack.c.b16 %v2422, %v2418
        %v2451 = vpack.c.b16 %v2423, %v2419
        %v2452 = vpack.c.b16 %v2424, %v2420
        %v2453 = vpack.c.b16 %v2429, %v2425
        %v2454 = vpack.c.b16 %v2430, %v2426
        %v2455 = vpack.c.b16 %v2431, %v2427
        %v2456 = vpack.c.b16 %v2432, %v2428
        %v2482 = vsel %vm602, %v2336, 0
        %2484 = vmatpush.bf16.msra.mxu0 0
        %2485 = vmatpush.bf16.msra.mxu0 0
        %2486 = vmatpush.bf16.msra.mxu0 %v2453
        %2487 = vmatpush.bf16.msra.mxu0 %v2449
        %2488 = vmatpush.bf16.msra.mxu0 %v2445
        %2489 = vmatpush.bf16.msra.mxu0 %v2441
        %2490 = vmatpush.bf16.msra.mxu0 %v2437
        %2491 = vmatpush.bf16.msra.mxu0 %v2433
        %2492 = vmatmul.bf16.gmra.mxu0 %v2482
        %v2493 = vpop.f32.mrf.mxu0
        %v2494 = vadd.f32 0.0, %v2493
        %v2495 = vpop.f32.mrf.mxu0
        %2496 = vdwg.mxu0
        %2497 = vmatpush.bf16.msra.mxu0 0
        %2498 = vmatpush.bf16.msra.mxu0 0
        %2499 = vmatpush.bf16.msra.mxu0 %v2454
        %2500 = vmatpush.bf16.msra.mxu0 %v2450
        %2501 = vmatpush.bf16.msra.mxu0 %v2446
        %2502 = vmatpush.bf16.msra.mxu0 %v2442
        %2503 = vmatpush.bf16.msra.mxu0 %v2438
        %2504 = vmatpush.bf16.msra.mxu0 %v2434
        %2505 = vmatmul.bf16.gmra.mxu0 %v2482
        %v2506 = vpop.f32.mrf.mxu0
        %v2507 = vadd.f32 0.0, %v2506
        %v2508 = vpop.f32.mrf.mxu0
        %2509 = vdwg.mxu0
        %2510 = vmatpush.bf16.msra.mxu0 0
        %2511 = vmatpush.bf16.msra.mxu0 0
        %2512 = vmatpush.bf16.msra.mxu0 %v2455
        %2513 = vmatpush.bf16.msra.mxu0 %v2451
        %2514 = vmatpush.bf16.msra.mxu0 %v2447
        %2515 = vmatpush.bf16.msra.mxu0 %v2443
        %2516 = vmatpush.bf16.msra.mxu0 %v2439
        %2517 = vmatpush.bf16.msra.mxu0 %v2435
        %2518 = vmatmul.bf16.gmra.mxu0 %v2482
        %v2519 = vpop.f32.mrf.mxu0
        %v2520 = vadd.f32 0.0, %v2519
        %v2521 = vpop.f32.mrf.mxu0
        %2522 = vdwg.mxu0
        %2523 = vmatpush.bf16.msra.mxu0 0
        %2524 = vmatpush.bf16.msra.mxu0 0
        %2525 = vmatpush.bf16.msra.mxu0 %v2456
        %2526 = vmatpush.bf16.msra.mxu0 %v2452
        %2527 = vmatpush.bf16.msra.mxu0 %v2448
        %2528 = vmatpush.bf16.msra.mxu0 %v2444
        %2529 = vmatpush.bf16.msra.mxu0 %v2440
        %2530 = vmatpush.bf16.msra.mxu0 %v2436
        %2531 = vmatmul.bf16.gmra.mxu0 %v2482
        %v2532 = vpop.f32.mrf.mxu0
        %v2533 = vadd.f32 0.0, %v2532
        %v2534 = vpop.f32.mrf.mxu0
        %2535 = vdwg.mxu0
        %2536 = vst [vmem:[%s126 + $0xa0] sm:$0xff] %v2494
        %2537 = vst [vmem:[%s126 + $0xa8] sm:$0xff] %v2507
        %2538 = vst [vmem:[%s126 + $0xb0] sm:$0xff] %v2520
        %2539 = vst [vmem:[%s126 + $0xb8] sm:$0xff] %v2533
        %v2540 = vld [vmem:[%s171] sm:$0xff]
        %v2541 = vld [vmem:[%s171 + $0x8] sm:$0xff]
        %v2542 = vld [vmem:[%s171 + $0x10] sm:$0xf]
        %v2543 = vld [vmem:[%s171 + $0x14] sm:$0xff]
        %v2544 = vld [vmem:[%s171 + $0x1c] sm:$0xff]
        %v2545 = vld [vmem:[%s171 + $0x24] sm:$0xf]
        %v2546 = vld [vmem:[%s171 + $0x28] sm:$0xff]
        %v2547 = vld [vmem:[%s171 + $0x30] sm:$0xff]
        %v2548 = vld [vmem:[%s171 + $0x38] sm:$0xf]
        %v2549 = vld [vmem:[%s171 + $0x3c] sm:$0xff]
        %v2550 = vld [vmem:[%s171 + $0x44] sm:$0xff]
        %v2551 = vld [vmem:[%s171 + $0x4c] sm:$0xf]
        %2564 = vrot.lane.b32.xlu0 %v2540, 106
        %v2565 = vpop.permute.xlu0 %2564
        %2566 = vrot.lane.b32.xlu0 %v2541, 106
        %v2567 = vpop.permute.xlu0 %2566
        %2568 = vrot.lane.b32.xlu0 %v2542, 106
        %v2569 = vpop.permute.xlu0 %2568
        %2570 = vrot.lane.b32.xlu0 %v2543, 106
        %v2571 = vpop.permute.xlu0 %2570
        %2572 = vrot.lane.b32.xlu0 %v2544, 106
        %v2573 = vpop.permute.xlu0 %2572
        %2574 = vrot.lane.b32.xlu0 %v2545, 106
        %v2575 = vpop.permute.xlu0 %2574
        %2576 = vrot.lane.b32.xlu0 %v2546, 106
        %v2577 = vpop.permute.xlu0 %2576
        %2578 = vrot.lane.b32.xlu0 %v2547, 106
        %v2579 = vpop.permute.xlu0 %2578
        %2580 = vrot.lane.b32.xlu0 %v2548, 106
        %v2581 = vpop.permute.xlu0 %2580
        %2582 = vrot.lane.b32.xlu0 %v2549, 106
        %v2583 = vpop.permute.xlu0 %2582
        %2584 = vrot.lane.b32.xlu0 %v2550, 106
        %v2585 = vpop.permute.xlu0 %2584
        %2586 = vrot.lane.b32.xlu0 %v2551, 106
        %v2587 = vpop.permute.xlu0 %2586
        %v2588 = vrot.slane %v2565, 4
        %v2589 = vrot.slane %v2567, 4
        %v2590 = vrot.slane %v2569, 4
        %v2591 = vrot.slane %v2571, 4
        %v2592 = vrot.slane %v2573, 4
        %v2593 = vrot.slane %v2575, 4
        %v2594 = vrot.slane %v2577, 4
        %v2595 = vrot.slane %v2579, 4
        %v2596 = vrot.slane %v2581, 4
        %v2597 = vrot.slane %v2583, 4
        %v2598 = vrot.slane %v2585, 4
        %v2599 = vrot.slane %v2587, 4
        %v2600 = vsel %vm237, %v2588, %v2589
        %vm2601 = vcmask 867328
        %v2602 = vsel %vm2601, %v2565, %v2600
        %v2603 = vsel %vm237, %v2589, %v2590
        %v2604 = vsel %vm2601, %v2567, %v2603
        %v2605 = vsel %vm237, %v2591, %v2592
        %v2606 = vsel %vm2601, %v2571, %v2605
        %v2607 = vsel %vm237, %v2592, %v2593
        %v2608 = vsel %vm2601, %v2573, %v2607
        %v2609 = vsel %vm237, %v2594, %v2595
        %v2610 = vsel %vm2601, %v2577, %v2609
        %v2611 = vsel %vm237, %v2595, %v2596
        %v2612 = vsel %vm2601, %v2579, %v2611
        %v2613 = vsel %vm237, %v2597, %v2598
        %v2614 = vsel %vm2601, %v2583, %v2613
        %v2615 = vsel %vm237, %v2598, %v2599
        %v2616 = vsel %vm2601, %v2585, %v2615
        %2625 = vst [vmem:[#allocation3 + $0x40] sm:$0xff] %v2602
        %2626 = vst [vmem:[#allocation3 + $0x48] sm:$0xff] %v2604
        %2627 = vst [vmem:[#allocation3 + $0x50] sm:$0xff] %v2606
        %2628 = vst [vmem:[#allocation3 + $0x58] sm:$0xff] %v2608
        %2629 = vst [vmem:[#allocation3 + $0x60] sm:$0xff] %v2610
        %2630 = vst [vmem:[#allocation3 + $0x68] sm:$0xff] %v2612
        %2631 = vst [vmem:[#allocation3 + $0x70] sm:$0xff] %v2614
        %2632 = vst [vmem:[#allocation3 + $0x78] sm:$0xff] %v2616
        %v2633 = vld [vmem:[%s171] sm:$0xff]
        %v2634 = vld [vmem:[%s171 + $0x8] sm:$0xff]
        %v2635 = vld [vmem:[%s171 + $0x10] sm:$0xf]
        %v2636 = vld [vmem:[%s171 + $0x14] sm:$0xff]
        %v2637 = vld [vmem:[%s171 + $0x1c] sm:$0xff]
        %v2638 = vld [vmem:[%s171 + $0x24] sm:$0xf]
        %v2639 = vld [vmem:[%s171 + $0x28] sm:$0xff]
        %v2640 = vld [vmem:[%s171 + $0x30] sm:$0xff]
        %v2641 = vld [vmem:[%s171 + $0x38] sm:$0xf]
        %v2642 = vld [vmem:[%s171 + $0x3c] sm:$0xff]
        %v2643 = vld [vmem:[%s171 + $0x44] sm:$0xff]
        %v2644 = vld [vmem:[%s171 + $0x4c] sm:$0xf]
        %2657 = vrot.lane.b32.xlu0 %v2633, 126
        %v2658 = vpop.permute.xlu0 %2657
        %2659 = vrot.lane.b32.xlu0 %v2634, 126
        %v2660 = vpop.permute.xlu0 %2659
        %2661 = vrot.lane.b32.xlu0 %v2635, 126
        %v2662 = vpop.permute.xlu0 %2661
        %2663 = vrot.lane.b32.xlu0 %v2636, 126
        %v2664 = vpop.permute.xlu0 %2663
        %2665 = vrot.lane.b32.xlu0 %v2637, 126
        %v2666 = vpop.permute.xlu0 %2665
        %2667 = vrot.lane.b32.xlu0 %v2638, 126
        %v2668 = vpop.permute.xlu0 %2667
        %2669 = vrot.lane.b32.xlu0 %v2639, 126
        %v2670 = vpop.permute.xlu0 %2669
        %2671 = vrot.lane.b32.xlu0 %v2640, 126
        %v2672 = vpop.permute.xlu0 %2671
        %2673 = vrot.lane.b32.xlu0 %v2641, 126
        %v2674 = vpop.permute.xlu0 %2673
        %2675 = vrot.lane.b32.xlu0 %v2642, 126
        %v2676 = vpop.permute.xlu0 %2675
        %2677 = vrot.lane.b32.xlu0 %v2643, 126
        %v2678 = vpop.permute.xlu0 %2677
        %2679 = vrot.lane.b32.xlu0 %v2644, 126
        %v2680 = vpop.permute.xlu0 %2679
        %v2681 = vrot.slane %v2658, 4
        %v2682 = vrot.slane %v2660, 4
        %v2683 = vrot.slane %v2662, 4
        %v2684 = vrot.slane %v2664, 4
        %v2685 = vrot.slane %v2666, 4
        %v2686 = vrot.slane %v2668, 4
        %v2687 = vrot.slane %v2670, 4
        %v2688 = vrot.slane %v2672, 4
        %v2689 = vrot.slane %v2674, 4
        %v2690 = vrot.slane %v2676, 4
        %v2691 = vrot.slane %v2678, 4
        %v2692 = vrot.slane %v2680, 4
        %v2693 = vsel %vm237, %v2681, %v2682
        %vm2694 = vcmask 1031168
        %v2695 = vsel %vm2694, %v2658, %v2693
        %v2696 = vsel %vm237, %v2682, %v2683
        %v2697 = vsel %vm2694, %v2660, %v2696
        %v2698 = vsel %vm237, %v2684, %v2685
        %v2699 = vsel %vm2694, %v2664, %v2698
        %v2700 = vsel %vm237, %v2685, %v2686
        %v2701 = vsel %vm2694, %v2666, %v2700
        %v2702 = vsel %vm237, %v2687, %v2688
        %v2703 = vsel %vm2694, %v2670, %v2702
        %v2704 = vsel %vm237, %v2688, %v2689
        %v2705 = vsel %vm2694, %v2672, %v2704
        %v2706 = vsel %vm237, %v2690, %v2691
        %v2707 = vsel %vm2694, %v2676, %v2706
        %v2708 = vsel %vm237, %v2691, %v2692
        %v2709 = vsel %vm2694, %v2678, %v2708
        %2718 = vst [vmem:[#allocation3 + $0x80] sm:$0xff] %v2695
        %2719 = vst [vmem:[#allocation3 + $0x88] sm:$0xff] %v2697
        %2720 = vst [vmem:[#allocation3 + $0x90] sm:$0xff] %v2699
        %2721 = vst [vmem:[#allocation3 + $0x98] sm:$0xff] %v2701
        %2722 = vst [vmem:[#allocation3 + $0xa0] sm:$0xff] %v2703
        %2723 = vst [vmem:[#allocation3 + $0xa8] sm:$0xff] %v2705
        %2724 = vst [vmem:[#allocation3 + $0xb0] sm:$0xff] %v2707
        %2725 = vst [vmem:[#allocation3 + $0xb8] sm:$0xff] %v2709
        %s2726 = scalar_lea.vmem [#allocation5], 24
        %v2727 = vld [vmem:[%s2726] sm:$0xf]
        %v2728 = vld [vmem:[#allocation3] sm:$0xff]
        %v2729 = vld [vmem:[#allocation3 + $0x8] sm:$0xff]
        %v2730 = vld [vmem:[#allocation3 + $0x10] sm:$0xff]
        %v2731 = vld [vmem:[#allocation3 + $0x18] sm:$0xff]
        %v2732 = vld [vmem:[#allocation3 + $0x20] sm:$0xff]
        %v2733 = vld [vmem:[#allocation3 + $0x28] sm:$0xff]
        %v2734 = vld [vmem:[#allocation3 + $0x30] sm:$0xff]
        %v2735 = vld [vmem:[#allocation3 + $0x38] sm:$0xff]
        %v2736 = vld [vmem:[#allocation3 + $0x40] sm:$0xff]
        %v2737 = vld [vmem:[#allocation3 + $0x48] sm:$0xff]
        %v2738 = vld [vmem:[#allocation3 + $0x50] sm:$0xff]
        %v2739 = vld [vmem:[#allocation3 + $0x58] sm:$0xff]
        %v2740 = vld [vmem:[#allocation3 + $0x60] sm:$0xff]
        %v2741 = vld [vmem:[#allocation3 + $0x68] sm:$0xff]
        %v2742 = vld [vmem:[#allocation3 + $0x70] sm:$0xff]
        %v2743 = vld [vmem:[#allocation3 + $0x78] sm:$0xff]
        %v2744 = vld [vmem:[#allocation3 + $0x80] sm:$0xff]
        %v2745 = vld [vmem:[#allocation3 + $0x88] sm:$0xff]
        %v2746 = vld [vmem:[#allocation3 + $0x90] sm:$0xff]
        %v2747 = vld [vmem:[#allocation3 + $0x98] sm:$0xff]
        %v2748 = vld [vmem:[#allocation3 + $0xa0] sm:$0xff]
        %v2749 = vld [vmem:[#allocation3 + $0xa8] sm:$0xff]
        %v2750 = vld [vmem:[#allocation3 + $0xb0] sm:$0xff]
        %v2751 = vld [vmem:[#allocation3 + $0xb8] sm:$0xff]
        %v2776 = vunpack.c.l.b16 %v2728
        %v2777 = vunpack.c.h.b16 %v2728
        %v2778 = vunpack.c.l.b16 %v2729
        %v2779 = vunpack.c.h.b16 %v2729
        %v2780 = vunpack.c.l.b16 %v2730
        %v2781 = vunpack.c.h.b16 %v2730
        %v2782 = vunpack.c.l.b16 %v2731
        %v2783 = vunpack.c.h.b16 %v2731
        %v2784 = vunpack.c.l.b16 %v2732
        %v2785 = vunpack.c.h.b16 %v2732
        %v2786 = vunpack.c.l.b16 %v2733
        %v2787 = vunpack.c.h.b16 %v2733
        %v2788 = vunpack.c.l.b16 %v2734
        %v2789 = vunpack.c.h.b16 %v2734
        %v2790 = vunpack.c.l.b16 %v2735
        %v2791 = vunpack.c.h.b16 %v2735
        %v2792 = vunpack.c.l.b16 %v2736
        %v2793 = vunpack.c.h.b16 %v2736
        %v2794 = vunpack.c.l.b16 %v2737
        %v2795 = vunpack.c.h.b16 %v2737
        %v2796 = vunpack.c.l.b16 %v2738
        %v2797 = vunpack.c.h.b16 %v2738
        %v2798 = vunpack.c.l.b16 %v2739
        %v2799 = vunpack.c.h.b16 %v2739
        %v2800 = vunpack.c.l.b16 %v2740
        %v2801 = vunpack.c.h.b16 %v2740
        %v2802 = vunpack.c.l.b16 %v2741
        %v2803 = vunpack.c.h.b16 %v2741
        %v2804 = vunpack.c.l.b16 %v2742
        %v2805 = vunpack.c.h.b16 %v2742
        %v2806 = vunpack.c.l.b16 %v2743
        %v2807 = vunpack.c.h.b16 %v2743
        %v2808 = vunpack.c.l.b16 %v2744
        %v2809 = vunpack.c.h.b16 %v2744
        %v2810 = vunpack.c.l.b16 %v2745
        %v2811 = vunpack.c.h.b16 %v2745
        %v2812 = vunpack.c.l.b16 %v2746
        %v2813 = vunpack.c.h.b16 %v2746
        %v2814 = vunpack.c.l.b16 %v2747
        %v2815 = vunpack.c.h.b16 %v2747
        %v2816 = vunpack.c.l.b16 %v2748
        %v2817 = vunpack.c.h.b16 %v2748
        %v2818 = vunpack.c.l.b16 %v2749
        %v2819 = vunpack.c.h.b16 %v2749
        %v2820 = vunpack.c.l.b16 %v2750
        %v2821 = vunpack.c.h.b16 %v2750
        %v2822 = vunpack.c.l.b16 %v2751
        %v2823 = vunpack.c.h.b16 %v2751
        %v2824 = vpack.c.b16 %v2780, %v2776
        %v2825 = vpack.c.b16 %v2781, %v2777
        %v2826 = vpack.c.b16 %v2782, %v2778
        %v2827 = vpack.c.b16 %v2783, %v2779
        %v2828 = vpack.c.b16 %v2788, %v2784
        %v2829 = vpack.c.b16 %v2789, %v2785
        %v2830 = vpack.c.b16 %v2790, %v2786
        %v2831 = vpack.c.b16 %v2791, %v2787
        %v2832 = vpack.c.b16 %v2796, %v2792
        %v2833 = vpack.c.b16 %v2797, %v2793
        %v2834 = vpack.c.b16 %v2798, %v2794
        %v2835 = vpack.c.b16 %v2799, %v2795
        %v2836 = vpack.c.b16 %v2804, %v2800
        %v2837 = vpack.c.b16 %v2805, %v2801
        %v2838 = vpack.c.b16 %v2806, %v2802
        %v2839 = vpack.c.b16 %v2807, %v2803
        %v2840 = vpack.c.b16 %v2812, %v2808
        %v2841 = vpack.c.b16 %v2813, %v2809
        %v2842 = vpack.c.b16 %v2814, %v2810
        %v2843 = vpack.c.b16 %v2815, %v2811
        %v2844 = vpack.c.b16 %v2820, %v2816
        %v2845 = vpack.c.b16 %v2821, %v2817
        %v2846 = vpack.c.b16 %v2822, %v2818
        %v2847 = vpack.c.b16 %v2823, %v2819
        %v2873 = vsel %vm602, %v2727, 0
        %2875 = vmatpush.bf16.msra.mxu0 0
        %2876 = vmatpush.bf16.msra.mxu0 0
        %2877 = vmatpush.bf16.msra.mxu0 %v2844
        %2878 = vmatpush.bf16.msra.mxu0 %v2840
        %2879 = vmatpush.bf16.msra.mxu0 %v2836
        %2880 = vmatpush.bf16.msra.mxu0 %v2832
        %2881 = vmatpush.bf16.msra.mxu0 %v2828
        %2882 = vmatpush.bf16.msra.mxu0 %v2824
        %2883 = vmatmul.bf16.gmra.mxu0 %v2873
        %v2884 = vpop.f32.mrf.mxu0
        %v2885 = vadd.f32 0.0, %v2884
        %v2886 = vpop.f32.mrf.mxu0
        %2887 = vdwg.mxu0
        %2888 = vmatpush.bf16.msra.mxu0 0
        %2889 = vmatpush.bf16.msra.mxu0 0
        %2890 = vmatpush.bf16.msra.mxu0 %v2845
        %2891 = vmatpush.bf16.msra.mxu0 %v2841
        %2892 = vmatpush.bf16.msra.mxu0 %v2837
        %2893 = vmatpush.bf16.msra.mxu0 %v2833
        %2894 = vmatpush.bf16.msra.mxu0 %v2829
        %2895 = vmatpush.bf16.msra.mxu0 %v2825
        %2896 = vmatmul.bf16.gmra.mxu0 %v2873
        %v2897 = vpop.f32.mrf.mxu0
        %v2898 = vadd.f32 0.0, %v2897
        %v2899 = vpop.f32.mrf.mxu0
        %2900 = vdwg.mxu0
        %2901 = vmatpush.bf16.msra.mxu0 0
        %2902 = vmatpush.bf16.msra.mxu0 0
        %2903 = vmatpush.bf16.msra.mxu0 %v2846
        %2904 = vmatpush.bf16.msra.mxu0 %v2842
        %2905 = vmatpush.bf16.msra.mxu0 %v2838
        %2906 = vmatpush.bf16.msra.mxu0 %v2834
        %2907 = vmatpush.bf16.msra.mxu0 %v2830
        %2908 = vmatpush.bf16.msra.mxu0 %v2826
        %2909 = vmatmul.bf16.gmra.mxu0 %v2873
        %v2910 = vpop.f32.mrf.mxu0
        %v2911 = vadd.f32 0.0, %v2910
        %v2912 = vpop.f32.mrf.mxu0
        %2913 = vdwg.mxu0
        %2914 = vmatpush.bf16.msra.mxu0 0
        %2915 = vmatpush.bf16.msra.mxu0 0
        %2916 = vmatpush.bf16.msra.mxu0 %v2847
        %2917 = vmatpush.bf16.msra.mxu0 %v2843
        %2918 = vmatpush.bf16.msra.mxu0 %v2839
        %2919 = vmatpush.bf16.msra.mxu0 %v2835
        %2920 = vmatpush.bf16.msra.mxu0 %v2831
        %2921 = vmatpush.bf16.msra.mxu0 %v2827
        %2922 = vmatmul.bf16.gmra.mxu0 %v2873
        %v2923 = vpop.f32.mrf.mxu0
        %v2924 = vadd.f32 0.0, %v2923
        %v2925 = vpop.f32.mrf.mxu0
        %2926 = vdwg.mxu0
        %2927 = vst [vmem:[%s126 + $0xc0] sm:$0xff] %v2885
        %2928 = vst [vmem:[%s126 + $0xc8] sm:$0xff] %v2898
        %2929 = vst [vmem:[%s126 + $0xd0] sm:$0xff] %v2911
        %2930 = vst [vmem:[%s126 + $0xd8] sm:$0xff] %v2924
        %v2931 = vld [vmem:[%s171] sm:$0xff]
        %v2932 = vld [vmem:[%s171 + $0x8] sm:$0xff]
        %v2933 = vld [vmem:[%s171 + $0x10] sm:$0xf]
        %v2934 = vld [vmem:[%s171 + $0x14] sm:$0xff]
        %v2935 = vld [vmem:[%s171 + $0x1c] sm:$0xff]
        %v2936 = vld [vmem:[%s171 + $0x24] sm:$0xf]
        %v2937 = vld [vmem:[%s171 + $0x28] sm:$0xff]
        %v2938 = vld [vmem:[%s171 + $0x30] sm:$0xff]
        %v2939 = vld [vmem:[%s171 + $0x38] sm:$0xf]
        %v2940 = vld [vmem:[%s171 + $0x3c] sm:$0xff]
        %v2941 = vld [vmem:[%s171 + $0x44] sm:$0xff]
        %v2942 = vld [vmem:[%s171 + $0x4c] sm:$0xf]
        %2955 = vrot.lane.b32.xlu0 %v2931, 105
        %v2956 = vpop.permute.xlu0 %2955
        %2957 = vrot.lane.b32.xlu0 %v2932, 105
        %v2958 = vpop.permute.xlu0 %2957
        %2959 = vrot.lane.b32.xlu0 %v2933, 105
        %v2960 = vpop.permute.xlu0 %2959
        %2961 = vrot.lane.b32.xlu0 %v2934, 105
        %v2962 = vpop.permute.xlu0 %2961
        %2963 = vrot.lane.b32.xlu0 %v2935, 105
        %v2964 = vpop.permute.xlu0 %2963
        %2965 = vrot.lane.b32.xlu0 %v2936, 105
        %v2966 = vpop.permute.xlu0 %2965
        %2967 = vrot.lane.b32.xlu0 %v2937, 105
        %v2968 = vpop.permute.xlu0 %2967
        %2969 = vrot.lane.b32.xlu0 %v2938, 105
        %v2970 = vpop.permute.xlu0 %2969
        %2971 = vrot.lane.b32.xlu0 %v2939, 105
        %v2972 = vpop.permute.xlu0 %2971
        %2973 = vrot.lane.b32.xlu0 %v2940, 105
        %v2974 = vpop.permute.xlu0 %2973
        %2975 = vrot.lane.b32.xlu0 %v2941, 105
        %v2976 = vpop.permute.xlu0 %2975
        %2977 = vrot.lane.b32.xlu0 %v2942, 105
        %v2978 = vpop.permute.xlu0 %2977
        %v2979 = vrot.slane %v2956, 4
        %v2980 = vrot.slane %v2958, 4
        %v2981 = vrot.slane %v2960, 4
        %v2982 = vrot.slane %v2962, 4
        %v2983 = vrot.slane %v2964, 4
        %v2984 = vrot.slane %v2966, 4
        %v2985 = vrot.slane %v2968, 4
        %v2986 = vrot.slane %v2970, 4
        %v2987 = vrot.slane %v2972, 4
        %v2988 = vrot.slane %v2974, 4
        %v2989 = vrot.slane %v2976, 4
        %v2990 = vrot.slane %v2978, 4
        %v2991 = vsel %vm237, %v2979, %v2980
        %vm2992 = vcmask 859136
        %v2993 = vsel %vm2992, %v2956, %v2991
        %v2994 = vsel %vm237, %v2980, %v2981
        %v2995 = vsel %vm2992, %v2958, %v2994
        %v2996 = vsel %vm237, %v2982, %v2983
        %v2997 = vsel %vm2992, %v2962, %v2996
        %v2998 = vsel %vm237, %v2983, %v2984
        %v2999 = vsel %vm2992, %v2964, %v2998
        %v3000 = vsel %vm237, %v2985, %v2986
        %v3001 = vsel %vm2992, %v2968, %v3000
        %v3002 = vsel %vm237, %v2986, %v2987
        %v3003 = vsel %vm2992, %v2970, %v3002
        %v3004 = vsel %vm237, %v2988, %v2989
        %v3005 = vsel %vm2992, %v2974, %v3004
        %v3006 = vsel %vm237, %v2989, %v2990
        %v3007 = vsel %vm2992, %v2976, %v3006
        %3016 = vst [vmem:[#allocation3 + $0x40] sm:$0xff] %v2993
        %3017 = vst [vmem:[#allocation3 + $0x48] sm:$0xff] %v2995
        %3018 = vst [vmem:[#allocation3 + $0x50] sm:$0xff] %v2997
        %3019 = vst [vmem:[#allocation3 + $0x58] sm:$0xff] %v2999
        %3020 = vst [vmem:[#allocation3 + $0x60] sm:$0xff] %v3001
        %3021 = vst [vmem:[#allocation3 + $0x68] sm:$0xff] %v3003
        %3022 = vst [vmem:[#allocation3 + $0x70] sm:$0xff] %v3005
        %3023 = vst [vmem:[#allocation3 + $0x78] sm:$0xff] %v3007
        %v3024 = vld [vmem:[%s171] sm:$0xff]
        %v3025 = vld [vmem:[%s171 + $0x8] sm:$0xff]
        %v3026 = vld [vmem:[%s171 + $0x10] sm:$0xf]
        %v3027 = vld [vmem:[%s171 + $0x14] sm:$0xff]
        %v3028 = vld [vmem:[%s171 + $0x1c] sm:$0xff]
        %v3029 = vld [vmem:[%s171 + $0x24] sm:$0xf]
        %v3030 = vld [vmem:[%s171 + $0x28] sm:$0xff]
        %v3031 = vld [vmem:[%s171 + $0x30] sm:$0xff]
        %v3032 = vld [vmem:[%s171 + $0x38] sm:$0xf]
        %v3033 = vld [vmem:[%s171 + $0x3c] sm:$0xff]
        %v3034 = vld [vmem:[%s171 + $0x44] sm:$0xff]
        %v3035 = vld [vmem:[%s171 + $0x4c] sm:$0xf]
        %3048 = vrot.lane.b32.xlu0 %v3024, 124
        %v3049 = vpop.permute.xlu0 %3048
        %3050 = vrot.lane.b32.xlu0 %v3025, 124
        %v3051 = vpop.permute.xlu0 %3050
        %3052 = vrot.lane.b32.xlu0 %v3026, 124
        %v3053 = vpop.permute.xlu0 %3052
        %3054 = vrot.lane.b32.xlu0 %v3027, 124
        %v3055 = vpop.permute.xlu0 %3054
        %3056 = vrot.lane.b32.xlu0 %v3028, 124
        %v3057 = vpop.permute.xlu0 %3056
        %3058 = vrot.lane.b32.xlu0 %v3029, 124
        %v3059 = vpop.permute.xlu0 %3058
        %3060 = vrot.lane.b32.xlu0 %v3030, 124
        %v3061 = vpop.permute.xlu0 %3060
        %3062 = vrot.lane.b32.xlu0 %v3031, 124
        %v3063 = vpop.permute.xlu0 %3062
        %3064 = vrot.lane.b32.xlu0 %v3032, 124
        %v3065 = vpop.permute.xlu0 %3064
        %3066 = vrot.lane.b32.xlu0 %v3033, 124
        %v3067 = vpop.permute.xlu0 %3066
        %3068 = vrot.lane.b32.xlu0 %v3034, 124
        %v3069 = vpop.permute.xlu0 %3068
        %3070 = vrot.lane.b32.xlu0 %v3035, 124
        %v3071 = vpop.permute.xlu0 %3070
        %v3072 = vrot.slane %v3049, 4
        %v3073 = vrot.slane %v3051, 4
        %v3074 = vrot.slane %v3053, 4
        %v3075 = vrot.slane %v3055, 4
        %v3076 = vrot.slane %v3057, 4
        %v3077 = vrot.slane %v3059, 4
        %v3078 = vrot.slane %v3061, 4
        %v3079 = vrot.slane %v3063, 4
        %v3080 = vrot.slane %v3065, 4
        %v3081 = vrot.slane %v3067, 4
        %v3082 = vrot.slane %v3069, 4
        %v3083 = vrot.slane %v3071, 4
        %v3084 = vsel %vm237, %v3072, %v3073
        %vm3085 = vcmask 1014784
        %v3086 = vsel %vm3085, %v3049, %v3084
        %v3087 = vsel %vm237, %v3073, %v3074
        %v3088 = vsel %vm3085, %v3051, %v3087
        %v3089 = vsel %vm237, %v3075, %v3076
        %v3090 = vsel %vm3085, %v3055, %v3089
        %v3091 = vsel %vm237, %v3076, %v3077
        %v3092 = vsel %vm3085, %v3057, %v3091
        %v3093 = vsel %vm237, %v3078, %v3079
        %v3094 = vsel %vm3085, %v3061, %v3093
        %v3095 = vsel %vm237, %v3079, %v3080
        %v3096 = vsel %vm3085, %v3063, %v3095
        %v3097 = vsel %vm237, %v3081, %v3082
        %v3098 = vsel %vm3085, %v3067, %v3097
        %v3099 = vsel %vm237, %v3082, %v3083
        %v3100 = vsel %vm3085, %v3069, %v3099
        %3109 = vst [vmem:[#allocation3 + $0x80] sm:$0xff] %v3086
        %3110 = vst [vmem:[#allocation3 + $0x88] sm:$0xff] %v3088
        %3111 = vst [vmem:[#allocation3 + $0x90] sm:$0xff] %v3090
        %3112 = vst [vmem:[#allocation3 + $0x98] sm:$0xff] %v3092
        %3113 = vst [vmem:[#allocation3 + $0xa0] sm:$0xff] %v3094
        %3114 = vst [vmem:[#allocation3 + $0xa8] sm:$0xff] %v3096
        %3115 = vst [vmem:[#allocation3 + $0xb0] sm:$0xff] %v3098
        %3116 = vst [vmem:[#allocation3 + $0xb8] sm:$0xff] %v3100
        %s3117 = scalar_lea.vmem [#allocation5], 28
        %v3118 = vld [vmem:[%s3117] sm:$0xf]
        %v3119 = vld [vmem:[#allocation3] sm:$0xff]
        %v3120 = vld [vmem:[#allocation3 + $0x8] sm:$0xff]
        %v3121 = vld [vmem:[#allocation3 + $0x10] sm:$0xff]
        %v3122 = vld [vmem:[#allocation3 + $0x18] sm:$0xff]
        %v3123 = vld [vmem:[#allocation3 + $0x20] sm:$0xff]
        %v3124 = vld [vmem:[#allocation3 + $0x28] sm:$0xff]
        %v3125 = vld [vmem:[#allocation3 + $0x30] sm:$0xff]
        %v3126 = vld [vmem:[#allocation3 + $0x38] sm:$0xff]
        %v3127 = vld [vmem:[#allocation3 + $0x40] sm:$0xff]
        %v3128 = vld [vmem:[#allocation3 + $0x48] sm:$0xff]
        %v3129 = vld [vmem:[#allocation3 + $0x50] sm:$0xff]
        %v3130 = vld [vmem:[#allocation3 + $0x58] sm:$0xff]
        %v3131 = vld [vmem:[#allocation3 + $0x60] sm:$0xff]
        %v3132 = vld [vmem:[#allocation3 + $0x68] sm:$0xff]
        %v3133 = vld [vmem:[#allocation3 + $0x70] sm:$0xff]
        %v3134 = vld [vmem:[#allocation3 + $0x78] sm:$0xff]
        %v3135 = vld [vmem:[#allocation3 + $0x80] sm:$0xff]
        %v3136 = vld [vmem:[#allocation3 + $0x88] sm:$0xff]
        %v3137 = vld [vmem:[#allocation3 + $0x90] sm:$0xff]
        %v3138 = vld [vmem:[#allocation3 + $0x98] sm:$0xff]
        %v3139 = vld [vmem:[#allocation3 + $0xa0] sm:$0xff]
        %v3140 = vld [vmem:[#allocation3 + $0xa8] sm:$0xff]
        %v3141 = vld [vmem:[#allocation3 + $0xb0] sm:$0xff]
        %v3142 = vld [vmem:[#allocation3 + $0xb8] sm:$0xff]
        %v3167 = vunpack.c.l.b16 %v3119
        %v3168 = vunpack.c.h.b16 %v3119
        %v3169 = vunpack.c.l.b16 %v3120
        %v3170 = vunpack.c.h.b16 %v3120
        %v3171 = vunpack.c.l.b16 %v3121
        %v3172 = vunpack.c.h.b16 %v3121
        %v3173 = vunpack.c.l.b16 %v3122
        %v3174 = vunpack.c.h.b16 %v3122
        %v3175 = vunpack.c.l.b16 %v3123
        %v3176 = vunpack.c.h.b16 %v3123
        %v3177 = vunpack.c.l.b16 %v3124
        %v3178 = vunpack.c.h.b16 %v3124
        %v3179 = vunpack.c.l.b16 %v3125
        %v3180 = vunpack.c.h.b16 %v3125
        %v3181 = vunpack.c.l.b16 %v3126
        %v3182 = vunpack.c.h.b16 %v3126
        %v3183 = vunpack.c.l.b16 %v3127
        %v3184 = vunpack.c.h.b16 %v3127
        %v3185 = vunpack.c.l.b16 %v3128
        %v3186 = vunpack.c.h.b16 %v3128
        %v3187 = vunpack.c.l.b16 %v3129
        %v3188 = vunpack.c.h.b16 %v3129
        %v3189 = vunpack.c.l.b16 %v3130
        %v3190 = vunpack.c.h.b16 %v3130
        %v3191 = vunpack.c.l.b16 %v3131
        %v3192 = vunpack.c.h.b16 %v3131
        %v3193 = vunpack.c.l.b16 %v3132
        %v3194 = vunpack.c.h.b16 %v3132
        %v3195 = vunpack.c.l.b16 %v3133
        %v3196 = vunpack.c.h.b16 %v3133
        %v3197 = vunpack.c.l.b16 %v3134
        %v3198 = vunpack.c.h.b16 %v3134
        %v3199 = vunpack.c.l.b16 %v3135
        %v3200 = vunpack.c.h.b16 %v3135
        %v3201 = vunpack.c.l.b16 %v3136
        %v3202 = vunpack.c.h.b16 %v3136
        %v3203 = vunpack.c.l.b16 %v3137
        %v3204 = vunpack.c.h.b16 %v3137
        %v3205 = vunpack.c.l.b16 %v3138
        %v3206 = vunpack.c.h.b16 %v3138
        %v3207 = vunpack.c.l.b16 %v3139
        %v3208 = vunpack.c.h.b16 %v3139
        %v3209 = vunpack.c.l.b16 %v3140
        %v3210 = vunpack.c.h.b16 %v3140
        %v3211 = vunpack.c.l.b16 %v3141
        %v3212 = vunpack.c.h.b16 %v3141
        %v3213 = vunpack.c.l.b16 %v3142
        %v3214 = vunpack.c.h.b16 %v3142
        %v3215 = vpack.c.b16 %v3171, %v3167
        %v3216 = vpack.c.b16 %v3172, %v3168
        %v3217 = vpack.c.b16 %v3173, %v3169
        %v3218 = vpack.c.b16 %v3174, %v3170
        %v3219 = vpack.c.b16 %v3179, %v3175
        %v3220 = vpack.c.b16 %v3180, %v3176
        %v3221 = vpack.c.b16 %v3181, %v3177
        %v3222 = vpack.c.b16 %v3182, %v3178
        %v3223 = vpack.c.b16 %v3187, %v3183
        %v3224 = vpack.c.b16 %v3188, %v3184
        %v3225 = vpack.c.b16 %v3189, %v3185
        %v3226 = vpack.c.b16 %v3190, %v3186
        %v3227 = vpack.c.b16 %v3195, %v3191
        %v3228 = vpack.c.b16 %v3196, %v3192
        %v3229 = vpack.c.b16 %v3197, %v3193
        %v3230 = vpack.c.b16 %v3198, %v3194
        %v3231 = vpack.c.b16 %v3203, %v3199
        %v3232 = vpack.c.b16 %v3204, %v3200
        %v3233 = vpack.c.b16 %v3205, %v3201
        %v3234 = vpack.c.b16 %v3206, %v3202
        %v3235 = vpack.c.b16 %v3211, %v3207
        %v3236 = vpack.c.b16 %v3212, %v3208
        %v3237 = vpack.c.b16 %v3213, %v3209
        %v3238 = vpack.c.b16 %v3214, %v3210
        %v3264 = vsel %vm602, %v3118, 0
        %3266 = vmatpush.bf16.msra.mxu0 0
        %3267 = vmatpush.bf16.msra.mxu0 0
        %3268 = vmatpush.bf16.msra.mxu0 %v3235
        %3269 = vmatpush.bf16.msra.mxu0 %v3231
        %3270 = vmatpush.bf16.msra.mxu0 %v3227
        %3271 = vmatpush.bf16.msra.mxu0 %v3223
        %3272 = vmatpush.bf16.msra.mxu0 %v3219
        %3273 = vmatpush.bf16.msra.mxu0 %v3215
        %3274 = vmatmul.bf16.gmra.mxu0 %v3264
        %v3275 = vpop.f32.mrf.mxu0
        %v3276 = vadd.f32 0.0, %v3275
        %v3277 = vpop.f32.mrf.mxu0
        %3278 = vdwg.mxu0
        %3279 = vmatpush.bf16.msra.mxu0 0
        %3280 = vmatpush.bf16.msra.mxu0 0
        %3281 = vmatpush.bf16.msra.mxu0 %v3236
        %3282 = vmatpush.bf16.msra.mxu0 %v3232
        %3283 = vmatpush.bf16.msra.mxu0 %v3228
        %3284 = vmatpush.bf16.msra.mxu0 %v3224
        %3285 = vmatpush.bf16.msra.mxu0 %v3220
        %3286 = vmatpush.bf16.msra.mxu0 %v3216
        %3287 = vmatmul.bf16.gmra.mxu0 %v3264
        %v3288 = vpop.f32.mrf.mxu0
        %v3289 = vadd.f32 0.0, %v3288
        %v3290 = vpop.f32.mrf.mxu0
        %3291 = vdwg.mxu0
        %3292 = vmatpush.bf16.msra.mxu0 0
        %3293 = vmatpush.bf16.msra.mxu0 0
        %3294 = vmatpush.bf16.msra.mxu0 %v3237
        %3295 = vmatpush.bf16.msra.mxu0 %v3233
        %3296 = vmatpush.bf16.msra.mxu0 %v3229
        %3297 = vmatpush.bf16.msra.mxu0 %v3225
        %3298 = vmatpush.bf16.msra.mxu0 %v3221
        %3299 = vmatpush.bf16.msra.mxu0 %v3217
        %3300 = vmatmul.bf16.gmra.mxu0 %v3264
        %v3301 = vpop.f32.mrf.mxu0
        %v3302 = vadd.f32 0.0, %v3301
        %v3303 = vpop.f32.mrf.mxu0
        %3304 = vdwg.mxu0
        %3305 = vmatpush.bf16.msra.mxu0 0
        %3306 = vmatpush.bf16.msra.mxu0 0
        %3307 = vmatpush.bf16.msra.mxu0 %v3238
        %3308 = vmatpush.bf16.msra.mxu0 %v3234
        %3309 = vmatpush.bf16.msra.mxu0 %v3230
        %3310 = vmatpush.bf16.msra.mxu0 %v3226
        %3311 = vmatpush.bf16.msra.mxu0 %v3222
        %3312 = vmatpush.bf16.msra.mxu0 %v3218
        %3313 = vmatmul.bf16.gmra.mxu0 %v3264
        %v3314 = vpop.f32.mrf.mxu0
        %v3315 = vadd.f32 0.0, %v3314
        %v3316 = vpop.f32.mrf.mxu0
        %3317 = vdwg.mxu0
        %3318 = vst [vmem:[%s126 + $0xe0] sm:$0xff] %v3276
        %3319 = vst [vmem:[%s126 + $0xe8] sm:$0xff] %v3289
        %3320 = vst [vmem:[%s126 + $0xf0] sm:$0xff] %v3302
        %3321 = vst [vmem:[%s126 + $0xf8] sm:$0xff] %v3315
        %s3322 = sand.u32 %s60, 1
        %s3323 = scalar_lea.sflag [#allocation7], %s3322
        %s3324 = sand.u32 %s60, 1
        %s3325 = smul.addr %s3324, 256
        %s3326 = scalar_lea.vmem [#allocation8], %s3325
        // Predicated region
        $region37: #{tpu_custom_call.1} parent=23 // pred_check
          %p3327 = pneg %p70
        $region38: #{tpu_custom_call.1} parent=23 // pred_check_branch
          %3329 = sbr.rel (%p3327) target = $region40
        $region39: #{tpu_custom_call.1} parent=23 // pred_region
          %s3330 = smul.u32 4, %s22
          %3332 = vsyncadd %s3323, 0
          %s3333 = smul.addr %s21, 32
          %s3334 = sadd.s32 %s3330, %s3333
          %s3335 = smul.addr %s3334, 8
          %s3336 = scalar_lea.hbm %s2, %s3335
          %s3337 = sshll.u32 %s3326, 4
          %s3338 = int_to_ptr.vmem [resolvable:$true] %s3337
          %s3339 = sshll.u32 %s3336, 4
          %s3340 = int_to_ptr.hbm [resolvable:$true] %s3339
          %3345 = dma.vmem_to_hbm [thread:$0]  %s3338, 4096, %s3340, %s3323, 512, 512, 32
        $region40: #{tpu_custom_call.1} parent=23 // pred_fallthru
          _
      $region24: #{tpu_custom_call.1} parent=5 // pred_fallthru
        _
      %p3346 = scmp.le.s32.totalorder 2, %s12
      // Predicated region
      $region41: #{tpu_custom_call.1} parent=5 // pred_check
        %p3347 = pneg %p3346
      $region42: #{tpu_custom_call.1} parent=5 // pred_check_branch
        %3349 = sbr.rel (%p3347) target = $region44
      $region43: #{tpu_custom_call.1} parent=5 // pred_region
        %s3350 = ssub.s32 %s12, 2
        // Predicated region
        $region45: #{tpu_custom_call.1} parent=43 // pred_check
          %p3351 = pneg %p76
        $region46: #{tpu_custom_call.1} parent=43 // pred_check_branch
          %3353 = sbr.rel (%p3351) target = $region48
        $region47: #{tpu_custom_call.1} parent=43 // pred_region
          %s3354 = sand.u32 %s61, 1
          %s3355 = scalar_lea.sflag [#allocation7], %s3354
          %s3356 = sand.u32 %s61, 1
          %s3357 = smul.addr %s3356, 256
          %s3358 = scalar_lea.vmem [#allocation8], %s3357
          %3360 = dma.done %s3355, 4096
        $region48: #{tpu_custom_call.1} parent=43 // pred_fallthru
          _
      $region44: #{tpu_custom_call.1} parent=5 // pred_fallthru
        _
    $region6: #{tpu_custom_call.1} parent=1 // loop_footer
      %s16 = sadd.s32 1, %s12
    $region7: #{tpu_custom_call.1} parent=1 // loop_footer_branch
      %11 = sbr.rel target = $region3
    $region8: #{tpu_custom_call.1} parent=1 // loop_exit
      _
    %3361 = vsyncpa [#allocation6], 1
    %s3362 = scalar_lea.sflag [#allocation6], 1
    %3363 = vsyncpa %s3362, 1
    %3364 = vsyncpa [#allocation7], 1
    %s3365 = scalar_lea.sflag [#allocation7], 1
    %3366 = vsyncpa %s3365, 1
  %3367 = vsyncmov [#allocation4]
  %s3368 = vpop.sfrf %3367
  %p3369 = scmp.eq.s32.totalorder %s3368, 0
  %p3370 = pneg %p3369
  %3372 = shalt.err (%p3370)
  %s3373 = scalar_lea.sflag [#allocation4], 1
  %3374 = vsyncmov %s3373
  %s3375 = vpop.sfrf %3374
  %p3376 = scmp.eq.s32.totalorder %s3375, 0
  %p3377 = pneg %p3376
  %3379 = shalt.err (%p3377)

</llo_original>
